<compile_context>
chip_gen: v7x
topology: tpu7x:2x2x1
jax: 0.10.0
libtpu: 0.0.40
codegen_flags: <defaults>
</compile_context>

<pallas_src>
import functools

import jax
import jax.numpy as jnp
from jax.experimental import pallas as pl
from jax.experimental.pallas import tpu as pltpu


# ----------------------------- kernel ----------------------------------------

def _basic_block_kernel(xp_ref, w1_ref, s1_ref, b1_ref, w2_ref, s2_ref, b2_ref,
                        out_ref, mid_ref, slab_ref, *, H, W, TH):
    """One batch element per grid step.

    xp_ref  : (H+2, W+2, Cp)   zero-padded NHWC input, bf16 (channels -> Cp)
    w*_ref  : (3, 3*Cp, Cp)    conv taps, row = dh, K index = dw*Cp + cin, bf16
    s*_ref  : (1, Cp)          folded BN scale  gamma / sqrt(var + eps), f32
    b*_ref  : (1, Cp)          folded BN bias   beta - mean * scale,     f32
    out_ref : (H, W, Cp)       bf16 output
    mid_ref : (H+2, W+2, Cp)   bf16 VMEM scratch (padded conv1->conv2 buffer)
    slab_ref: (TH+2, W, 3*Cp)  bf16 VMEM scratch (dw-fused im2col slab)
    """
    Hp, Wp = H + 2, W + 2
    Cp = out_ref.shape[-1]
    K3 = 3 * Cp
    M = TH * W
    n_chunks = H // TH

    # Hoisted BN scale/bias loads: read once, reused by every chunk (avoids
    # re-emitting the load per unrolled chunk iteration).
    s1 = s1_ref[...]
    b1 = b1_ref[...]
    s2 = s2_ref[...]
    b2 = b2_ref[...]

    # Zero only the top/bottom padded rows of the intermediate.  The left/right
    # zero columns are folded into the full-width conv1 row stores below, so
    # every mid_ref element is (re)written each grid step -> grid steps stay
    # independent and the batch axis can be marked "parallel".
    zrow = jnp.zeros((1, Wp, Cp), jnp.bfloat16)
    mid_ref[0:1, :, :] = zrow
    mid_ref[Hp - 1:Hp, :, :] = zrow

    def conv3x3(src_ref, w_ref, r0):
        """3x3 conv outputs for padded rows [r0, r0+TH+2) of src_ref."""
        # Build the dw-fused im2col slab once, directly into a persistent VMEM
        # scratch: lane range [dw*Cp, (dw+1)*Cp) holds the dw-shifted window.
        # Each dh tap is then one K=3*Cp matmul; the dh shift is just a row
        # offset into the slab (no extra copies per tap).
        slab_ref[:, :, 0:Cp] = src_ref[pl.ds(r0, TH + 2), 0:W, :]
        slab_ref[:, :, Cp:2 * Cp] = src_ref[pl.ds(r0, TH + 2), 1:W + 1, :]
        slab_ref[:, :, 2 * Cp:K3] = src_ref[pl.ds(r0, TH + 2), 2:W + 2, :]
        acc = jnp.zeros((M, Cp), jnp.float32)
        for dh in range(3):
            patch = slab_ref[dh:dh + TH, :, :].reshape(M, K3)
            acc = acc + jnp.dot(patch, w_ref[dh],
                                preferred_element_type=jnp.float32)
        return acc                                   # (M, Cp) f32

    zcol = jnp.zeros((TH, 1, Cp), jnp.bfloat16)

    def conv1_chunk(r0):
        acc = conv3x3(xp_ref, w1_ref, r0)
        y = jnp.maximum(acc * s1 + b1, 0.0)
        y = y.reshape(TH, W, Cp).astype(jnp.bfloat16)
        # Full-width store with the zero edge columns folded in -> every mid
        # write is a lane/sublane-dense store (no 1-sublane masked column vst).
        mid_ref[pl.ds(r0 + 1, TH), :, :] = jnp.concatenate([zcol, y, zcol],
                                                           axis=1)

    def conv2_chunk(r0):
        acc = conv3x3(mid_ref, w2_ref, r0)
        ident = xp_ref[pl.ds(r0 + 1, TH), 1:W + 1, :].reshape(M, Cp)
        z = acc * s2 + b2 + ident.astype(jnp.float32)
        z = jnp.maximum(z, 0.0)
        out_ref[pl.ds(r0, TH), :, :] = z.reshape(TH, W, Cp).astype(out_ref.dtype)

    def foreach_chunk(body):
        if n_chunks <= 4:
            # Short trip count: fully unrolled with static row offsets.
            for t in range(n_chunks):
                body(t * TH)
        else:
            # Long trip count: bounded code size / live ranges via an in-kernel
            # loop with aligned dynamic row offsets.
            @pl.loop(0, n_chunks)
            def _(t):
                r0 = t * TH
                if TH % 8 == 0:
                    r0 = pl.multiple_of(r0, 8)
                body(r0)

    # ---- conv1 -> bn1 -> relu (into padded scratch), then conv2 -> bn2 ->
    # ---- +identity -> relu ----
    foreach_chunk(conv1_chunk)
    foreach_chunk(conv2_chunk)


# ----------------------------- wrapper helpers --------------------------------

def _round_up(x, m):
    return (x + m - 1) // m * m


def _fold_bn(gamma, beta, mean, var, eps, Cp):
    scale = gamma / jnp.sqrt(var + eps)
    bias = beta - mean * scale
    c = scale.shape[0]
    scale = jnp.pad(scale, (0, Cp - c)).reshape(1, Cp).astype(jnp.float32)
    bias = jnp.pad(bias, (0, Cp - c)).reshape(1, Cp).astype(jnp.float32)
    return scale, bias


def _prep_conv_weight(w_oihw, Cp):
    # torch (O, I, kh, kw) -> (kh, kw, I, O), pad channels, -> (3, 3*Cp, Cp)
    # so the contraction index is dw*Cp + cin (matches the kernel's slab).
    O, I, kh, kw = w_oihw.shape
    w = jnp.transpose(w_oihw, (2, 3, 1, 0))
    w = jnp.pad(w, ((0, 0), (0, 0), (0, Cp - I), (0, Cp - O)))
    return w.reshape(kh, kw * Cp, Cp).astype(jnp.bfloat16)


def _mxu_m_target():
    # v5e MXU passes are 128 wide; v6e/v7x are 256 wide -> prefer M >= 256 there.
    try:
        kind = jax.devices()[0].device_kind.lower()
    except Exception:  # pragma: no cover - defensive
        kind = ""
    return 128 if "v5" in kind else 256


def _pick_row_tile(H, W, target_m):
    # TH must divide H exactly (no dropped rows); prefer multiples of 8; pick
    # the smallest TH with TH*W >= target_m (good MXU fill, bounded acc/slab).
    if H % 8 == 0:
        cands = [th for th in range(8, H + 1, 8) if H % th == 0]
    else:
        cands = [th for th in range(1, H + 1) if H % th == 0]
    for th in cands:
        if th * W >= target_m:
            return th
    return H


def _vmem_budget_bytes(Hp, Wp, Cp, H, W, TH):
    """Computed scoped-VMEM budget (no blanket 48 MiB request)."""
    bf16, f32 = 2, 4

    def tile(h, w, c, es):  # (8,128) tile padding of the last two dims
        return h * _round_up(w, 8) * _round_up(c, 128) * es

    xp_blk = 2 * tile(Hp, Wp, Cp, bf16)          # double-buffered input block
    out_blk = 2 * tile(H, W, Cp, bf16)           # double-buffered output block
    mid = tile(Hp, Wp, Cp, bf16)                 # padded intermediate scratch
    slab = tile(TH + 2, W, 3 * Cp, bf16)         # im2col slab scratch
    wts = 2 * 3 * (3 * Cp) * Cp * bf16           # w1+w2, single-buffered
    sb = 4 * tile(1, 1, Cp, f32)                 # folded BN scale/bias
    tmp = (TH * W * _round_up(Cp, 128) * f32     # f32 accumulator value
           + TH * W * _round_up(3 * Cp, 128) * bf16)  # per-tap patch value
    base = xp_blk + out_blk + mid + slab + wts + sb + tmp
    return min(int(base * 1.5) + (6 << 20), 100 << 20)


# ----------------------------- public entry -----------------------------------

@functools.partial(jax.jit, static_argnames=("eps", "nhwc_padded_out"))
def basic_block_pallas(x_nchw, w1_oihw, w2_oihw, bn1, bn2, eps=1e-5,
                       nhwc_padded_out=False):
    """BasicBlock forward (stride=1, identity shortcut).

    Default returns the module's NCHW float32 contract.  With
    nhwc_padded_out=True the raw (N, H, W, Cp) bf16 kernel output is returned
    (skips the slice/transpose HBM round trip for fused NHWC consumers).
    """
    N, Cin, H, W = x_nchw.shape
    Cout = w1_oihw.shape[0]
    assert Cin == Cout, "identity shortcut requires in_channel == out_channel"

    Cp = _round_up(Cout, 128)          # lane-dense channel count
    Hp, Wp = H + 2, W + 2
    TH = _pick_row_tile(H, W, _mxu_m_target())

    # NCHW -> NHWC, bf16 cast, spatial zero-pad (pad=1) + channel pad: one
    # transpose + one pad + one convert (XLA fuses these).
    x = jnp.transpose(x_nchw, (0, 2, 3, 1)).astype(jnp.bfloat16)
    xp = jnp.pad(x, ((0, 0), (1, 1), (1, 1), (0, Cp - Cin)))

    w1 = _prep_conv_weight(w1_oihw, Cp)
    w2 = _prep_conv_weight(w2_oihw, Cp)
    s1, b1 = _fold_bn(*bn1, eps, Cp)
    s2, b2 = _fold_bn(*bn2, eps, Cp)

    flops = int(N) * 2 * (2 * 9 * H * W * Cp * Cp)          # two 3x3 convs
    bytes_accessed = int(xp.size * 2 + N * H * W * Cp * 2
                         + (w1.size + w2.size) * 2 + 4 * Cp * 4)

    kernel = functools.partial(_basic_block_kernel, H=H, W=W, TH=TH)

    # Constant operands: single-buffered (their index_maps never change, so the
    # second pipeline buffer is pure VMEM waste).
    w_spec = lambda: pl.BlockSpec((3, 3 * Cp, Cp), lambda n: (0, 0, 0),
                                  pipeline_mode=pl.Buffered(1))
    v_spec = lambda: pl.BlockSpec((1, Cp), lambda n: (0, 0),
                                  pipeline_mode=pl.Buffered(1))

    out_nhwc = pl.pallas_call(
        kernel,
        out_shape=jax.ShapeDtypeStruct((N, H, W, Cp), jnp.bfloat16),
        grid=(N,),
        in_specs=[
            pl.BlockSpec((None, Hp, Wp, Cp), lambda n: (n, 0, 0, 0)),
            w_spec(), v_spec(), v_spec(),
            w_spec(), v_spec(), v_spec(),
        ],
        out_specs=pl.BlockSpec((None, H, W, Cp), lambda n: (n, 0, 0, 0)),
        scratch_shapes=[
            pltpu.VMEM((Hp, Wp, Cp), jnp.bfloat16),        # padded intermediate
            pltpu.VMEM((TH + 2, W, 3 * Cp), jnp.bfloat16),  # im2col slab
        ],
        compiler_params=pltpu.CompilerParams(
            dimension_semantics=("parallel",),   # batch steps are independent
            vmem_limit_bytes=_vmem_budget_bytes(Hp, Wp, Cp, H, W, TH),
        ),
        cost_estimate=pl.CostEstimate(
            flops=flops, transcendentals=0, bytes_accessed=bytes_accessed),
    )(xp, w1, s1, b1, w2, s2, b2)

    if nhwc_padded_out:
        return out_nhwc
    out = out_nhwc[..., :Cout].astype(jnp.float32)
    return jnp.transpose(out, (0, 3, 1, 2))


# ----------------------------- references -------------------------------------

def _conv_ref(a, w):
    return jax.lax.conv_general_dilated(
        a, w, window_strides=(1, 1), padding=((1, 1), (1, 1)),
        dimension_numbers=("NCHW", "OIHW", "NCHW"),
        precision=jax.lax.Precision.HIGHEST)


def _bn_ref(a, params, eps):
    g, b, m, v = (p[None, :, None, None] for p in params)
    return (a - m) / jnp.sqrt(v + eps) * g + b


def basic_block_reference(x, w1, w2, bn1, bn2, eps=1e-5):
    """Pure-JAX f32 NCHW reference (exact module semantics)."""
    out = jax.nn.relu(_bn_ref(_conv_ref(x, w1), bn1, eps))
    out = _bn_ref(_conv_ref(out, w2), bn2, eps)
    return jax.nn.relu(out + x)


def basic_block_reference_bf16(x, w1, w2, bn1, bn2, eps=1e-5):
    """f32 reference on bf16-quantized conv inputs — mirrors the kernel's
    bf16-in / f32-accumulate MXU numerics (including the bf16 intermediate)."""
    q = lambda a: a.astype(jnp.bfloat16).astype(jnp.float32)
    xq, w1q, w2q = q(x), q(w1), q(w2)
    out = jax.nn.relu(_bn_ref(_conv_ref(xq, w1q), bn1, eps))
    out = _bn_ref(_conv_ref(q(out), w2q), bn2, eps)
    return jax.nn.relu(out + xq)


if __name__ == "__main__":
    key = jax.random.PRNGKey(0)
    ks = jax.random.split(key, 12)

    N, C, H, W = 2, 4, 16, 16   # in_channel == out_channel == 4, stride=1

    x = jax.random.normal(ks[0], (N, C, H, W), dtype=jnp.float32)
    w1 = 0.1 * jax.random.normal(ks[1], (C, C, 3, 3), dtype=jnp.float32)
    w2 = 0.1 * jax.random.normal(ks[2], (C, C, 3, 3), dtype=jnp.float32)

    bn1 = (
        jax.random.uniform(ks[3], (C,), minval=0.5, maxval=1.5),   # gamma
        0.1 * jax.random.normal(ks[4], (C,)),                      # beta
        0.1 * jax.random.normal(ks[5], (C,)),                      # running_mean
        jax.random.uniform(ks[6], (C,), minval=0.5, maxval=1.5),   # running_var
    )
    bn2 = (
        jax.random.uniform(ks[7], (C,), minval=0.5, maxval=1.5),
        0.1 * jax.random.normal(ks[8], (C,)),
        0.1 * jax.random.normal(ks[9], (C,)),
        jax.random.uniform(ks[10], (C,), minval=0.5, maxval=1.5),
    )

    out = jax.block_until_ready(basic_block_pallas(x, w1, w2, bn1, bn2))
    assert out.shape == (N, C, H, W)
    assert out.dtype == jnp.float32

    # Tight check vs. a reference using the same bf16-quantized conv inputs
    # (both sides accumulate in f32; tolerance also covers the kernel's final
    #  bf16 output rounding and rare bf16 flips of the intermediate).
    ref_q = basic_block_reference_bf16(x, w1, w2, bn1, bn2)
    err_q = float(jnp.max(jnp.abs(out - ref_q)))
    assert jnp.allclose(out, ref_q, atol=5e-2, rtol=1e-2), err_q

    # Loose sanity check vs. the exact f32 module semantics (difference comes
    # only from feeding the MXU bf16 operands and the bf16 intermediate/output).
    ref = basic_block_reference(x, w1, w2, bn1, bn2)
    err = float(jnp.max(jnp.abs(out - ref)))
    assert jnp.allclose(out, ref, atol=2e-1, rtol=1e-1), err

    print("KERNEL_OK")
</pallas_src>

<mosaic_0001>
module attributes {stable_mosaic.version = 11 : i64} {
  func.func @_basic_block_kernel(%arg0: i32, %arg1: memref<1x18x18x128xbf16, #tpu.memory_space<vmem>>, %arg2: memref<3x384x128xbf16, #tpu.memory_space<vmem>>, %arg3: memref<1x128xf32, #tpu.memory_space<vmem>>, %arg4: memref<1x128xf32, #tpu.memory_space<vmem>>, %arg5: memref<3x384x128xbf16, #tpu.memory_space<vmem>>, %arg6: memref<1x128xf32, #tpu.memory_space<vmem>>, %arg7: memref<1x128xf32, #tpu.memory_space<vmem>>, %arg8: memref<1x16x16x128xbf16, #tpu.memory_space<vmem>>, %arg9: memref<18x18x128xbf16, #tpu.memory_space<vmem>>, %arg10: memref<18x16x384xbf16, #tpu.memory_space<vmem>>) attributes {dimension_semantics = [#tpu.dimension_semantics<parallel>], iteration_bounds = array<i64: 2>, scalar_prefetch = 0 : i64, scratch_operands = 2 : i64, tpu.core_type = #tpu.core_type<tc>, window_params = [{transform_indices = @transform_0, window_bounds = array<i64: 1, 18, 18, 128>}, {pipeline_mode = #tpu.pipeline_mode<synchronous>, transform_indices = @transform_1, window_bounds = array<i64: 3, 384, 128>}, {pipeline_mode = #tpu.pipeline_mode<synchronous>, transform_indices = @transform_2, window_bounds = array<i64: 1, 128>}, {pipeline_mode = #tpu.pipeline_mode<synchronous>, transform_indices = @transform_3, window_bounds = array<i64: 1, 128>}, {pipeline_mode = #tpu.pipeline_mode<synchronous>, transform_indices = @transform_4, window_bounds = array<i64: 3, 384, 128>}, {pipeline_mode = #tpu.pipeline_mode<synchronous>, transform_indices = @transform_5, window_bounds = array<i64: 1, 128>}, {pipeline_mode = #tpu.pipeline_mode<synchronous>, transform_indices = @transform_6, window_bounds = array<i64: 1, 128>}, {transform_indices = @transform_7, window_bounds = array<i64: 1, 16, 16, 128>}]} {
    %c0 = arith.constant 0 : index
    %c0_0 = arith.constant 0 : index
    %0 = vector.load %arg3[%c0, %c0_0] : memref<1x128xf32, #tpu.memory_space<vmem>>, vector<1x128xf32>
    %c0_1 = arith.constant 0 : index
    %c0_2 = arith.constant 0 : index
    %1 = vector.load %arg4[%c0_1, %c0_2] : memref<1x128xf32, #tpu.memory_space<vmem>>, vector<1x128xf32>
    %c0_3 = arith.constant 0 : index
    %c0_4 = arith.constant 0 : index
    %2 = vector.load %arg6[%c0_3, %c0_4] : memref<1x128xf32, #tpu.memory_space<vmem>>, vector<1x128xf32>
    %c0_5 = arith.constant 0 : index
    %c0_6 = arith.constant 0 : index
    %3 = vector.load %arg7[%c0_5, %c0_6] : memref<1x128xf32, #tpu.memory_space<vmem>>, vector<1x128xf32>
    %cst = arith.constant 0.000000e+00 : bf16
    %4 = vector.broadcast %cst : bf16 to vector<1x18x128xbf16>
    %c0_7 = arith.constant 0 : index
    %c0_8 = arith.constant 0 : index
    %c0_9 = arith.constant 0 : index
    %5 = vector.load %arg9[%c0_7, %c0_8, %c0_9] : memref<18x18x128xbf16, #tpu.memory_space<vmem>>, vector<1x18x128xbf16>
    tpu.vector_store %arg9[%c0_7, %c0_8, %c0_9], %4 {strides = array<i32>} : memref<18x18x128xbf16, #tpu.memory_space<vmem>>, vector<1x18x128xbf16>,
    %c17 = arith.constant 17 : index
    %c0_10 = arith.constant 0 : index
    %c0_11 = arith.constant 0 : index
    %6 = vector.load %arg9[%c17, %c0_10, %c0_11] : memref<18x18x128xbf16, #tpu.memory_space<vmem>>, vector<1x18x128xbf16>
    tpu.vector_store %arg9[%c17, %c0_10, %c0_11], %4 {strides = array<i32>} : memref<18x18x128xbf16, #tpu.memory_space<vmem>>, vector<1x18x128xbf16>,
    %cst_12 = arith.constant 0.000000e+00 : bf16
    %7 = vector.broadcast %cst_12 : bf16 to vector<16x1x128xbf16>
    %c0_13 = arith.constant 0 : index
    %c0_14 = arith.constant 0 : index
    %c0_15 = arith.constant 0 : index
    %c0_16 = arith.constant 0 : index
    %8 = vector.load %arg1[%c0_13, %c0_14, %c0_15, %c0_16] : memref<1x18x18x128xbf16, #tpu.memory_space<vmem>>, vector<1x18x16x128xbf16>
    %9 = vector.shape_cast %8 : vector<1x18x16x128xbf16> to vector<18x16x128xbf16>
    %c0_17 = arith.constant 0 : index
    %c0_18 = arith.constant 0 : index
    %c0_19 = arith.constant 0 : index
    %10 = vector.load %arg10[%c0_17, %c0_18, %c0_19] : memref<18x16x384xbf16, #tpu.memory_space<vmem>>, vector<18x16x128xbf16>
    tpu.vector_store %arg10[%c0_17, %c0_18, %c0_19], %9 {strides = array<i32>} : memref<18x16x384xbf16, #tpu.memory_space<vmem>>, vector<18x16x128xbf16>,
    %c0_20 = arith.constant 0 : index
    %c0_21 = arith.constant 0 : index
    %c1 = arith.constant 1 : index
    %c0_22 = arith.constant 0 : index
    %11 = vector.load %arg1[%c0_20, %c0_21, %c1, %c0_22] : memref<1x18x18x128xbf16, #tpu.memory_space<vmem>>, vector<1x18x16x128xbf16>
    %12 = vector.shape_cast %11 : vector<1x18x16x128xbf16> to vector<18x16x128xbf16>
    %c0_23 = arith.constant 0 : index
    %c0_24 = arith.constant 0 : index
    %c128 = arith.constant 128 : index
    %13 = vector.load %arg10[%c0_23, %c0_24, %c128] : memref<18x16x384xbf16, #tpu.memory_space<vmem>>, vector<18x16x128xbf16>
    tpu.vector_store %arg10[%c0_23, %c0_24, %c128], %12 {strides = array<i32>} : memref<18x16x384xbf16, #tpu.memory_space<vmem>>, vector<18x16x128xbf16>,
    %c0_25 = arith.constant 0 : index
    %c0_26 = arith.constant 0 : index
    %c2 = arith.constant 2 : index
    %c0_27 = arith.constant 0 : index
    %14 = vector.load %arg1[%c0_25, %c0_26, %c2, %c0_27] : memref<1x18x18x128xbf16, #tpu.memory_space<vmem>>, vector<1x18x16x128xbf16>
    %15 = vector.shape_cast %14 : vector<1x18x16x128xbf16> to vector<18x16x128xbf16>
    %c0_28 = arith.constant 0 : index
    %c0_29 = arith.constant 0 : index
    %c256 = arith.constant 256 : index
    %16 = vector.load %arg10[%c0_28, %c0_29, %c256] : memref<18x16x384xbf16, #tpu.memory_space<vmem>>, vector<18x16x128xbf16>
    tpu.vector_store %arg10[%c0_28, %c0_29, %c256], %15 {strides = array<i32>} : memref<18x16x384xbf16, #tpu.memory_space<vmem>>, vector<18x16x128xbf16>,
    %cst_30 = arith.constant 0.000000e+00 : f32
    %17 = vector.broadcast %cst_30 : f32 to vector<256x128xf32>
    %c0_31 = arith.constant 0 : index
    %c0_32 = arith.constant 0 : index
    %c0_33 = arith.constant 0 : index
    %18 = vector.load %arg10[%c0_31, %c0_32, %c0_33] : memref<18x16x384xbf16, #tpu.memory_space<vmem>>, vector<16x16x384xbf16>
    %19 = vector.shape_cast %18 : vector<16x16x384xbf16> to vector<256x384xbf16>
    %c0_34 = arith.constant 0 : index
    %c0_35 = arith.constant 0 : index
    %c0_36 = arith.constant 0 : index
    %20 = vector.load %arg2[%c0_34, %c0_35, %c0_36] : memref<3x384x128xbf16, #tpu.memory_space<vmem>>, vector<1x384x128xbf16>
    %21 = vector.shape_cast %20 : vector<1x384x128xbf16> to vector<384x128xbf16>
    %cst_37 = arith.constant dense<0.000000e+00> : vector<256x128xf32>
    %22 = tpu.matmul %19, %21, %cst_37 {dimension_numbers = #tpu.dot_dimension_numbers<[1], [0], [0], [1], [0, 0, 1, 1], [], []>} : vector<256x384xbf16>, vector<384x128xbf16>, vector<256x128xf32> -> vector<256x128xf32>
    %23 = arith.addf %17, %22 : vector<256x128xf32>
    %c1_38 = arith.constant 1 : index
    %c0_39 = arith.constant 0 : index
    %c0_40 = arith.constant 0 : index
    %24 = vector.load %arg10[%c1_38, %c0_39, %c0_40] : memref<18x16x384xbf16, #tpu.memory_space<vmem>>, vector<16x16x384xbf16>
    %25 = vector.shape_cast %24 : vector<16x16x384xbf16> to vector<256x384xbf16>
    %c1_41 = arith.constant 1 : index
    %c0_42 = arith.constant 0 : index
    %c0_43 = arith.constant 0 : index
    %26 = vector.load %arg2[%c1_41, %c0_42, %c0_43] : memref<3x384x128xbf16, #tpu.memory_space<vmem>>, vector<1x384x128xbf16>
    %27 = vector.shape_cast %26 : vector<1x384x128xbf16> to vector<384x128xbf16>
    %cst_44 = arith.constant dense<0.000000e+00> : vector<256x128xf32>
    %28 = tpu.matmul %25, %27, %cst_44 {dimension_numbers = #tpu.dot_dimension_numbers<[1], [0], [0], [1], [0, 0, 1, 1], [], []>} : vector<256x384xbf16>, vector<384x128xbf16>, vector<256x128xf32> -> vector<256x128xf32>
    %29 = arith.addf %23, %28 : vector<256x128xf32>
    %c2_45 = arith.constant 2 : index
    %c0_46 = arith.constant 0 : index
    %c0_47 = arith.constant 0 : index
    %30 = vector.load %arg10[%c2_45, %c0_46, %c0_47] : memref<18x16x384xbf16, #tpu.memory_space<vmem>>, vector<16x16x384xbf16>
    %31 = vector.shape_cast %30 : vector<16x16x384xbf16> to vector<256x384xbf16>
    %c2_48 = arith.constant 2 : index
    %c0_49 = arith.constant 0 : index
    %c0_50 = arith.constant 0 : index
    %32 = vector.load %arg2[%c2_48, %c0_49, %c0_50] : memref<3x384x128xbf16, #tpu.memory_space<vmem>>, vector<1x384x128xbf16>
    %33 = vector.shape_cast %32 : vector<1x384x128xbf16> to vector<384x128xbf16>
    %cst_51 = arith.constant dense<0.000000e+00> : vector<256x128xf32>
    %34 = tpu.matmul %31, %33, %cst_51 {dimension_numbers = #tpu.dot_dimension_numbers<[1], [0], [0], [1], [0, 0, 1, 1], [], []>} : vector<256x384xbf16>, vector<384x128xbf16>, vector<256x128xf32> -> vector<256x128xf32>
    %35 = arith.addf %29, %34 : vector<256x128xf32>
    %36 = vector.broadcast %0 : vector<1x128xf32> to vector<256x128xf32>
    %37 = arith.mulf %35, %36 : vector<256x128xf32>
    %38 = vector.broadcast %1 : vector<1x128xf32> to vector<256x128xf32>
    %39 = arith.addf %37, %38 : vector<256x128xf32>
    %cst_52 = arith.constant 0.000000e+00 : f32
    %40 = vector.broadcast %cst_52 : f32 to vector<256x128xf32>
    %41 = arith.maximumf %39, %40 : vector<256x128xf32>
    %42 = vector.shape_cast %41 : vector<256x128xf32> to vector<16x16x128xf32>
    %43 = arith.truncf %42 : vector<16x16x128xf32> to vector<16x16x128xbf16>
    %44 = tpu.concatenate %7, %43, %7 in 1 : vector<16x1x128xbf16>, vector<16x16x128xbf16>, vector<16x1x128xbf16> -> vector<16x18x128xbf16>
    %c1_53 = arith.constant 1 : index
    %c0_54 = arith.constant 0 : index
    %c0_55 = arith.constant 0 : index
    %45 = vector.load %arg9[%c1_53, %c0_54, %c0_55] : memref<18x18x128xbf16, #tpu.memory_space<vmem>>, vector<16x18x128xbf16>
    tpu.vector_store %arg9[%c1_53, %c0_54, %c0_55], %44 {strides = array<i32>} : memref<18x18x128xbf16, #tpu.memory_space<vmem>>, vector<16x18x128xbf16>,
    %c0_56 = arith.constant 0 : index
    %c0_57 = arith.constant 0 : index
    %c0_58 = arith.constant 0 : index
    %46 = vector.load %arg9[%c0_56, %c0_57, %c0_58] : memref<18x18x128xbf16, #tpu.memory_space<vmem>>, vector<18x16x128xbf16>
    %c0_59 = arith.constant 0 : index
    %c0_60 = arith.constant 0 : index
    %c0_61 = arith.constant 0 : index
    %47 = vector.load %arg10[%c0_59, %c0_60, %c0_61] : memref<18x16x384xbf16, #tpu.memory_space<vmem>>, vector<18x16x128xbf16>
    tpu.vector_store %arg10[%c0_59, %c0_60, %c0_61], %46 {strides = array<i32>} : memref<18x16x384xbf16, #tpu.memory_space<vmem>>, vector<18x16x128xbf16>,
    %c0_62 = arith.constant 0 : index
    %c1_63 = arith.constant 1 : index
    %c0_64 = arith.constant 0 : index
    %48 = vector.load %arg9[%c0_62, %c1_63, %c0_64] : memref<18x18x128xbf16, #tpu.memory_space<vmem>>, vector<18x16x128xbf16>
    %c0_65 = arith.constant 0 : index
    %c0_66 = arith.constant 0 : index
    %c128_67 = arith.constant 128 : index
    %49 = vector.load %arg10[%c0_65, %c0_66, %c128_67] : memref<18x16x384xbf16, #tpu.memory_space<vmem>>, vector<18x16x128xbf16>
    tpu.vector_store %arg10[%c0_65, %c0_66, %c128_67], %48 {strides = array<i32>} : memref<18x16x384xbf16, #tpu.memory_space<vmem>>, vector<18x16x128xbf16>,
    %c0_68 = arith.constant 0 : index
    %c2_69 = arith.constant 2 : index
    %c0_70 = arith.constant 0 : index
    %50 = vector.load %arg9[%c0_68, %c2_69, %c0_70] : memref<18x18x128xbf16, #tpu.memory_space<vmem>>, vector<18x16x128xbf16>
    %c0_71 = arith.constant 0 : index
    %c0_72 = arith.constant 0 : index
    %c256_73 = arith.constant 256 : index
    %51 = vector.load %arg10[%c0_71, %c0_72, %c256_73] : memref<18x16x384xbf16, #tpu.memory_space<vmem>>, vector<18x16x128xbf16>
    tpu.vector_store %arg10[%c0_71, %c0_72, %c256_73], %50 {strides = array<i32>} : memref<18x16x384xbf16, #tpu.memory_space<vmem>>, vector<18x16x128xbf16>,
    %cst_74 = arith.constant 0.000000e+00 : f32
    %52 = vector.broadcast %cst_74 : f32 to vector<256x128xf32>
    %c0_75 = arith.constant 0 : index
    %c0_76 = arith.constant 0 : index
    %c0_77 = arith.constant 0 : index
    %53 = vector.load %arg10[%c0_75, %c0_76, %c0_77] : memref<18x16x384xbf16, #tpu.memory_space<vmem>>, vector<16x16x384xbf16>
    %54 = vector.shape_cast %53 : vector<16x16x384xbf16> to vector<256x384xbf16>
    %c0_78 = arith.constant 0 : index
    %c0_79 = arith.constant 0 : index
    %c0_80 = arith.constant 0 : index
    %55 = vector.load %arg5[%c0_78, %c0_79, %c0_80] : memref<3x384x128xbf16, #tpu.memory_space<vmem>>, vector<1x384x128xbf16>
    %56 = vector.shape_cast %55 : vector<1x384x128xbf16> to vector<384x128xbf16>
    %cst_81 = arith.constant dense<0.000000e+00> : vector<256x128xf32>
    %57 = tpu.matmul %54, %56, %cst_81 {dimension_numbers = #tpu.dot_dimension_numbers<[1], [0], [0], [1], [0, 0, 1, 1], [], []>} : vector<256x384xbf16>, vector<384x128xbf16>, vector<256x128xf32> -> vector<256x128xf32>
    %58 = arith.addf %52, %57 : vector<256x128xf32>
    %c1_82 = arith.constant 1 : index
    %c0_83 = arith.constant 0 : index
    %c0_84 = arith.constant 0 : index
    %59 = vector.load %arg10[%c1_82, %c0_83, %c0_84] : memref<18x16x384xbf16, #tpu.memory_space<vmem>>, vector<16x16x384xbf16>
    %60 = vector.shape_cast %59 : vector<16x16x384xbf16> to vector<256x384xbf16>
    %c1_85 = arith.constant 1 : index
    %c0_86 = arith.constant 0 : index
    %c0_87 = arith.constant 0 : index
    %61 = vector.load %arg5[%c1_85, %c0_86, %c0_87] : memref<3x384x128xbf16, #tpu.memory_space<vmem>>, vector<1x384x128xbf16>
    %62 = vector.shape_cast %61 : vector<1x384x128xbf16> to vector<384x128xbf16>
    %cst_88 = arith.constant dense<0.000000e+00> : vector<256x128xf32>
    %63 = tpu.matmul %60, %62, %cst_88 {dimension_numbers = #tpu.dot_dimension_numbers<[1], [0], [0], [1], [0, 0, 1, 1], [], []>} : vector<256x384xbf16>, vector<384x128xbf16>, vector<256x128xf32> -> vector<256x128xf32>
    %64 = arith.addf %58, %63 : vector<256x128xf32>
    %c2_89 = arith.constant 2 : index
    %c0_90 = arith.constant 0 : index
    %c0_91 = arith.constant 0 : index
    %65 = vector.load %arg10[%c2_89, %c0_90, %c0_91] : memref<18x16x384xbf16, #tpu.memory_space<vmem>>, vector<16x16x384xbf16>
    %66 = vector.shape_cast %65 : vector<16x16x384xbf16> to vector<256x384xbf16>
    %c2_92 = arith.constant 2 : index
    %c0_93 = arith.constant 0 : index
    %c0_94 = arith.constant 0 : index
    %67 = vector.load %arg5[%c2_92, %c0_93, %c0_94] : memref<3x384x128xbf16, #tpu.memory_space<vmem>>, vector<1x384x128xbf16>
    %68 = vector.shape_cast %67 : vector<1x384x128xbf16> to vector<384x128xbf16>
    %cst_95 = arith.constant dense<0.000000e+00> : vector<256x128xf32>
    %69 = tpu.matmul %66, %68, %cst_95 {dimension_numbers = #tpu.dot_dimension_numbers<[1], [0], [0], [1], [0, 0, 1, 1], [], []>} : vector<256x384xbf16>, vector<384x128xbf16>, vector<256x128xf32> -> vector<256x128xf32>
    %70 = arith.addf %64, %69 : vector<256x128xf32>
    %c0_96 = arith.constant 0 : index
    %c1_97 = arith.constant 1 : index
    %c1_98 = arith.constant 1 : index
    %c0_99 = arith.constant 0 : index
    %71 = vector.load %arg1[%c0_96, %c1_97, %c1_98, %c0_99] : memref<1x18x18x128xbf16, #tpu.memory_space<vmem>>, vector<1x16x16x128xbf16>
    %72 = vector.shape_cast %71 : vector<1x16x16x128xbf16> to vector<16x16x128xbf16>
    %73 = vector.shape_cast %72 : vector<16x16x128xbf16> to vector<256x128xbf16>
    %74 = vector.broadcast %2 : vector<1x128xf32> to vector<256x128xf32>
    %75 = arith.mulf %70, %74 : vector<256x128xf32>
    %76 = vector.broadcast %3 : vector<1x128xf32> to vector<256x128xf32>
    %77 = arith.addf %75, %76 : vector<256x128xf32>
    %78 = arith.extf %73 : vector<256x128xbf16> to vector<256x128xf32>
    %79 = arith.addf %77, %78 : vector<256x128xf32>
    %cst_100 = arith.constant 0.000000e+00 : f32
    %80 = vector.broadcast %cst_100 : f32 to vector<256x128xf32>
    %81 = arith.maximumf %79, %80 : vector<256x128xf32>
    %82 = vector.shape_cast %81 : vector<256x128xf32> to vector<16x16x128xf32>
    %83 = arith.truncf %82 : vector<16x16x128xf32> to vector<16x16x128xbf16>
    %c0_101 = arith.constant 0 : index
    %c0_102 = arith.constant 0 : index
    %c0_103 = arith.constant 0 : index
    %c0_104 = arith.constant 0 : index
    %84 = vector.load %arg8[%c0_101, %c0_102, %c0_103, %c0_104] : memref<1x16x16x128xbf16, #tpu.memory_space<vmem>>, vector<1x16x16x128xbf16>
    %85 = vector.shape_cast %84 : vector<1x16x16x128xbf16> to vector<16x16x128xbf16>
    %86 = vector.shape_cast %83 : vector<16x16x128xbf16> to vector<1x16x16x128xbf16>
    tpu.vector_store %arg8[%c0_101, %c0_102, %c0_103, %c0_104], %86 {strides = array<i32>} : memref<1x16x16x128xbf16, #tpu.memory_space<vmem>>, vector<1x16x16x128xbf16>,
    return
  }
  func.func @transform_0(%arg0: i32) -> (i32, i32, i32, i32) {
    %c0_i32 = arith.constant 0 : i32
    %c0_i32_0 = arith.constant 0 : i32
    %c0_i32_1 = arith.constant 0 : i32
    %c0_i32_2 = arith.constant 0 : i32
    return %arg0, %c0_i32, %c0_i32_0, %c0_i32_1 : i32, i32, i32, i32
  }
  func.func @transform_1(%arg0: i32) -> (i32, i32, i32) {
    %c0_i32 = arith.constant 0 : i32
    %c0_i32_0 = arith.constant 0 : i32
    %c0_i32_1 = arith.constant 0 : i32
    %c0_i32_2 = arith.constant 0 : i32
    return %c0_i32, %c0_i32_0, %c0_i32_1 : i32, i32, i32
  }
  func.func @transform_2(%arg0: i32) -> (i32, i32) {
    %c0_i32 = arith.constant 0 : i32
    %c0_i32_0 = arith.constant 0 : i32
    %c0_i32_1 = arith.constant 0 : i32
    return %c0_i32, %c0_i32_0 : i32, i32
  }
  func.func @transform_3(%arg0: i32) -> (i32, i32) {
    %c0_i32 = arith.constant 0 : i32
    %c0_i32_0 = arith.constant 0 : i32
    %c0_i32_1 = arith.constant 0 : i32
    return %c0_i32, %c0_i32_0 : i32, i32
  }
  func.func @transform_4(%arg0: i32) -> (i32, i32, i32) {
    %c0_i32 = arith.constant 0 : i32
    %c0_i32_0 = arith.constant 0 : i32
    %c0_i32_1 = arith.constant 0 : i32
    %c0_i32_2 = arith.constant 0 : i32
    return %c0_i32, %c0_i32_0, %c0_i32_1 : i32, i32, i32
  }
  func.func @transform_5(%arg0: i32) -> (i32, i32) {
    %c0_i32 = arith.constant 0 : i32
    %c0_i32_0 = arith.constant 0 : i32
    %c0_i32_1 = arith.constant 0 : i32
    return %c0_i32, %c0_i32_0 : i32, i32
  }
  func.func @transform_6(%arg0: i32) -> (i32, i32) {
    %c0_i32 = arith.constant 0 : i32
    %c0_i32_0 = arith.constant 0 : i32
    %c0_i32_1 = arith.constant 0 : i32
    return %c0_i32, %c0_i32_0 : i32, i32
  }
  func.func @transform_7(%arg0: i32) -> (i32, i32, i32, i32) {
    %c0_i32 = arith.constant 0 : i32
    %c0_i32_0 = arith.constant 0 : i32
    %c0_i32_1 = arith.constant 0 : i32
    %c0_i32_2 = arith.constant 0 : i32
    return %arg0, %c0_i32, %c0_i32_0, %c0_i32_1 : i32, i32, i32, i32
  }
}

</mosaic_0001>

<llo_original>
// kernel: basic_block_pallas.1
$region0: #{basic_block_pallas.1}
  #allocation0 [shape = 'u32[]', space=smem, size = 0x4, offset = 0x4, fixed_abs, tag = 'smem constant byte address 0x4 - core index']
  #allocation1 [shape = 'u32[144,128]{1,0:T(1,128)}', space=vmem, size = 0x12000, scoped, tag = 'internal scratch']
  #allocation2 [shape = 'bf16[18,18,128]{2,1,0:T(8,128)(2,1)}', space=vmem, size = 0x1b000, scoped, tag = 'scratch operand']
  #allocation3 [shape = 'bf16[18,16,384]{2,1,0:T(16,128)(2,1)}', space=vmem, size = 0x36000, scoped, tag = 'scratch operand']
  %s0 = inlined_call_operand.vmem [shape: bf16[2,18,18,128], index: 0, kind: input, shape index: {}]
  %s1 = inlined_call_operand.vmem [shape: bf16[3,384,128], index: 1, kind: input, shape index: {}]
  %s2 = inlined_call_operand.vmem [shape: f32[1,128], index: 2, kind: input, shape index: {}]
  %s3 = inlined_call_operand.vmem [shape: f32[1,128], index: 3, kind: input, shape index: {}]
  %s4 = inlined_call_operand.vmem [shape: bf16[3,384,128], index: 4, kind: input, shape index: {}]
  %s5 = inlined_call_operand.vmem [shape: f32[1,128], index: 5, kind: input, shape index: {}]
  %s6 = inlined_call_operand.vmem [shape: f32[1,128], index: 6, kind: input, shape index: {}]
  %s7 = inlined_call_operand.vmem [shape: bf16[2,16,16,128], index: 7, kind: output, shape index: {}]
  %s8 = sld [smem:[#allocation0]]
  $region61: #{basic_block_pallas.1} parent=0
    _
  %s10 = ssub.s32 1, %s8
  %s11 = scalar_select 0, %s10, %s8
  loop: start=0, step=1, limit=4
  $region2: #{basic_block_pallas.1} parent=0 // loop_pre_header
    _
  $region3: #{basic_block_pallas.1} parent=0 // loop_header
    %s13 = sphi 0, %s17
    %p14 = scmp.ge.s32.totalorder %s13, 4
    %s23 = sphi 0, %s25
    %s26 = sphi 0, %s23
    %s27 = sphi 0, %s26
    %s43 = sphi 0, %s27
    %s47 = sphi 0, %s47
    %s49 = sphi 0, %s47
    %s50 = sphi 0, %s49
    %s64 = sphi 0, %s50
    %s68 = sphi 0, %s68
    %s70 = sphi 0, %s68
    %s71 = sphi 0, %s70
    %s85 = sphi 0, %s71
    %s89 = sphi 0, %s89
    %s91 = sphi 0, %s89
    %s92 = sphi 0, %s91
    %s106 = sphi 0, %s92
    %s110 = sphi 0, %s110
    %s112 = sphi 0, %s110
    %s113 = sphi 0, %s112
    %s127 = sphi 0, %s113
    %s131 = sphi 0, %s131
    %s133 = sphi 0, %s131
    %s134 = sphi 0, %s133
    %s148 = sphi 0, %s134
    %s152 = sphi 0, %s152
    %s154 = sphi 0, %s152
    %s155 = sphi 0, %s154
    %s169 = sphi 0, %s155
    %s175 = sphi 0, %s177
    %s178 = sphi 0, %s175
    %s179 = sphi 0, %s178
    %s195 = sphi 0, %s179
  $region4: #{basic_block_pallas.1} parent=0 // loop_header_branch
    %16 = sbr.rel (%p14) target = $region8
  $region5: #{basic_block_pallas.1} parent=0 // loop_body
    %s18 = ssub.s32 %s13, 1
    %s19 = ssub.s32 %s13, 2
    %s20 = sadd.s32 %s13, 1
    %s21 = ssub.s32 %s13, %s20
    %p22 = scmp.eq.s32.totalorder %s21, 0
    %s24 = sadd.s32 %s23, 1
    %s25 = scalar_select %p22, %s23, %s24
    %p28 = pneg %p22
    %p29 = scmp.eq.s32.totalorder %s13, 1
    %p30 = por %p28, %p29
    %p31 = scmp.ne.s32.totalorder %s23, %s26
    %p32 = scmp.eq.s32.totalorder %s13, 0
    %p33 = por %p31, %p32
    %p34 = scmp.ne.s32.totalorder %s23, %s26
    %p35 = scmp.eq.s32.totalorder %s18, 1
    %p36 = por %p34, %p35
    %p37 = scmp.ne.s32.totalorder %s26, %s27
    %p38 = scmp.eq.s32.totalorder %s18, 0
    %p39 = por %p37, %p38
    %p40 = scmp.ne.s32.totalorder %s26, %s27
    %p41 = scmp.eq.s32.totalorder %s19, 1
    %p42 = por %p40, %p41
    %p44 = scmp.ne.s32.totalorder %s27, %s43
    %p45 = scmp.eq.s32.totalorder %s19, 0
    %p46 = por %p44, %p45
    %s48 = sadd.s32 %s47, 1
    %p51 = scmp.eq.s32.totalorder %s13, 1
    %p52 = scmp.ne.s32.totalorder %s47, %s49
    %p53 = scmp.eq.s32.totalorder %s13, 0
    %p54 = por %p52, %p53
    %p55 = scmp.ne.s32.totalorder %s47, %s49
    %p56 = scmp.eq.s32.totalorder %s18, 1
    %p57 = por %p55, %p56
    %p58 = scmp.ne.s32.totalorder %s49, %s50
    %p59 = scmp.eq.s32.totalorder %s18, 0
    %p60 = por %p58, %p59
    %p61 = scmp.ne.s32.totalorder %s49, %s50
    %p62 = scmp.eq.s32.totalorder %s19, 1
    %p63 = por %p61, %p62
    %p65 = scmp.ne.s32.totalorder %s50, %s64
    %p66 = scmp.eq.s32.totalorder %s19, 0
    %p67 = por %p65, %p66
    %s69 = sadd.s32 %s68, 1
    %p72 = scmp.eq.s32.totalorder %s13, 1
    %p73 = scmp.ne.s32.totalorder %s68, %s70
    %p74 = scmp.eq.s32.totalorder %s13, 0
    %p75 = por %p73, %p74
    %p76 = scmp.ne.s32.totalorder %s68, %s70
    %p77 = scmp.eq.s32.totalorder %s18, 1
    %p78 = por %p76, %p77
    %p79 = scmp.ne.s32.totalorder %s70, %s71
    %p80 = scmp.eq.s32.totalorder %s18, 0
    %p81 = por %p79, %p80
    %p82 = scmp.ne.s32.totalorder %s70, %s71
    %p83 = scmp.eq.s32.totalorder %s19, 1
    %p84 = por %p82, %p83
    %p86 = scmp.ne.s32.totalorder %s71, %s85
    %p87 = scmp.eq.s32.totalorder %s19, 0
    %p88 = por %p86, %p87
    %s90 = sadd.s32 %s89, 1
    %p93 = scmp.eq.s32.totalorder %s13, 1
    %p94 = scmp.ne.s32.totalorder %s89, %s91
    %p95 = scmp.eq.s32.totalorder %s13, 0
    %p96 = por %p94, %p95
    %p97 = scmp.ne.s32.totalorder %s89, %s91
    %p98 = scmp.eq.s32.totalorder %s18, 1
    %p99 = por %p97, %p98
    %p100 = scmp.ne.s32.totalorder %s91, %s92
    %p101 = scmp.eq.s32.totalorder %s18, 0
    %p102 = por %p100, %p101
    %p103 = scmp.ne.s32.totalorder %s91, %s92
    %p104 = scmp.eq.s32.totalorder %s19, 1
    %p105 = por %p103, %p104
    %p107 = scmp.ne.s32.totalorder %s92, %s106
    %p108 = scmp.eq.s32.totalorder %s19, 0
    %p109 = por %p107, %p108
    %s111 = sadd.s32 %s110, 1
    %p114 = scmp.eq.s32.totalorder %s13, 1
    %p115 = scmp.ne.s32.totalorder %s110, %s112
    %p116 = scmp.eq.s32.totalorder %s13, 0
    %p117 = por %p115, %p116
    %p118 = scmp.ne.s32.totalorder %s110, %s112
    %p119 = scmp.eq.s32.totalorder %s18, 1
    %p120 = por %p118, %p119
    %p121 = scmp.ne.s32.totalorder %s112, %s113
    %p122 = scmp.eq.s32.totalorder %s18, 0
    %p123 = por %p121, %p122
    %p124 = scmp.ne.s32.totalorder %s112, %s113
    %p125 = scmp.eq.s32.totalorder %s19, 1
    %p126 = por %p124, %p125
    %p128 = scmp.ne.s32.totalorder %s113, %s127
    %p129 = scmp.eq.s32.totalorder %s19, 0
    %p130 = por %p128, %p129
    %s132 = sadd.s32 %s131, 1
    %p135 = scmp.eq.s32.totalorder %s13, 1
    %p136 = scmp.ne.s32.totalorder %s131, %s133
    %p137 = scmp.eq.s32.totalorder %s13, 0
    %p138 = por %p136, %p137
    %p139 = scmp.ne.s32.totalorder %s131, %s133
    %p140 = scmp.eq.s32.totalorder %s18, 1
    %p141 = por %p139, %p140
    %p142 = scmp.ne.s32.totalorder %s133, %s134
    %p143 = scmp.eq.s32.totalorder %s18, 0
    %p144 = por %p142, %p143
    %p145 = scmp.ne.s32.totalorder %s133, %s134
    %p146 = scmp.eq.s32.totalorder %s19, 1
    %p147 = por %p145, %p146
    %p149 = scmp.ne.s32.totalorder %s134, %s148
    %p150 = scmp.eq.s32.totalorder %s19, 0
    %p151 = por %p149, %p150
    %s153 = sadd.s32 %s152, 1
    %p156 = scmp.eq.s32.totalorder %s13, 1
    %p157 = scmp.ne.s32.totalorder %s152, %s154
    %p158 = scmp.eq.s32.totalorder %s13, 0
    %p159 = por %p157, %p158
    %p160 = scmp.ne.s32.totalorder %s152, %s154
    %p161 = scmp.eq.s32.totalorder %s18, 1
    %p162 = por %p160, %p161
    %p163 = scmp.ne.s32.totalorder %s154, %s155
    %p164 = scmp.eq.s32.totalorder %s18, 0
    %p165 = por %p163, %p164
    %p166 = scmp.ne.s32.totalorder %s154, %s155
    %p167 = scmp.eq.s32.totalorder %s19, 1
    %p168 = por %p166, %p167
    %p170 = scmp.ne.s32.totalorder %s155, %s169
    %p171 = scmp.eq.s32.totalorder %s19, 0
    %p172 = por %p170, %p171
    %s173 = ssub.s32 %s13, %s20
    %p174 = scmp.eq.s32.totalorder %s173, 0
    %s176 = sadd.s32 %s175, 1
    %s177 = scalar_select %p174, %s175, %s176
    %p180 = pneg %p174
    %p181 = scmp.eq.s32.totalorder %s13, 1
    %p182 = por %p180, %p181
    %p183 = scmp.ne.s32.totalorder %s175, %s178
    %p184 = scmp.eq.s32.totalorder %s13, 0
    %p185 = por %p183, %p184
    %p186 = scmp.ne.s32.totalorder %s175, %s178
    %p187 = scmp.eq.s32.totalorder %s18, 1
    %p188 = por %p186, %p187
    %p189 = scmp.ne.s32.totalorder %s178, %s179
    %p190 = scmp.eq.s32.totalorder %s18, 0
    %p191 = por %p189, %p190
    %p192 = scmp.ne.s32.totalorder %s178, %s179
    %p193 = scmp.eq.s32.totalorder %s19, 1
    %p194 = por %p192, %p193
    %p196 = scmp.ne.s32.totalorder %s179, %s195
    %p197 = scmp.eq.s32.totalorder %s19, 0
    %p198 = por %p196, %p197
    %p199 = scmp.le.s32.totalorder 1, %s13
    %p200 = scmp.lt.s32.totalorder %s13, 3
    %p201 = pnand %p199, %p200
    %p202 = pneg %p201
    // Predicated region
    $region9: #{basic_block_pallas.1} parent=5 // pred_check
      _
    $region10: #{basic_block_pallas.1} parent=5 // pred_check_branch
      %204 = sbr.rel (%p201) target = $region12
    $region11: #{basic_block_pallas.1} parent=5 // pred_region
      %s205 = ssub.s32 %s13, 1
      // Predicated region
      $region13: #{basic_block_pallas.1} parent=11 // pred_check
        %p206 = pneg %p60
      $region14: #{basic_block_pallas.1} parent=11 // pred_check_branch
        %208 = sbr.rel (%p206) target = $region16
      $region15: #{basic_block_pallas.1} parent=11 // pred_region
        _
      $region16: #{basic_block_pallas.1} parent=11 // pred_fallthru
        _
      // Predicated region
      $region17: #{basic_block_pallas.1} parent=11 // pred_check
        %p209 = pneg %p81
      $region18: #{basic_block_pallas.1} parent=11 // pred_check_branch
        %211 = sbr.rel (%p209) target = $region20
      $region19: #{basic_block_pallas.1} parent=11 // pred_region
        _
      $region20: #{basic_block_pallas.1} parent=11 // pred_fallthru
        _
      // Predicated region
      $region21: #{basic_block_pallas.1} parent=11 // pred_check
        %p212 = pneg %p102
      $region22: #{basic_block_pallas.1} parent=11 // pred_check_branch
        %214 = sbr.rel (%p212) target = $region24
      $region23: #{basic_block_pallas.1} parent=11 // pred_region
        _
      $region24: #{basic_block_pallas.1} parent=11 // pred_fallthru
        _
      // Predicated region
      $region25: #{basic_block_pallas.1} parent=11 // pred_check
        %p215 = pneg %p123
      $region26: #{basic_block_pallas.1} parent=11 // pred_check_branch
        %217 = sbr.rel (%p215) target = $region28
      $region27: #{basic_block_pallas.1} parent=11 // pred_region
        _
      $region28: #{basic_block_pallas.1} parent=11 // pred_fallthru
        _
      // Predicated region
      $region29: #{basic_block_pallas.1} parent=11 // pred_check
        %p218 = pneg %p144
      $region30: #{basic_block_pallas.1} parent=11 // pred_check_branch
        %220 = sbr.rel (%p218) target = $region32
      $region31: #{basic_block_pallas.1} parent=11 // pred_region
        _
      $region32: #{basic_block_pallas.1} parent=11 // pred_fallthru
        _
      // Predicated region
      $region33: #{basic_block_pallas.1} parent=11 // pred_check
        %p221 = pneg %p165
      $region34: #{basic_block_pallas.1} parent=11 // pred_check_branch
        %223 = sbr.rel (%p221) target = $region36
      $region35: #{basic_block_pallas.1} parent=11 // pred_region
        _
      $region36: #{basic_block_pallas.1} parent=11 // pred_fallthru
        _
    $region12: #{basic_block_pallas.1} parent=5 // pred_fallthru
      _
    %p224 = scmp.lt.s32.totalorder %s13, 2
    // Predicated region
    $region37: #{basic_block_pallas.1} parent=5 // pred_check
      %p225 = pneg %p224
    $region38: #{basic_block_pallas.1} parent=5 // pred_check_branch
      %227 = sbr.rel (%p225) target = $region40
    $region39: #{basic_block_pallas.1} parent=5 // pred_region
      // Predicated region
      $region41: #{basic_block_pallas.1} parent=39 // pred_check
        %p228 = pneg %p33
      $region42: #{basic_block_pallas.1} parent=39 // pred_check_branch
        %230 = sbr.rel (%p228) target = $region44
      $region43: #{basic_block_pallas.1} parent=39 // pred_region
        %p231 = scmp.lt.s32.totalorder %s13, 1
        %s232 = scalar_select %p231, %s13, 1
        %s233 = smul.addr %s232, 54
        %s234 = smul.addr %s233, 4
        %s235 = scalar_lea.vmem %s0, %s234
      $region44: #{basic_block_pallas.1} parent=39 // pred_fallthru
        _
    $region40: #{basic_block_pallas.1} parent=5 // pred_fallthru
      _
    %p236 = scmp.le.s32.totalorder 1, %s13
    %p237 = scmp.lt.s32.totalorder %s13, 3
    %p238 = pnand %p236, %p237
    %p239 = pneg %p238
    // Predicated region
    $region45: #{basic_block_pallas.1} parent=5 // pred_check
      _
    $region46: #{basic_block_pallas.1} parent=5 // pred_check_branch
      %241 = sbr.rel (%p238) target = $region48
    $region47: #{basic_block_pallas.1} parent=5 // pred_region
      %s242 = ssub.s32 %s13, 1
      %p243 = scmp.lt.s32.totalorder %s18, 1
      %s244 = scalar_select %p243, %s18, 1
      %s245 = smul.addr %s244, 54
      %s246 = smul.addr %s245, 4
      %s247 = scalar_lea.vmem %s0, %s246
      %p248 = pneg %p39
      %p249 = pneg %p36
      %p250 = pneg %p60
      %p251 = pneg %p57
      %p252 = pneg %p81
      %p253 = pneg %p78
      %p254 = pneg %p102
      %p255 = pneg %p99
      %p256 = pneg %p123
      %p257 = pneg %p120
      %p258 = pneg %p144
      %p259 = pneg %p141
      %p260 = pneg %p165
      %p261 = pneg %p162
      %p262 = pneg %p191
      %p263 = pneg %p188
      %p264 = scmp.lt.s32.totalorder %s18, 1
      %s265 = scalar_select %p264, %s18, 1
      %s266 = smul.addr %s265, 32
      %s267 = smul.addr %s266, 4
      %s268 = scalar_lea.vmem %s7, %s267
      %p269 = scmp.lt.s32.totalorder %s18, 1
      %s270 = scalar_select %p269, %s18, 1
      %s271 = smul.addr %s270, 54
      %s272 = smul.addr %s271, 4
      %s273 = scalar_lea.vmem %s0, %s272
      %p274 = scmp.lt.s32.totalorder %s18, 1
      %s275 = scalar_select %p274, %s18, 1
      %s276 = smul.addr %s275, 32
      %s277 = smul.addr %s276, 4
      %s278 = scalar_lea.vmem %s7, %s277
      %v280 = vld [vmem:[%s2] sm:$0x1]
      %v281 = vld [vmem:[%s3] sm:$0x1]
      %v282 = vld [vmem:[%s5] sm:$0x1]
      %v283 = vld [vmem:[%s6] sm:$0x1]
      %284 = vst [vmem:[#allocation2] sm:$0xf] 0
      %285 = vst [vmem:[#allocation2 + $0x4] sm:$0xf] 0
      %286 = vst [vmem:[#allocation2 + $0x8] sm:$0x1] 0
      %s287 = scalar_lea.vmem [#allocation2], 204
      %288 = vst [vmem:[%s287] sm:$0xf] 0
      %289 = vst [vmem:[%s287 + $0x4] sm:$0xf] 0
      %290 = vst [vmem:[%s287 + $0x8] sm:$0x1] 0
      %v291 = vld [vmem:[%s273] sm:$0xf]
      %v292 = vld [vmem:[%s273 + $0x4] sm:$0xf]
      %v293 = vld [vmem:[%s273 + $0xc] sm:$0xf]
      %v294 = vld [vmem:[%s273 + $0x10] sm:$0xf]
      %v295 = vld [vmem:[%s273 + $0x18] sm:$0xf]
      %v296 = vld [vmem:[%s273 + $0x1c] sm:$0xf]
      %v297 = vld [vmem:[%s273 + $0x24] sm:$0xf]
      %v298 = vld [vmem:[%s273 + $0x28] sm:$0xf]
      %v299 = vld [vmem:[%s273 + $0x30] sm:$0xf]
      %v300 = vld [vmem:[%s273 + $0x34] sm:$0xf]
      %v301 = vld [vmem:[%s273 + $0x3c] sm:$0xf]
      %v302 = vld [vmem:[%s273 + $0x40] sm:$0xf]
      %v303 = vld [vmem:[%s273 + $0x48] sm:$0xf]
      %v304 = vld [vmem:[%s273 + $0x4c] sm:$0xf]
      %v305 = vld [vmem:[%s273 + $0x54] sm:$0xf]
      %v306 = vld [vmem:[%s273 + $0x58] sm:$0xf]
      %v307 = vld [vmem:[%s273 + $0x60] sm:$0xf]
      %v308 = vld [vmem:[%s273 + $0x64] sm:$0xf]
      %v309 = vld [vmem:[%s273 + $0x6c] sm:$0xf]
      %v310 = vld [vmem:[%s273 + $0x70] sm:$0xf]
      %v311 = vld [vmem:[%s273 + $0x78] sm:$0xf]
      %v312 = vld [vmem:[%s273 + $0x7c] sm:$0xf]
      %v313 = vld [vmem:[%s273 + $0x84] sm:$0xf]
      %v314 = vld [vmem:[%s273 + $0x88] sm:$0xf]
      %v315 = vld [vmem:[%s273 + $0x90] sm:$0xf]
      %v316 = vld [vmem:[%s273 + $0x94] sm:$0xf]
      %v317 = vld [vmem:[%s273 + $0x9c] sm:$0xf]
      %v318 = vld [vmem:[%s273 + $0xa0] sm:$0xf]
      %v319 = vld [vmem:[%s273 + $0xa8] sm:$0xf]
      %v320 = vld [vmem:[%s273 + $0xac] sm:$0xf]
      %v321 = vld [vmem:[%s273 + $0xb4] sm:$0xf]
      %v322 = vld [vmem:[%s273 + $0xb8] sm:$0xf]
      %v323 = vld [vmem:[%s273 + $0xc0] sm:$0xf]
      %v324 = vld [vmem:[%s273 + $0xc4] sm:$0xf]
      %v325 = vld [vmem:[%s273 + $0xcc] sm:$0xf]
      %v326 = vld [vmem:[%s273 + $0xd0] sm:$0xf]
      %v363 = vunpack.c.l.b16 %v291
      %v364 = vunpack.c.l.b16 %v292
      %v365 = vunpack.c.l.b16 %v293
      %v366 = vunpack.c.l.b16 %v294
      %v367 = vunpack.c.l.b16 %v295
      %v368 = vunpack.c.l.b16 %v296
      %v369 = vunpack.c.l.b16 %v297
      %v370 = vunpack.c.l.b16 %v298
      %v371 = vunpack.c.l.b16 %v299
      %v372 = vunpack.c.l.b16 %v300
      %v373 = vunpack.c.l.b16 %v301
      %v374 = vunpack.c.l.b16 %v302
      %v375 = vunpack.c.l.b16 %v303
      %v376 = vunpack.c.l.b16 %v304
      %v377 = vunpack.c.l.b16 %v305
      %v378 = vunpack.c.l.b16 %v306
      %v379 = vunpack.c.l.b16 %v307
      %v380 = vunpack.c.l.b16 %v308
      %v381 = vunpack.c.l.b16 %v309
      %v382 = vunpack.c.l.b16 %v310
      %v383 = vunpack.c.l.b16 %v311
      %v384 = vunpack.c.l.b16 %v312
      %v385 = vunpack.c.l.b16 %v313
      %v386 = vunpack.c.l.b16 %v314
      %v387 = vunpack.c.l.b16 %v315
      %v388 = vunpack.c.l.b16 %v316
      %v389 = vunpack.c.l.b16 %v317
      %v390 = vunpack.c.l.b16 %v318
      %v391 = vunpack.c.l.b16 %v319
      %v392 = vunpack.c.l.b16 %v320
      %v393 = vunpack.c.l.b16 %v321
      %v394 = vunpack.c.l.b16 %v322
      %v395 = vunpack.c.l.b16 %v323
      %v396 = vunpack.c.l.b16 %v324
      %v397 = vunpack.c.l.b16 %v325
      %v398 = vunpack.c.l.b16 %v326
      %v399 = vpack.c.b16 %v364, %v363
      %v400 = vpack.c.b16 %v366, %v365
      %v401 = vpack.c.b16 %v368, %v367
      %v402 = vpack.c.b16 %v370, %v369
      %v403 = vpack.c.b16 %v372, %v371
      %v404 = vpack.c.b16 %v374, %v373
      %v405 = vpack.c.b16 %v376, %v375
      %v406 = vpack.c.b16 %v378, %v377
      %v407 = vpack.c.b16 %v380, %v379
      %v408 = vpack.c.b16 %v382, %v381
      %v409 = vpack.c.b16 %v384, %v383
      %v410 = vpack.c.b16 %v386, %v385
      %v411 = vpack.c.b16 %v388, %v387
      %v412 = vpack.c.b16 %v390, %v389
      %v413 = vpack.c.b16 %v392, %v391
      %v414 = vpack.c.b16 %v394, %v393
      %v415 = vpack.c.b16 %v396, %v395
      %v416 = vpack.c.b16 %v398, %v397
      %435 = vst [vmem:[#allocation3] sm:$0xff] %v399
      %436 = vst [vmem:[#allocation3 + $0x18] sm:$0xff] %v400
      %437 = vst [vmem:[#allocation3 + $0x30] sm:$0xff] %v401
      %438 = vst [vmem:[#allocation3 + $0x48] sm:$0xff] %v402
      %439 = vst [vmem:[#allocation3 + $0x60] sm:$0xff] %v403
      %440 = vst [vmem:[#allocation3 + $0x78] sm:$0xff] %v404
      %441 = vst [vmem:[#allocation3 + $0x90] sm:$0xff] %v405
      %442 = vst [vmem:[#allocation3 + $0xa8] sm:$0xff] %v406
      %443 = vst [vmem:[#allocation3 + $0xc0] sm:$0xff] %v407
      %444 = vst [vmem:[#allocation3 + $0xd8] sm:$0xff] %v408
      %445 = vst [vmem:[#allocation3 + $0xf0] sm:$0xff] %v409
      %446 = vst [vmem:[#allocation3 + $0x108] sm:$0xff] %v410
      %447 = vst [vmem:[#allocation3 + $0x120] sm:$0xff] %v411
      %448 = vst [vmem:[#allocation3 + $0x138] sm:$0xff] %v412
      %449 = vst [vmem:[#allocation3 + $0x150] sm:$0xff] %v413
      %450 = vst [vmem:[#allocation3 + $0x168] sm:$0xff] %v414
      %451 = vst [vmem:[#allocation3 + $0x180] sm:$0xff] %v415
      %452 = vst [vmem:[#allocation3 + $0x198] sm:$0xff] %v416
      %v453 = vld [vmem:[%s273] sm:$0xf]
      %v454 = vld [vmem:[%s273 + $0x4] sm:$0xf]
      %v455 = vld [vmem:[%s273 + $0x8] sm:$0x1]
      %v456 = vld [vmem:[%s273 + $0xc] sm:$0xf]
      %v457 = vld [vmem:[%s273 + $0x10] sm:$0xf]
      %v458 = vld [vmem:[%s273 + $0x14] sm:$0x1]
      %v459 = vld [vmem:[%s273 + $0x18] sm:$0xf]
      %v460 = vld [vmem:[%s273 + $0x1c] sm:$0xf]
      %v461 = vld [vmem:[%s273 + $0x20] sm:$0x1]
      %v462 = vld [vmem:[%s273 + $0x24] sm:$0xf]
      %v463 = vld [vmem:[%s273 + $0x28] sm:$0xf]
      %v464 = vld [vmem:[%s273 + $0x2c] sm:$0x1]
      %v465 = vld [vmem:[%s273 + $0x30] sm:$0xf]
      %v466 = vld [vmem:[%s273 + $0x34] sm:$0xf]
      %v467 = vld [vmem:[%s273 + $0x38] sm:$0x1]
      %v468 = vld [vmem:[%s273 + $0x3c] sm:$0xf]
      %v469 = vld [vmem:[%s273 + $0x40] sm:$0xf]
      %v470 = vld [vmem:[%s273 + $0x44] sm:$0x1]
      %v471 = vld [vmem:[%s273 + $0x48] sm:$0xf]
      %v472 = vld [vmem:[%s273 + $0x4c] sm:$0xf]
      %v473 = vld [vmem:[%s273 + $0x50] sm:$0x1]
      %v474 = vld [vmem:[%s273 + $0x54] sm:$0xf]
      %v475 = vld [vmem:[%s273 + $0x58] sm:$0xf]
      %v476 = vld [vmem:[%s273 + $0x5c] sm:$0x1]
      %v477 = vld [vmem:[%s273 + $0x60] sm:$0xf]
      %v478 = vld [vmem:[%s273 + $0x64] sm:$0xf]
      %v479 = vld [vmem:[%s273 + $0x68] sm:$0x1]
      %v480 = vld [vmem:[%s273 + $0x6c] sm:$0xf]
      %v481 = vld [vmem:[%s273 + $0x70] sm:$0xf]
      %v482 = vld [vmem:[%s273 + $0x74] sm:$0x1]
      %v483 = vld [vmem:[%s273 + $0x78] sm:$0xf]
      %v484 = vld [vmem:[%s273 + $0x7c] sm:$0xf]
      %v485 = vld [vmem:[%s273 + $0x80] sm:$0x1]
      %v486 = vld [vmem:[%s273 + $0x84] sm:$0xf]
      %v487 = vld [vmem:[%s273 + $0x88] sm:$0xf]
      %v488 = vld [vmem:[%s273 + $0x8c] sm:$0x1]
      %v489 = vld [vmem:[%s273 + $0x90] sm:$0xf]
      %v490 = vld [vmem:[%s273 + $0x94] sm:$0xf]
      %v491 = vld [vmem:[%s273 + $0x98] sm:$0x1]
      %v492 = vld [vmem:[%s273 + $0x9c] sm:$0xf]
      %v493 = vld [vmem:[%s273 + $0xa0] sm:$0xf]
      %v494 = vld [vmem:[%s273 + $0xa4] sm:$0x1]
      %v495 = vld [vmem:[%s273 + $0xa8] sm:$0xf]
      %v496 = vld [vmem:[%s273 + $0xac] sm:$0xf]
      %v497 = vld [vmem:[%s273 + $0xb0] sm:$0x1]
      %v498 = vld [vmem:[%s273 + $0xb4] sm:$0xf]
      %v499 = vld [vmem:[%s273 + $0xb8] sm:$0xf]
      %v500 = vld [vmem:[%s273 + $0xbc] sm:$0x1]
      %v501 = vld [vmem:[%s273 + $0xc0] sm:$0xf]
      %v502 = vld [vmem:[%s273 + $0xc4] sm:$0xf]
      %v503 = vld [vmem:[%s273 + $0xc8] sm:$0x1]
      %v504 = vld [vmem:[%s273 + $0xcc] sm:$0xf]
      %v505 = vld [vmem:[%s273 + $0xd0] sm:$0xf]
      %v506 = vld [vmem:[%s273 + $0xd4] sm:$0x1]
      %v561 = vunpack.c.l.b16 %v453
      %v562 = vunpack.c.l.b16 %v454
      %v563 = vunpack.c.l.b16 %v455
      %v564 = vunpack.c.l.b16 %v456
      %v565 = vunpack.c.l.b16 %v457
      %v566 = vunpack.c.l.b16 %v458
      %v567 = vunpack.c.l.b16 %v459
      %v568 = vunpack.c.l.b16 %v460
      %v569 = vunpack.c.l.b16 %v461
      %v570 = vunpack.c.l.b16 %v462
      %v571 = vunpack.c.l.b16 %v463
      %v572 = vunpack.c.l.b16 %v464
      %v573 = vunpack.c.l.b16 %v465
      %v574 = vunpack.c.l.b16 %v466
      %v575 = vunpack.c.l.b16 %v467
      %v576 = vunpack.c.l.b16 %v468
      %v577 = vunpack.c.l.b16 %v469
      %v578 = vunpack.c.l.b16 %v470
      %v579 = vunpack.c.l.b16 %v471
      %v580 = vunpack.c.l.b16 %v472
      %v581 = vunpack.c.l.b16 %v473
      %v582 = vunpack.c.l.b16 %v474
      %v583 = vunpack.c.l.b16 %v475
      %v584 = vunpack.c.l.b16 %v476
      %v585 = vunpack.c.l.b16 %v477
      %v586 = vunpack.c.l.b16 %v478
      %v587 = vunpack.c.l.b16 %v479
      %v588 = vunpack.c.l.b16 %v480
      %v589 = vunpack.c.l.b16 %v481
      %v590 = vunpack.c.l.b16 %v482
      %v591 = vunpack.c.l.b16 %v483
      %v592 = vunpack.c.l.b16 %v484
      %v593 = vunpack.c.l.b16 %v485
      %v594 = vunpack.c.l.b16 %v486
      %v595 = vunpack.c.l.b16 %v487
      %v596 = vunpack.c.l.b16 %v488
      %v597 = vunpack.c.l.b16 %v489
      %v598 = vunpack.c.l.b16 %v490
      %v599 = vunpack.c.l.b16 %v491
      %v600 = vunpack.c.l.b16 %v492
      %v601 = vunpack.c.l.b16 %v493
      %v602 = vunpack.c.l.b16 %v494
      %v603 = vunpack.c.l.b16 %v495
      %v604 = vunpack.c.l.b16 %v496
      %v605 = vunpack.c.l.b16 %v497
      %v606 = vunpack.c.l.b16 %v498
      %v607 = vunpack.c.l.b16 %v499
      %v608 = vunpack.c.l.b16 %v500
      %v609 = vunpack.c.l.b16 %v501
      %v610 = vunpack.c.l.b16 %v502
      %v611 = vunpack.c.l.b16 %v503
      %v612 = vunpack.c.l.b16 %v504
      %v613 = vunpack.c.l.b16 %v505
      %v614 = vunpack.c.l.b16 %v506
      %v615 = vpack.c.b16 %v562, %v561
      %v616 = vpack.c.b16 %v563, %v563
      %v617 = vpack.c.b16 %v565, %v564
      %v618 = vpack.c.b16 %v566, %v566
      %v619 = vpack.c.b16 %v568, %v567
      %v620 = vpack.c.b16 %v569, %v569
      %v621 = vpack.c.b16 %v571, %v570
      %v622 = vpack.c.b16 %v572, %v572
      %v623 = vpack.c.b16 %v574, %v573
      %v624 = vpack.c.b16 %v575, %v575
      %v625 = vpack.c.b16 %v577, %v576
      %v626 = vpack.c.b16 %v578, %v578
      %v627 = vpack.c.b16 %v580, %v579
      %v628 = vpack.c.b16 %v581, %v581
      %v629 = vpack.c.b16 %v583, %v582
      %v630 = vpack.c.b16 %v584, %v584
      %v631 = vpack.c.b16 %v586, %v585
      %v632 = vpack.c.b16 %v587, %v587
      %v633 = vpack.c.b16 %v589, %v588
      %v634 = vpack.c.b16 %v590, %v590
      %v635 = vpack.c.b16 %v592, %v591
      %v636 = vpack.c.b16 %v593, %v593
      %v637 = vpack.c.b16 %v595, %v594
      %v638 = vpack.c.b16 %v596, %v596
      %v639 = vpack.c.b16 %v598, %v597
      %v640 = vpack.c.b16 %v599, %v599
      %v641 = vpack.c.b16 %v601, %v600
      %v642 = vpack.c.b16 %v602, %v602
      %v643 = vpack.c.b16 %v604, %v603
      %v644 = vpack.c.b16 %v605, %v605
      %v645 = vpack.c.b16 %v607, %v606
      %v646 = vpack.c.b16 %v608, %v608
      %v647 = vpack.c.b16 %v610, %v609
      %v648 = vpack.c.b16 %v611, %v611
      %v649 = vpack.c.b16 %v613, %v612
      %v650 = vpack.c.b16 %v614, %v614
      %vm651 = vsmask.f32 7424
      %v653 = vshrl.u32 %v615, 16
      %v655 = vshll.u32 %v615, 16
      %v657 = vrot.slane %v655, 1
      %v658 = vor.u32 %v653, %v657
      %v660 = vshll.u32 %v616, 16
      %v662 = vrot.slane %v660, 1
      %v663 = vsel %vm651, %v658, %v662
      %v665 = vshrl.u32 %v617, 16
      %v667 = vshll.u32 %v617, 16
      %v669 = vrot.slane %v667, 1
      %v670 = vor.u32 %v665, %v669
      %v672 = vshll.u32 %v618, 16
      %v674 = vrot.slane %v672, 1
      %v675 = vsel %vm651, %v670, %v674
      %v677 = vshrl.u32 %v619, 16
      %v679 = vshll.u32 %v619, 16
      %v681 = vrot.slane %v679, 1
      %v682 = vor.u32 %v677, %v681
      %v684 = vshll.u32 %v620, 16
      %v686 = vrot.slane %v684, 1
      %v687 = vsel %vm651, %v682, %v686
      %v689 = vshrl.u32 %v621, 16
      %v691 = vshll.u32 %v621, 16
      %v693 = vrot.slane %v691, 1
      %v694 = vor.u32 %v689, %v693
      %v696 = vshll.u32 %v622, 16
      %v698 = vrot.slane %v696, 1
      %v699 = vsel %vm651, %v694, %v698
      %v701 = vshrl.u32 %v623, 16
      %v703 = vshll.u32 %v623, 16
      %v705 = vrot.slane %v703, 1
      %v706 = vor.u32 %v701, %v705
      %v708 = vshll.u32 %v624, 16
      %v710 = vrot.slane %v708, 1
      %v711 = vsel %vm651, %v706, %v710
      %v713 = vshrl.u32 %v625, 16
      %v715 = vshll.u32 %v625, 16
      %v717 = vrot.slane %v715, 1
      %v718 = vor.u32 %v713, %v717
      %v720 = vshll.u32 %v626, 16
      %v722 = vrot.slane %v720, 1
      %v723 = vsel %vm651, %v718, %v722
      %v725 = vshrl.u32 %v627, 16
      %v727 = vshll.u32 %v627, 16
      %v729 = vrot.slane %v727, 1
      %v730 = vor.u32 %v725, %v729
      %v732 = vshll.u32 %v628, 16
      %v734 = vrot.slane %v732, 1
      %v735 = vsel %vm651, %v730, %v734
      %v737 = vshrl.u32 %v629, 16
      %v739 = vshll.u32 %v629, 16
      %v741 = vrot.slane %v739, 1
      %v742 = vor.u32 %v737, %v741
      %v744 = vshll.u32 %v630, 16
      %v746 = vrot.slane %v744, 1
      %v747 = vsel %vm651, %v742, %v746
      %v749 = vshrl.u32 %v631, 16
      %v751 = vshll.u32 %v631, 16
      %v753 = vrot.slane %v751, 1
      %v754 = vor.u32 %v749, %v753
      %v756 = vshll.u32 %v632, 16
      %v758 = vrot.slane %v756, 1
      %v759 = vsel %vm651, %v754, %v758
      %v761 = vshrl.u32 %v633, 16
      %v763 = vshll.u32 %v633, 16
      %v765 = vrot.slane %v763, 1
      %v766 = vor.u32 %v761, %v765
      %v768 = vshll.u32 %v634, 16
      %v770 = vrot.slane %v768, 1
      %v771 = vsel %vm651, %v766, %v770
      %v773 = vshrl.u32 %v635, 16
      %v775 = vshll.u32 %v635, 16
      %v777 = vrot.slane %v775, 1
      %v778 = vor.u32 %v773, %v777
      %v780 = vshll.u32 %v636, 16
      %v782 = vrot.slane %v780, 1
      %v783 = vsel %vm651, %v778, %v782
      %v785 = vshrl.u32 %v637, 16
      %v787 = vshll.u32 %v637, 16
      %v789 = vrot.slane %v787, 1
      %v790 = vor.u32 %v785, %v789
      %v792 = vshll.u32 %v638, 16
      %v794 = vrot.slane %v792, 1
      %v795 = vsel %vm651, %v790, %v794
      %v797 = vshrl.u32 %v639, 16
      %v799 = vshll.u32 %v639, 16
      %v801 = vrot.slane %v799, 1
      %v802 = vor.u32 %v797, %v801
      %v804 = vshll.u32 %v640, 16
      %v806 = vrot.slane %v804, 1
      %v807 = vsel %vm651, %v802, %v806
      %v809 = vshrl.u32 %v641, 16
      %v811 = vshll.u32 %v641, 16
      %v813 = vrot.slane %v811, 1
      %v814 = vor.u32 %v809, %v813
      %v816 = vshll.u32 %v642, 16
      %v818 = vrot.slane %v816, 1
      %v819 = vsel %vm651, %v814, %v818
      %v821 = vshrl.u32 %v643, 16
      %v823 = vshll.u32 %v643, 16
      %v825 = vrot.slane %v823, 1
      %v826 = vor.u32 %v821, %v825
      %v828 = vshll.u32 %v644, 16
      %v830 = vrot.slane %v828, 1
      %v831 = vsel %vm651, %v826, %v830
      %v833 = vshrl.u32 %v645, 16
      %v835 = vshll.u32 %v645, 16
      %v837 = vrot.slane %v835, 1
      %v838 = vor.u32 %v833, %v837
      %v840 = vshll.u32 %v646, 16
      %v842 = vrot.slane %v840, 1
      %v843 = vsel %vm651, %v838, %v842
      %v845 = vshrl.u32 %v647, 16
      %v847 = vshll.u32 %v647, 16
      %v849 = vrot.slane %v847, 1
      %v850 = vor.u32 %v845, %v849
      %v852 = vshll.u32 %v648, 16
      %v854 = vrot.slane %v852, 1
      %v855 = vsel %vm651, %v850, %v854
      %v857 = vshrl.u32 %v649, 16
      %v859 = vshll.u32 %v649, 16
      %v861 = vrot.slane %v859, 1
      %v862 = vor.u32 %v857, %v861
      %v864 = vshll.u32 %v650, 16
      %v866 = vrot.slane %v864, 1
      %v867 = vsel %vm651, %v862, %v866
      %886 = vst [vmem:[#allocation3 + $0x8] sm:$0xff] %v663
      %887 = vst [vmem:[#allocation3 + $0x20] sm:$0xff] %v675
      %888 = vst [vmem:[#allocation3 + $0x38] sm:$0xff] %v687
      %889 = vst [vmem:[#allocation3 + $0x50] sm:$0xff] %v699
      %890 = vst [vmem:[#allocation3 + $0x68] sm:$0xff] %v711
      %891 = vst [vmem:[#allocation3 + $0x80] sm:$0xff] %v723
      %892 = vst [vmem:[#allocation3 + $0x98] sm:$0xff] %v735
      %893 = vst [vmem:[#allocation3 + $0xb0] sm:$0xff] %v747
      %894 = vst [vmem:[#allocation3 + $0xc8] sm:$0xff] %v759
      %895 = vst [vmem:[#allocation3 + $0xe0] sm:$0xff] %v771
      %896 = vst [vmem:[#allocation3 + $0xf8] sm:$0xff] %v783
      %897 = vst [vmem:[#allocation3 + $0x110] sm:$0xff] %v795
      %898 = vst [vmem:[#allocation3 + $0x128] sm:$0xff] %v807
      %899 = vst [vmem:[#allocation3 + $0x140] sm:$0xff] %v819
      %900 = vst [vmem:[#allocation3 + $0x158] sm:$0xff] %v831
      %901 = vst [vmem:[#allocation3 + $0x170] sm:$0xff] %v843
      %902 = vst [vmem:[#allocation3 + $0x188] sm:$0xff] %v855
      %903 = vst [vmem:[#allocation3 + $0x1a0] sm:$0xff] %v867
      %v904 = vld [vmem:[%s273] sm:$0xe]
      %v905 = vld [vmem:[%s273 + $0x4] sm:$0xf]
      %v906 = vld [vmem:[%s273 + $0x8] sm:$0x1]
      %v907 = vld [vmem:[%s273 + $0xc] sm:$0xe]
      %v908 = vld [vmem:[%s273 + $0x10] sm:$0xf]
      %v909 = vld [vmem:[%s273 + $0x14] sm:$0x1]
      %v910 = vld [vmem:[%s273 + $0x18] sm:$0xe]
      %v911 = vld [vmem:[%s273 + $0x1c] sm:$0xf]
      %v912 = vld [vmem:[%s273 + $0x20] sm:$0x1]
      %v913 = vld [vmem:[%s273 + $0x24] sm:$0xe]
      %v914 = vld [vmem:[%s273 + $0x28] sm:$0xf]
      %v915 = vld [vmem:[%s273 + $0x2c] sm:$0x1]
      %v916 = vld [vmem:[%s273 + $0x30] sm:$0xe]
      %v917 = vld [vmem:[%s273 + $0x34] sm:$0xf]
      %v918 = vld [vmem:[%s273 + $0x38] sm:$0x1]
      %v919 = vld [vmem:[%s273 + $0x3c] sm:$0xe]
      %v920 = vld [vmem:[%s273 + $0x40] sm:$0xf]
      %v921 = vld [vmem:[%s273 + $0x44] sm:$0x1]
      %v922 = vld [vmem:[%s273 + $0x48] sm:$0xe]
      %v923 = vld [vmem:[%s273 + $0x4c] sm:$0xf]
      %v924 = vld [vmem:[%s273 + $0x50] sm:$0x1]
      %v925 = vld [vmem:[%s273 + $0x54] sm:$0xe]
      %v926 = vld [vmem:[%s273 + $0x58] sm:$0xf]
      %v927 = vld [vmem:[%s273 + $0x5c] sm:$0x1]
      %v928 = vld [vmem:[%s273 + $0x60] sm:$0xe]
      %v929 = vld [vmem:[%s273 + $0x64] sm:$0xf]
      %v930 = vld [vmem:[%s273 + $0x68] sm:$0x1]
      %v931 = vld [vmem:[%s273 + $0x6c] sm:$0xe]
      %v932 = vld [vmem:[%s273 + $0x70] sm:$0xf]
      %v933 = vld [vmem:[%s273 + $0x74] sm:$0x1]
      %v934 = vld [vmem:[%s273 + $0x78] sm:$0xe]
      %v935 = vld [vmem:[%s273 + $0x7c] sm:$0xf]
      %v936 = vld [vmem:[%s273 + $0x80] sm:$0x1]
      %v937 = vld [vmem:[%s273 + $0x84] sm:$0xe]
      %v938 = vld [vmem:[%s273 + $0x88] sm:$0xf]
      %v939 = vld [vmem:[%s273 + $0x8c] sm:$0x1]
      %v940 = vld [vmem:[%s273 + $0x90] sm:$0xe]
      %v941 = vld [vmem:[%s273 + $0x94] sm:$0xf]
      %v942 = vld [vmem:[%s273 + $0x98] sm:$0x1]
      %v943 = vld [vmem:[%s273 + $0x9c] sm:$0xe]
      %v944 = vld [vmem:[%s273 + $0xa0] sm:$0xf]
      %v945 = vld [vmem:[%s273 + $0xa4] sm:$0x1]
      %v946 = vld [vmem:[%s273 + $0xa8] sm:$0xe]
      %v947 = vld [vmem:[%s273 + $0xac] sm:$0xf]
      %v948 = vld [vmem:[%s273 + $0xb0] sm:$0x1]
      %v949 = vld [vmem:[%s273 + $0xb4] sm:$0xe]
      %v950 = vld [vmem:[%s273 + $0xb8] sm:$0xf]
      %v951 = vld [vmem:[%s273 + $0xbc] sm:$0x1]
      %v952 = vld [vmem:[%s273 + $0xc0] sm:$0xe]
      %v953 = vld [vmem:[%s273 + $0xc4] sm:$0xf]
      %v954 = vld [vmem:[%s273 + $0xc8] sm:$0x1]
      %v955 = vld [vmem:[%s273 + $0xcc] sm:$0xe]
      %v956 = vld [vmem:[%s273 + $0xd0] sm:$0xf]
      %v957 = vld [vmem:[%s273 + $0xd4] sm:$0x1]
      %v1012 = vunpack.c.l.b16 %v904
      %v1013 = vunpack.c.l.b16 %v905
      %v1014 = vunpack.c.l.b16 %v906
      %v1015 = vunpack.c.l.b16 %v907
      %v1016 = vunpack.c.l.b16 %v908
      %v1017 = vunpack.c.l.b16 %v909
      %v1018 = vunpack.c.l.b16 %v910
      %v1019 = vunpack.c.l.b16 %v911
      %v1020 = vunpack.c.l.b16 %v912
      %v1021 = vunpack.c.l.b16 %v913
      %v1022 = vunpack.c.l.b16 %v914
      %v1023 = vunpack.c.l.b16 %v915
      %v1024 = vunpack.c.l.b16 %v916
      %v1025 = vunpack.c.l.b16 %v917
      %v1026 = vunpack.c.l.b16 %v918
      %v1027 = vunpack.c.l.b16 %v919
      %v1028 = vunpack.c.l.b16 %v920
      %v1029 = vunpack.c.l.b16 %v921
      %v1030 = vunpack.c.l.b16 %v922
      %v1031 = vunpack.c.l.b16 %v923
      %v1032 = vunpack.c.l.b16 %v924
      %v1033 = vunpack.c.l.b16 %v925
      %v1034 = vunpack.c.l.b16 %v926
      %v1035 = vunpack.c.l.b16 %v927
      %v1036 = vunpack.c.l.b16 %v928
      %v1037 = vunpack.c.l.b16 %v929
      %v1038 = vunpack.c.l.b16 %v930
      %v1039 = vunpack.c.l.b16 %v931
      %v1040 = vunpack.c.l.b16 %v932
      %v1041 = vunpack.c.l.b16 %v933
      %v1042 = vunpack.c.l.b16 %v934
      %v1043 = vunpack.c.l.b16 %v935
      %v1044 = vunpack.c.l.b16 %v936
      %v1045 = vunpack.c.l.b16 %v937
      %v1046 = vunpack.c.l.b16 %v938
      %v1047 = vunpack.c.l.b16 %v939
      %v1048 = vunpack.c.l.b16 %v940
      %v1049 = vunpack.c.l.b16 %v941
      %v1050 = vunpack.c.l.b16 %v942
      %v1051 = vunpack.c.l.b16 %v943
      %v1052 = vunpack.c.l.b16 %v944
      %v1053 = vunpack.c.l.b16 %v945
      %v1054 = vunpack.c.l.b16 %v946
      %v1055 = vunpack.c.l.b16 %v947
      %v1056 = vunpack.c.l.b16 %v948
      %v1057 = vunpack.c.l.b16 %v949
      %v1058 = vunpack.c.l.b16 %v950
      %v1059 = vunpack.c.l.b16 %v951
      %v1060 = vunpack.c.l.b16 %v952
      %v1061 = vunpack.c.l.b16 %v953
      %v1062 = vunpack.c.l.b16 %v954
      %v1063 = vunpack.c.l.b16 %v955
      %v1064 = vunpack.c.l.b16 %v956
      %v1065 = vunpack.c.l.b16 %v957
      %v1066 = vpack.c.b16 %v1013, %v1012
      %v1067 = vpack.c.b16 %v1014, %v1014
      %v1068 = vpack.c.b16 %v1016, %v1015
      %v1069 = vpack.c.b16 %v1017, %v1017
      %v1070 = vpack.c.b16 %v1019, %v1018
      %v1071 = vpack.c.b16 %v1020, %v1020
      %v1072 = vpack.c.b16 %v1022, %v1021
      %v1073 = vpack.c.b16 %v1023, %v1023
      %v1074 = vpack.c.b16 %v1025, %v1024
      %v1075 = vpack.c.b16 %v1026, %v1026
      %v1076 = vpack.c.b16 %v1028, %v1027
      %v1077 = vpack.c.b16 %v1029, %v1029
      %v1078 = vpack.c.b16 %v1031, %v1030
      %v1079 = vpack.c.b16 %v1032, %v1032
      %v1080 = vpack.c.b16 %v1034, %v1033
      %v1081 = vpack.c.b16 %v1035, %v1035
      %v1082 = vpack.c.b16 %v1037, %v1036
      %v1083 = vpack.c.b16 %v1038, %v1038
      %v1084 = vpack.c.b16 %v1040, %v1039
      %v1085 = vpack.c.b16 %v1041, %v1041
      %v1086 = vpack.c.b16 %v1043, %v1042
      %v1087 = vpack.c.b16 %v1044, %v1044
      %v1088 = vpack.c.b16 %v1046, %v1045
      %v1089 = vpack.c.b16 %v1047, %v1047
      %v1090 = vpack.c.b16 %v1049, %v1048
      %v1091 = vpack.c.b16 %v1050, %v1050
      %v1092 = vpack.c.b16 %v1052, %v1051
      %v1093 = vpack.c.b16 %v1053, %v1053
      %v1094 = vpack.c.b16 %v1055, %v1054
      %v1095 = vpack.c.b16 %v1056, %v1056
      %v1096 = vpack.c.b16 %v1058, %v1057
      %v1097 = vpack.c.b16 %v1059, %v1059
      %v1098 = vpack.c.b16 %v1061, %v1060
      %v1099 = vpack.c.b16 %v1062, %v1062
      %v1100 = vpack.c.b16 %v1064, %v1063
      %v1101 = vpack.c.b16 %v1065, %v1065
      %vm1102 = vcmask 1046528
      %v1103 = vrot.slane %v1066, 1
      %v1104 = vrot.slane %v1067, 1
      %v1105 = vsel %vm1102, %v1103, %v1104
      %v1106 = vrot.slane %v1068, 1
      %v1107 = vrot.slane %v1069, 1
      %v1108 = vsel %vm1102, %v1106, %v1107
      %v1109 = vrot.slane %v1070, 1
      %v1110 = vrot.slane %v1071, 1
      %v1111 = vsel %vm1102, %v1109, %v1110
      %v1112 = vrot.slane %v1072, 1
      %v1113 = vrot.slane %v1073, 1
      %v1114 = vsel %vm1102, %v1112, %v1113
      %v1115 = vrot.slane %v1074, 1
      %v1116 = vrot.slane %v1075, 1
      %v1117 = vsel %vm1102, %v1115, %v1116
      %v1118 = vrot.slane %v1076, 1
      %v1119 = vrot.slane %v1077, 1
      %v1120 = vsel %vm1102, %v1118, %v1119
      %v1121 = vrot.slane %v1078, 1
      %v1122 = vrot.slane %v1079, 1
      %v1123 = vsel %vm1102, %v1121, %v1122
      %v1124 = vrot.slane %v1080, 1
      %v1125 = vrot.slane %v1081, 1
      %v1126 = vsel %vm1102, %v1124, %v1125
      %v1127 = vrot.slane %v1082, 1
      %v1128 = vrot.slane %v1083, 1
      %v1129 = vsel %vm1102, %v1127, %v1128
      %v1130 = vrot.slane %v1084, 1
      %v1131 = vrot.slane %v1085, 1
      %v1132 = vsel %vm1102, %v1130, %v1131
      %v1133 = vrot.slane %v1086, 1
      %v1134 = vrot.slane %v1087, 1
      %v1135 = vsel %vm1102, %v1133, %v1134
      %v1136 = vrot.slane %v1088, 1
      %v1137 = vrot.slane %v1089, 1
      %v1138 = vsel %vm1102, %v1136, %v1137
      %v1139 = vrot.slane %v1090, 1
      %v1140 = vrot.slane %v1091, 1
      %v1141 = vsel %vm1102, %v1139, %v1140
      %v1142 = vrot.slane %v1092, 1
      %v1143 = vrot.slane %v1093, 1
      %v1144 = vsel %vm1102, %v1142, %v1143
      %v1145 = vrot.slane %v1094, 1
      %v1146 = vrot.slane %v1095, 1
      %v1147 = vsel %vm1102, %v1145, %v1146
      %v1148 = vrot.slane %v1096, 1
      %v1149 = vrot.slane %v1097, 1
      %v1150 = vsel %vm1102, %v1148, %v1149
      %v1151 = vrot.slane %v1098, 1
      %v1152 = vrot.slane %v1099, 1
      %v1153 = vsel %vm1102, %v1151, %v1152
      %v1154 = vrot.slane %v1100, 1
      %v1155 = vrot.slane %v1101, 1
      %v1156 = vsel %vm1102, %v1154, %v1155
      %1175 = vst [vmem:[#allocation3 + $0x10] sm:$0xff] %v1105
      %1176 = vst [vmem:[#allocation3 + $0x28] sm:$0xff] %v1108
      %1177 = vst [vmem:[#allocation3 + $0x40] sm:$0xff] %v1111
      %1178 = vst [vmem:[#allocation3 + $0x58] sm:$0xff] %v1114
      %1179 = vst [vmem:[#allocation3 + $0x70] sm:$0xff] %v1117
      %1180 = vst [vmem:[#allocation3 + $0x88] sm:$0xff] %v1120
      %1181 = vst [vmem:[#allocation3 + $0xa0] sm:$0xff] %v1123
      %1182 = vst [vmem:[#allocation3 + $0xb8] sm:$0xff] %v1126
      %1183 = vst [vmem:[#allocation3 + $0xd0] sm:$0xff] %v1129
      %1184 = vst [vmem:[#allocation3 + $0xe8] sm:$0xff] %v1132
      %1185 = vst [vmem:[#allocation3 + $0x100] sm:$0xff] %v1135
      %1186 = vst [vmem:[#allocation3 + $0x118] sm:$0xff] %v1138
      %1187 = vst [vmem:[#allocation3 + $0x130] sm:$0xff] %v1141
      %1188 = vst [vmem:[#allocation3 + $0x148] sm:$0xff] %v1144
      %1189 = vst [vmem:[#allocation3 + $0x160] sm:$0xff] %v1147
      %1190 = vst [vmem:[#allocation3 + $0x178] sm:$0xff] %v1150
      %1191 = vst [vmem:[#allocation3 + $0x190] sm:$0xff] %v1153
      %1192 = vst [vmem:[#allocation3 + $0x1a8] sm:$0xff] %v1156
      %v1193 = vld [vmem:[#allocation3] sm:$0xff]
      %v1194 = vld [vmem:[#allocation3 + $0x8] sm:$0xff]
      %v1195 = vld [vmem:[#allocation3 + $0x10] sm:$0xff]
      %v1196 = vld [vmem:[#allocation3 + $0x18] sm:$0xff]
      %v1197 = vld [vmem:[#allocation3 + $0x20] sm:$0xff]
      %v1198 = vld [vmem:[#allocation3 + $0x28] sm:$0xff]
      %v1199 = vld [vmem:[#allocation3 + $0x30] sm:$0xff]
      %v1200 = vld [vmem:[#allocation3 + $0x38] sm:$0xff]
      %v1201 = vld [vmem:[#allocation3 + $0x40] sm:$0xff]
      %v1202 = vld [vmem:[#allocation3 + $0x48] sm:$0xff]
      %v1203 = vld [vmem:[#allocation3 + $0x50] sm:$0xff]
      %v1204 = vld [vmem:[#allocation3 + $0x58] sm:$0xff]
      %v1205 = vld [vmem:[#allocation3 + $0x60] sm:$0xff]
      %v1206 = vld [vmem:[#allocation3 + $0x68] sm:$0xff]
      %v1207 = vld [vmem:[#allocation3 + $0x70] sm:$0xff]
      %v1208 = vld [vmem:[#allocation3 + $0x78] sm:$0xff]
      %v1209 = vld [vmem:[#allocation3 + $0x80] sm:$0xff]
      %v1210 = vld [vmem:[#allocation3 + $0x88] sm:$0xff]
      %v1211 = vld [vmem:[#allocation3 + $0x90] sm:$0xff]
      %v1212 = vld [vmem:[#allocation3 + $0x98] sm:$0xff]
      %v1213 = vld [vmem:[#allocation3 + $0xa0] sm:$0xff]
      %v1214 = vld [vmem:[#allocation3 + $0xa8] sm:$0xff]
      %v1215 = vld [vmem:[#allocation3 + $0xb0] sm:$0xff]
      %v1216 = vld [vmem:[#allocation3 + $0xb8] sm:$0xff]
      %v1217 = vld [vmem:[#allocation3 + $0xc0] sm:$0xff]
      %v1218 = vld [vmem:[#allocation3 + $0xc8] sm:$0xff]
      %v1219 = vld [vmem:[#allocation3 + $0xd0] sm:$0xff]
      %v1220 = vld [vmem:[#allocation3 + $0xd8] sm:$0xff]
      %v1221 = vld [vmem:[#allocation3 + $0xe0] sm:$0xff]
      %v1222 = vld [vmem:[#allocation3 + $0xe8] sm:$0xff]
      %v1223 = vld [vmem:[#allocation3 + $0xf0] sm:$0xff]
      %v1224 = vld [vmem:[#allocation3 + $0xf8] sm:$0xff]
      %v1225 = vld [vmem:[#allocation3 + $0x100] sm:$0xff]
      %v1226 = vld [vmem:[#allocation3 + $0x108] sm:$0xff]
      %v1227 = vld [vmem:[#allocation3 + $0x110] sm:$0xff]
      %v1228 = vld [vmem:[#allocation3 + $0x118] sm:$0xff]
      %v1229 = vld [vmem:[#allocation3 + $0x120] sm:$0xff]
      %v1230 = vld [vmem:[#allocation3 + $0x128] sm:$0xff]
      %v1231 = vld [vmem:[#allocation3 + $0x130] sm:$0xff]
      %v1232 = vld [vmem:[#allocation3 + $0x138] sm:$0xff]
      %v1233 = vld [vmem:[#allocation3 + $0x140] sm:$0xff]
      %v1234 = vld [vmem:[#allocation3 + $0x148] sm:$0xff]
      %v1235 = vld [vmem:[#allocation3 + $0x150] sm:$0xff]
      %v1236 = vld [vmem:[#allocation3 + $0x158] sm:$0xff]
      %v1237 = vld [vmem:[#allocation3 + $0x160] sm:$0xff]
      %v1238 = vld [vmem:[#allocation3 + $0x168] sm:$0xff]
      %v1239 = vld [vmem:[#allocation3 + $0x170] sm:$0xff]
      %v1240 = vld [vmem:[#allocation3 + $0x178] sm:$0xff]
      %v1241 = vld [vmem:[%s1] sm:$0xf]
      %v1242 = vld [vmem:[%s1 + $0x4] sm:$0xf]
      %v1243 = vld [vmem:[%s1 + $0x8] sm:$0xf]
      %v1244 = vld [vmem:[%s1 + $0xc] sm:$0xf]
      %v1245 = vld [vmem:[%s1 + $0x10] sm:$0xf]
      %v1246 = vld [vmem:[%s1 + $0x14] sm:$0xf]
      %v1247 = vld [vmem:[%s1 + $0x18] sm:$0xf]
      %v1248 = vld [vmem:[%s1 + $0x1c] sm:$0xf]
      %v1249 = vld [vmem:[%s1 + $0x20] sm:$0xf]
      %v1250 = vld [vmem:[%s1 + $0x24] sm:$0xf]
      %v1251 = vld [vmem:[%s1 + $0x28] sm:$0xf]
      %v1252 = vld [vmem:[%s1 + $0x2c] sm:$0xf]
      %v1253 = vld [vmem:[%s1 + $0x30] sm:$0xf]
      %v1254 = vld [vmem:[%s1 + $0x34] sm:$0xf]
      %v1255 = vld [vmem:[%s1 + $0x38] sm:$0xf]
      %v1256 = vld [vmem:[%s1 + $0x3c] sm:$0xf]
      %v1257 = vld [vmem:[%s1 + $0x40] sm:$0xf]
      %v1258 = vld [vmem:[%s1 + $0x44] sm:$0xf]
      %v1259 = vld [vmem:[%s1 + $0x48] sm:$0xf]
      %v1260 = vld [vmem:[%s1 + $0x4c] sm:$0xf]
      %v1261 = vld [vmem:[%s1 + $0x50] sm:$0xf]
      %v1262 = vld [vmem:[%s1 + $0x54] sm:$0xf]
      %v1263 = vld [vmem:[%s1 + $0x58] sm:$0xf]
      %v1264 = vld [vmem:[%s1 + $0x5c] sm:$0xf]
      %v1265 = vld [vmem:[%s1 + $0x60] sm:$0xf]
      %v1266 = vld [vmem:[%s1 + $0x64] sm:$0xf]
      %v1267 = vld [vmem:[%s1 + $0x68] sm:$0xf]
      %v1268 = vld [vmem:[%s1 + $0x6c] sm:$0xf]
      %v1269 = vld [vmem:[%s1 + $0x70] sm:$0xf]
      %v1270 = vld [vmem:[%s1 + $0x74] sm:$0xf]
      %v1271 = vld [vmem:[%s1 + $0x78] sm:$0xf]
      %v1272 = vld [vmem:[%s1 + $0x7c] sm:$0xf]
      %v1273 = vld [vmem:[%s1 + $0x80] sm:$0xf]
      %v1274 = vld [vmem:[%s1 + $0x84] sm:$0xf]
      %v1275 = vld [vmem:[%s1 + $0x88] sm:$0xf]
      %v1276 = vld [vmem:[%s1 + $0x8c] sm:$0xf]
      %v1277 = vld [vmem:[%s1 + $0x90] sm:$0xf]
      %v1278 = vld [vmem:[%s1 + $0x94] sm:$0xf]
      %v1279 = vld [vmem:[%s1 + $0x98] sm:$0xf]
      %v1280 = vld [vmem:[%s1 + $0x9c] sm:$0xf]
      %v1281 = vld [vmem:[%s1 + $0xa0] sm:$0xf]
      %v1282 = vld [vmem:[%s1 + $0xa4] sm:$0xf]
      %v1283 = vld [vmem:[%s1 + $0xa8] sm:$0xf]
      %v1284 = vld [vmem:[%s1 + $0xac] sm:$0xf]
      %v1285 = vld [vmem:[%s1 + $0xb0] sm:$0xf]
      %v1286 = vld [vmem:[%s1 + $0xb4] sm:$0xf]
      %v1287 = vld [vmem:[%s1 + $0xb8] sm:$0xf]
      %v1288 = vld [vmem:[%s1 + $0xbc] sm:$0xf]
      %s1289 = scalar_lea.vmem [#allocation3], 24
      %v1290 = vld [vmem:[%s1289] sm:$0xff]
      %v1291 = vld [vmem:[%s1289 + $0x8] sm:$0xff]
      %v1292 = vld [vmem:[%s1289 + $0x10] sm:$0xff]
      %v1293 = vld [vmem:[%s1289 + $0x18] sm:$0xff]
      %v1294 = vld [vmem:[%s1289 + $0x20] sm:$0xff]
      %v1295 = vld [vmem:[%s1289 + $0x28] sm:$0xff]
      %v1296 = vld [vmem:[%s1289 + $0x30] sm:$0xff]
      %v1297 = vld [vmem:[%s1289 + $0x38] sm:$0xff]
      %v1298 = vld [vmem:[%s1289 + $0x40] sm:$0xff]
      %v1299 = vld [vmem:[%s1289 + $0x48] sm:$0xff]
      %v1300 = vld [vmem:[%s1289 + $0x50] sm:$0xff]
      %v1301 = vld [vmem:[%s1289 + $0x58] sm:$0xff]
      %v1302 = vld [vmem:[%s1289 + $0x60] sm:$0xff]
      %v1303 = vld [vmem:[%s1289 + $0x68] sm:$0xff]
      %v1304 = vld [vmem:[%s1289 + $0x70] sm:$0xff]
      %v1305 = vld [vmem:[%s1289 + $0x78] sm:$0xff]
      %v1306 = vld [vmem:[%s1289 + $0x80] sm:$0xff]
      %v1307 = vld [vmem:[%s1289 + $0x88] sm:$0xff]
      %v1308 = vld [vmem:[%s1289 + $0x90] sm:$0xff]
      %v1309 = vld [vmem:[%s1289 + $0x98] sm:$0xff]
      %v1310 = vld [vmem:[%s1289 + $0xa0] sm:$0xff]
      %v1311 = vld [vmem:[%s1289 + $0xa8] sm:$0xff]
      %v1312 = vld [vmem:[%s1289 + $0xb0] sm:$0xff]
      %v1313 = vld [vmem:[%s1289 + $0xb8] sm:$0xff]
      %v1314 = vld [vmem:[%s1289 + $0xc0] sm:$0xff]
      %v1315 = vld [vmem:[%s1289 + $0xc8] sm:$0xff]
      %v1316 = vld [vmem:[%s1289 + $0xd0] sm:$0xff]
      %v1317 = vld [vmem:[%s1289 + $0xd8] sm:$0xff]
      %v1318 = vld [vmem:[%s1289 + $0xe0] sm:$0xff]
      %v1319 = vld [vmem:[%s1289 + $0xe8] sm:$0xff]
      %v1320 = vld [vmem:[%s1289 + $0xf0] sm:$0xff]
      %v1321 = vld [vmem:[%s1289 + $0xf8] sm:$0xff]
      %v1322 = vld [vmem:[%s1289 + $0x100] sm:$0xff]
      %v1323 = vld [vmem:[%s1289 + $0x108] sm:$0xff]
      %v1324 = vld [vmem:[%s1289 + $0x110] sm:$0xff]
      %v1325 = vld [vmem:[%s1289 + $0x118] sm:$0xff]
      %v1326 = vld [vmem:[%s1289 + $0x120] sm:$0xff]
      %v1327 = vld [vmem:[%s1289 + $0x128] sm:$0xff]
      %v1328 = vld [vmem:[%s1289 + $0x130] sm:$0xff]
      %v1329 = vld [vmem:[%s1289 + $0x138] sm:$0xff]
      %v1330 = vld [vmem:[%s1289 + $0x140] sm:$0xff]
      %v1331 = vld [vmem:[%s1289 + $0x148] sm:$0xff]
      %v1332 = vld [vmem:[%s1289 + $0x150] sm:$0xff]
      %v1333 = vld [vmem:[%s1289 + $0x158] sm:$0xff]
      %v1334 = vld [vmem:[%s1289 + $0x160] sm:$0xff]
      %v1335 = vld [vmem:[%s1289 + $0x168] sm:$0xff]
      %v1336 = vld [vmem:[%s1289 + $0x170] sm:$0xff]
      %v1337 = vld [vmem:[%s1289 + $0x178] sm:$0xff]
      %s1338 = scalar_lea.vmem %s1, 192
      %v1339 = vld [vmem:[%s1338] sm:$0xf]
      %v1340 = vld [vmem:[%s1338 + $0x4] sm:$0xf]
      %v1341 = vld [vmem:[%s1338 + $0x8] sm:$0xf]
      %v1342 = vld [vmem:[%s1338 + $0xc] sm:$0xf]
      %v1343 = vld [vmem:[%s1338 + $0x10] sm:$0xf]
      %v1344 = vld [vmem:[%s1338 + $0x14] sm:$0xf]
      %v1345 = vld [vmem:[%s1338 + $0x18] sm:$0xf]
      %v1346 = vld [vmem:[%s1338 + $0x1c] sm:$0xf]
      %v1347 = vld [vmem:[%s1338 + $0x20] sm:$0xf]
      %v1348 = vld [vmem:[%s1338 + $0x24] sm:$0xf]
      %v1349 = vld [vmem:[%s1338 + $0x28] sm:$0xf]
      %v1350 = vld [vmem:[%s1338 + $0x2c] sm:$0xf]
      %v1351 = vld [vmem:[%s1338 + $0x30] sm:$0xf]
      %v1352 = vld [vmem:[%s1338 + $0x34] sm:$0xf]
      %v1353 = vld [vmem:[%s1338 + $0x38] sm:$0xf]
      %v1354 = vld [vmem:[%s1338 + $0x3c] sm:$0xf]
      %v1355 = vld [vmem:[%s1338 + $0x40] sm:$0xf]
      %v1356 = vld [vmem:[%s1338 + $0x44] sm:$0xf]
      %v1357 = vld [vmem:[%s1338 + $0x48] sm:$0xf]
      %v1358 = vld [vmem:[%s1338 + $0x4c] sm:$0xf]
      %v1359 = vld [vmem:[%s1338 + $0x50] sm:$0xf]
      %v1360 = vld [vmem:[%s1338 + $0x54] sm:$0xf]
      %v1361 = vld [vmem:[%s1338 + $0x58] sm:$0xf]
      %v1362 = vld [vmem:[%s1338 + $0x5c] sm:$0xf]
      %v1363 = vld [vmem:[%s1338 + $0x60] sm:$0xf]
      %v1364 = vld [vmem:[%s1338 + $0x64] sm:$0xf]
      %v1365 = vld [vmem:[%s1338 + $0x68] sm:$0xf]
      %v1366 = vld [vmem:[%s1338 + $0x6c] sm:$0xf]
      %v1367 = vld [vmem:[%s1338 + $0x70] sm:$0xf]
      %v1368 = vld [vmem:[%s1338 + $0x74] sm:$0xf]
      %v1369 = vld [vmem:[%s1338 + $0x78] sm:$0xf]
      %v1370 = vld [vmem:[%s1338 + $0x7c] sm:$0xf]
      %v1371 = vld [vmem:[%s1338 + $0x80] sm:$0xf]
      %v1372 = vld [vmem:[%s1338 + $0x84] sm:$0xf]
      %v1373 = vld [vmem:[%s1338 + $0x88] sm:$0xf]
      %v1374 = vld [vmem:[%s1338 + $0x8c] sm:$0xf]
      %v1375 = vld [vmem:[%s1338 + $0x90] sm:$0xf]
      %v1376 = vld [vmem:[%s1338 + $0x94] sm:$0xf]
      %v1377 = vld [vmem:[%s1338 + $0x98] sm:$0xf]
      %v1378 = vld [vmem:[%s1338 + $0x9c] sm:$0xf]
      %v1379 = vld [vmem:[%s1338 + $0xa0] sm:$0xf]
      %v1380 = vld [vmem:[%s1338 + $0xa4] sm:$0xf]
      %v1381 = vld [vmem:[%s1338 + $0xa8] sm:$0xf]
      %v1382 = vld [vmem:[%s1338 + $0xac] sm:$0xf]
      %v1383 = vld [vmem:[%s1338 + $0xb0] sm:$0xf]
      %v1384 = vld [vmem:[%s1338 + $0xb4] sm:$0xf]
      %v1385 = vld [vmem:[%s1338 + $0xb8] sm:$0xf]
      %v1386 = vld [vmem:[%s1338 + $0xbc] sm:$0xf]
      %v1435 = vunpack.c.l.b16 %v1339
      %v1436 = vunpack.c.l.b16 %v1340
      %v1437 = vunpack.c.l.b16 %v1341
      %v1438 = vunpack.c.l.b16 %v1342
      %v1439 = vunpack.c.l.b16 %v1343
      %v1440 = vunpack.c.l.b16 %v1344
      %v1441 = vunpack.c.l.b16 %v1345
      %v1442 = vunpack.c.l.b16 %v1346
      %v1443 = vunpack.c.l.b16 %v1347
      %v1444 = vunpack.c.l.b16 %v1348
      %v1445 = vunpack.c.l.b16 %v1349
      %v1446 = vunpack.c.l.b16 %v1350
      %v1447 = vunpack.c.l.b16 %v1351
      %v1448 = vunpack.c.l.b16 %v1352
      %v1449 = vunpack.c.l.b16 %v1353
      %v1450 = vunpack.c.l.b16 %v1354
      %v1451 = vunpack.c.l.b16 %v1355
      %v1452 = vunpack.c.l.b16 %v1356
      %v1453 = vunpack.c.l.b16 %v1357
      %v1454 = vunpack.c.l.b16 %v1358
      %v1455 = vunpack.c.l.b16 %v1359
      %v1456 = vunpack.c.l.b16 %v1360
      %v1457 = vunpack.c.l.b16 %v1361
      %v1458 = vunpack.c.l.b16 %v1362
      %v1459 = vunpack.c.l.b16 %v1363
      %v1460 = vunpack.c.l.b16 %v1364
      %v1461 = vunpack.c.l.b16 %v1365
      %v1462 = vunpack.c.l.b16 %v1366
      %v1463 = vunpack.c.l.b16 %v1367
      %v1464 = vunpack.c.l.b16 %v1368
      %v1465 = vunpack.c.l.b16 %v1369
      %v1466 = vunpack.c.l.b16 %v1370
      %v1467 = vunpack.c.l.b16 %v1371
      %v1468 = vunpack.c.l.b16 %v1372
      %v1469 = vunpack.c.l.b16 %v1373
      %v1470 = vunpack.c.l.b16 %v1374
      %v1471 = vunpack.c.l.b16 %v1375
      %v1472 = vunpack.c.l.b16 %v1376
      %v1473 = vunpack.c.l.b16 %v1377
      %v1474 = vunpack.c.l.b16 %v1378
      %v1475 = vunpack.c.l.b16 %v1379
      %v1476 = vunpack.c.l.b16 %v1380
      %v1477 = vunpack.c.l.b16 %v1381
      %v1478 = vunpack.c.l.b16 %v1382
      %v1479 = vunpack.c.l.b16 %v1383
      %v1480 = vunpack.c.l.b16 %v1384
      %v1481 = vunpack.c.l.b16 %v1385
      %v1482 = vunpack.c.l.b16 %v1386
      %v1483 = vpack.c.b16 %v1436, %v1435
      %v1484 = vpack.c.b16 %v1438, %v1437
      %v1485 = vpack.c.b16 %v1440, %v1439
      %v1486 = vpack.c.b16 %v1442, %v1441
      %v1487 = vpack.c.b16 %v1444, %v1443
      %v1488 = vpack.c.b16 %v1446, %v1445
      %v1489 = vpack.c.b16 %v1448, %v1447
      %v1490 = vpack.c.b16 %v1450, %v1449
      %v1491 = vpack.c.b16 %v1452, %v1451
      %v1492 = vpack.c.b16 %v1454, %v1453
      %v1493 = vpack.c.b16 %v1456, %v1455
      %v1494 = vpack.c.b16 %v1458, %v1457
      %v1495 = vpack.c.b16 %v1460, %v1459
      %v1496 = vpack.c.b16 %v1462, %v1461
      %v1497 = vpack.c.b16 %v1464, %v1463
      %v1498 = vpack.c.b16 %v1466, %v1465
      %v1499 = vpack.c.b16 %v1468, %v1467
      %v1500 = vpack.c.b16 %v1470, %v1469
      %v1501 = vpack.c.b16 %v1472, %v1471
      %v1502 = vpack.c.b16 %v1474, %v1473
      %v1503 = vpack.c.b16 %v1476, %v1475
      %v1504 = vpack.c.b16 %v1478, %v1477
      %v1505 = vpack.c.b16 %v1480, %v1479
      %v1506 = vpack.c.b16 %v1482, %v1481
      %1531 = vmatprep.subr.bf16.mxu0 0
      %1532 = vmatpush1.bf16.msra.mxu0 %v1483
      %1533 = vmatprep.subr.bf16.mxu0 0
      %1534 = vmatpush1.bf16.msra.mxu0 %v1484
      %1535 = vmatprep.subr.bf16.mxu0 0
      %1536 = vmatpush1.bf16.msra.mxu0 %v1485
      %1537 = vmatprep.subr.bf16.mxu0 0
      %1538 = vmatpush1.bf16.msra.mxu0 %v1486
      %1539 = vmatprep.subr.bf16.mxu0 0
      %1540 = vmatpush1.bf16.msra.mxu0 %v1487
      %1541 = vmatprep.subr.bf16.mxu0 0
      %1542 = vmatpush1.bf16.msra.mxu0 %v1488
      %1543 = vmatprep.subr.bf16.mxu0 0
      %1544 = vmatpush1.bf16.msra.mxu0 %v1489
      %1545 = vmatprep.subr.bf16.mxu0 0
      %1546 = vmatpush1.bf16.msra.mxu0 %v1490
      %1547 = vmatprep.subr.bf16.mxu0 0
      %1548 = vmatpush1.bf16.msra.mxu0 %v1491
      %1549 = vmatprep.subr.bf16.mxu0 0
      %1550 = vmatpush1.bf16.msra.mxu0 %v1492
      %1551 = vmatprep.subr.bf16.mxu0 0
      %1552 = vmatpush1.bf16.msra.mxu0 %v1493
      %1553 = vmatprep.subr.bf16.mxu0 0
      %1554 = vmatpush1.bf16.msra.mxu0 %v1494
      %1555 = vmatprep.subr.bf16.mxu0 0
      %1556 = vmatpush1.bf16.msra.mxu0 %v1495
      %1557 = vmatprep.subr.bf16.mxu0 0
      %1558 = vmatpush1.bf16.msra.mxu0 %v1496
      %1559 = vmatprep.subr.bf16.mxu0 0
      %1560 = vmatpush1.bf16.msra.mxu0 %v1497
      %1561 = vmatprep.subr.bf16.mxu0 0
      %1562 = vmatpush1.bf16.msra.mxu0 %v1498
      %1563 = vmatprep.mubr.bf16.mxu0 %v1291
      %1564 = vmatmul.mubr.bf16.gmra.mrb[0].mxu0 %v1290
      %v1565 = vpop.f32.mrb[0].mxu0
      %v1566 = vadd.f32 0.0, %v1565
      %v1567 = vpop.f32.mrb[0].mxu0
      %v1568 = vpop.f32.mrb[0].mxu0
      %v1569 = vadd.f32 0.0, %v1568
      %v1570 = vpop.f32.mrb[0].mxu0
      %1571 = vmatprep.mubr.bf16.mxu0 %v1294
      %1572 = vmatmul.mubr.bf16.gmra.mrb[0].mxu0 %v1293
      %v1573 = vpop.f32.mrb[0].mxu0
      %v1574 = vadd.f32 0.0, %v1573
      %v1575 = vpop.f32.mrb[0].mxu0
      %v1576 = vpop.f32.mrb[0].mxu0
      %v1577 = vadd.f32 0.0, %v1576
      %v1578 = vpop.f32.mrb[0].mxu0
      %1579 = vmatprep.mubr.bf16.mxu0 %v1297
      %1580 = vmatmul.mubr.bf16.gmra.mrb[0].mxu0 %v1296
      %v1581 = vpop.f32.mrb[0].mxu0
      %v1582 = vadd.f32 0.0, %v1581
      %v1583 = vpop.f32.mrb[0].mxu0
      %v1584 = vpop.f32.mrb[0].mxu0
      %v1585 = vadd.f32 0.0, %v1584
      %v1586 = vpop.f32.mrb[0].mxu0
      %1587 = vmatprep.mubr.bf16.mxu0 %v1300
      %1588 = vmatmul.mubr.bf16.gmra.mrb[0].mxu0 %v1299
      %v1589 = vpop.f32.mrb[0].mxu0
      %v1590 = vadd.f32 0.0, %v1589
      %v1591 = vpop.f32.mrb[0].mxu0
      %v1592 = vpop.f32.mrb[0].mxu0
      %v1593 = vadd.f32 0.0, %v1592
      %v1594 = vpop.f32.mrb[0].mxu0
      %1595 = vmatprep.mubr.bf16.mxu0 %v1303
      %1596 = vmatmul.mubr.bf16.gmra.mrb[0].mxu0 %v1302
      %v1597 = vpop.f32.mrb[0].mxu0
      %v1598 = vadd.f32 0.0, %v1597
      %v1599 = vpop.f32.mrb[0].mxu0
      %v1600 = vpop.f32.mrb[0].mxu0
      %v1601 = vadd.f32 0.0, %v1600
      %v1602 = vpop.f32.mrb[0].mxu0
      %1603 = vmatprep.mubr.bf16.mxu0 %v1306
      %1604 = vmatmul.mubr.bf16.gmra.mrb[0].mxu0 %v1305
      %v1605 = vpop.f32.mrb[0].mxu0
      %v1606 = vadd.f32 0.0, %v1605
      %v1607 = vpop.f32.mrb[0].mxu0
      %v1608 = vpop.f32.mrb[0].mxu0
      %v1609 = vadd.f32 0.0, %v1608
      %v1610 = vpop.f32.mrb[0].mxu0
      %1611 = vmatprep.mubr.bf16.mxu0 %v1309
      %1612 = vmatmul.mubr.bf16.gmra.mrb[0].mxu0 %v1308
      %v1613 = vpop.f32.mrb[0].mxu0
      %v1614 = vadd.f32 0.0, %v1613
      %v1615 = vpop.f32.mrb[0].mxu0
      %v1616 = vpop.f32.mrb[0].mxu0
      %v1617 = vadd.f32 0.0, %v1616
      %v1618 = vpop.f32.mrb[0].mxu0
      %1619 = vmatprep.mubr.bf16.mxu0 %v1312
      %1620 = vmatmul.mubr.bf16.gmra.mrb[0].mxu0 %v1311
      %v1621 = vpop.f32.mrb[0].mxu0
      %v1622 = vadd.f32 0.0, %v1621
      %v1623 = vpop.f32.mrb[0].mxu0
      %v1624 = vpop.f32.mrb[0].mxu0
      %v1625 = vadd.f32 0.0, %v1624
      %v1626 = vpop.f32.mrb[0].mxu0
      %1627 = vmatprep.mubr.bf16.mxu0 %v1315
      %1628 = vmatmul.mubr.bf16.gmra.mrb[0].mxu0 %v1314
      %v1629 = vpop.f32.mrb[0].mxu0
      %v1630 = vadd.f32 0.0, %v1629
      %v1631 = vpop.f32.mrb[0].mxu0
      %v1632 = vpop.f32.mrb[0].mxu0
      %v1633 = vadd.f32 0.0, %v1632
      %v1634 = vpop.f32.mrb[0].mxu0
      %1635 = vmatprep.mubr.bf16.mxu0 %v1318
      %1636 = vmatmul.mubr.bf16.gmra.mrb[0].mxu0 %v1317
      %v1637 = vpop.f32.mrb[0].mxu0
      %v1638 = vadd.f32 0.0, %v1637
      %v1639 = vpop.f32.mrb[0].mxu0
      %v1640 = vpop.f32.mrb[0].mxu0
      %v1641 = vadd.f32 0.0, %v1640
      %v1642 = vpop.f32.mrb[0].mxu0
      %1643 = vmatprep.mubr.bf16.mxu0 %v1321
      %1644 = vmatmul.mubr.bf16.gmra.mrb[0].mxu0 %v1320
      %v1645 = vpop.f32.mrb[0].mxu0
      %v1646 = vadd.f32 0.0, %v1645
      %v1647 = vpop.f32.mrb[0].mxu0
      %v1648 = vpop.f32.mrb[0].mxu0
      %v1649 = vadd.f32 0.0, %v1648
      %v1650 = vpop.f32.mrb[0].mxu0
      %1651 = vmatprep.mubr.bf16.mxu0 %v1324
      %1652 = vmatmul.mubr.bf16.gmra.mrb[0].mxu0 %v1323
      %v1653 = vpop.f32.mrb[0].mxu0
      %v1654 = vadd.f32 0.0, %v1653
      %v1655 = vpop.f32.mrb[0].mxu0
      %v1656 = vpop.f32.mrb[0].mxu0
      %v1657 = vadd.f32 0.0, %v1656
      %v1658 = vpop.f32.mrb[0].mxu0
      %1659 = vmatprep.mubr.bf16.mxu0 %v1327
      %1660 = vmatmul.mubr.bf16.gmra.mrb[0].mxu0 %v1326
      %v1661 = vpop.f32.mrb[0].mxu0
      %v1662 = vadd.f32 0.0, %v1661
      %v1663 = vpop.f32.mrb[0].mxu0
      %v1664 = vpop.f32.mrb[0].mxu0
      %v1665 = vadd.f32 0.0, %v1664
      %v1666 = vpop.f32.mrb[0].mxu0
      %1667 = vmatprep.mubr.bf16.mxu0 %v1330
      %1668 = vmatmul.mubr.bf16.gmra.mrb[0].mxu0 %v1329
      %v1669 = vpop.f32.mrb[0].mxu0
      %v1670 = vadd.f32 0.0, %v1669
      %v1671 = vpop.f32.mrb[0].mxu0
      %v1672 = vpop.f32.mrb[0].mxu0
      %v1673 = vadd.f32 0.0, %v1672
      %v1674 = vpop.f32.mrb[0].mxu0
      %1675 = vmatprep.mubr.bf16.mxu0 %v1333
      %1676 = vmatmul.mubr.bf16.gmra.mrb[0].mxu0 %v1332
      %v1677 = vpop.f32.mrb[0].mxu0
      %v1678 = vadd.f32 0.0, %v1677
      %v1679 = vpop.f32.mrb[0].mxu0
      %v1680 = vpop.f32.mrb[0].mxu0
      %v1681 = vadd.f32 0.0, %v1680
      %v1682 = vpop.f32.mrb[0].mxu0
      %1683 = vmatprep.mubr.bf16.mxu0 %v1336
      %1684 = vmatmul.mubr.bf16.gmra.mrb[0].mxu0 %v1335
      %v1685 = vpop.f32.mrb[0].mxu0
      %v1686 = vadd.f32 0.0, %v1685
      %v1687 = vpop.f32.mrb[0].mxu0
      %v1688 = vpop.f32.mrb[0].mxu0
      %v1689 = vadd.f32 0.0, %v1688
      %v1690 = vpop.f32.mrb[0].mxu0
      %1691 = vdwg.mxu0
      %1692 = vmatprep.subr.bf16.mxu0 0
      %1693 = vmatpush1.bf16.msra.mxu0 %v1499
      %1694 = vmatprep.subr.bf16.mxu0 0
      %1695 = vmatpush1.bf16.msra.mxu0 %v1500
      %1696 = vmatprep.subr.bf16.mxu0 0
      %1697 = vmatpush1.bf16.msra.mxu0 %v1501
      %1698 = vmatprep.subr.bf16.mxu0 0
      %1699 = vmatpush1.bf16.msra.mxu0 %v1502
      %1700 = vmatprep.subr.bf16.mxu0 0
      %1701 = vmatpush1.bf16.msra.mxu0 %v1503
      %1702 = vmatprep.subr.bf16.mxu0 0
      %1703 = vmatpush1.bf16.msra.mxu0 %v1504
      %1704 = vmatprep.subr.bf16.mxu0 0
      %1705 = vmatpush1.bf16.msra.mxu0 %v1505
      %1706 = vmatprep.subr.bf16.mxu0 0
      %1707 = vmatpush1.bf16.msra.mxu0 %v1506
      %1708 = vmatprep.subr.bf16.mxu0 0
      %1709 = vmatpush1.bf16.msra.mxu0 0
      %1710 = vmatprep.subr.bf16.mxu0 0
      %1711 = vmatpush1.bf16.msra.mxu0 0
      %1712 = vmatprep.subr.bf16.mxu0 0
      %1713 = vmatpush1.bf16.msra.mxu0 0
      %1714 = vmatprep.subr.bf16.mxu0 0
      %1715 = vmatpush1.bf16.msra.mxu0 0
      %1716 = vmatprep.subr.bf16.mxu0 0
      %1717 = vmatpush1.bf16.msra.mxu0 0
      %1718 = vmatprep.subr.bf16.mxu0 0
      %1719 = vmatpush1.bf16.msra.mxu0 0
      %1720 = vmatprep.subr.bf16.mxu0 0
      %1721 = vmatpush1.bf16.msra.mxu0 0
      %1722 = vmatprep.subr.bf16.mxu0 0
      %1723 = vmatpush1.bf16.msra.mxu0 0
      %1724 = vmatprep.mubr.bf16.mxu0 0
      %1725 = vmatmul.mubr.bf16.gmra.mrb[0].mxu0 %v1292
      %v1726 = vpop.f32.mrb[0].mxu0
      %v1727 = vadd.f32 %v1566, %v1726
      %v1728 = vpop.f32.mrb[0].mxu0
      %v1729 = vpop.f32.mrb[0].mxu0
      %v1730 = vadd.f32 %v1569, %v1729
      %v1731 = vpop.f32.mrb[0].mxu0
      %1732 = vmatprep.mubr.bf16.mxu0 0
      %1733 = vmatmul.mubr.bf16.gmra.mrb[0].mxu0 %v1295
      %v1734 = vpop.f32.mrb[0].mxu0
      %v1735 = vadd.f32 %v1574, %v1734
      %v1736 = vpop.f32.mrb[0].mxu0
      %v1737 = vpop.f32.mrb[0].mxu0
      %v1738 = vadd.f32 %v1577, %v1737
      %v1739 = vpop.f32.mrb[0].mxu0
      %1740 = vmatprep.mubr.bf16.mxu0 0
      %1741 = vmatmul.mubr.bf16.gmra.mrb[0].mxu0 %v1298
      %v1742 = vpop.f32.mrb[0].mxu0
      %v1743 = vadd.f32 %v1582, %v1742
      %v1744 = vpop.f32.mrb[0].mxu0
      %v1745 = vpop.f32.mrb[0].mxu0
      %v1746 = vadd.f32 %v1585, %v1745
      %v1747 = vpop.f32.mrb[0].mxu0
      %1748 = vmatprep.mubr.bf16.mxu0 0
      %1749 = vmatmul.mubr.bf16.gmra.mrb[0].mxu0 %v1301
      %v1750 = vpop.f32.mrb[0].mxu0
      %v1751 = vadd.f32 %v1590, %v1750
      %v1752 = vpop.f32.mrb[0].mxu0
      %v1753 = vpop.f32.mrb[0].mxu0
      %v1754 = vadd.f32 %v1593, %v1753
      %v1755 = vpop.f32.mrb[0].mxu0
      %1756 = vmatprep.mubr.bf16.mxu0 0
      %1757 = vmatmul.mubr.bf16.gmra.mrb[0].mxu0 %v1304
      %v1758 = vpop.f32.mrb[0].mxu0
      %v1759 = vadd.f32 %v1598, %v1758
      %v1760 = vpop.f32.mrb[0].mxu0
      %v1761 = vpop.f32.mrb[0].mxu0
      %v1762 = vadd.f32 %v1601, %v1761
      %v1763 = vpop.f32.mrb[0].mxu0
      %1764 = vmatprep.mubr.bf16.mxu0 0
      %1765 = vmatmul.mubr.bf16.gmra.mrb[0].mxu0 %v1307
      %v1766 = vpop.f32.mrb[0].mxu0
      %v1767 = vadd.f32 %v1606, %v1766
      %v1768 = vpop.f32.mrb[0].mxu0
      %v1769 = vpop.f32.mrb[0].mxu0
      %v1770 = vadd.f32 %v1609, %v1769
      %v1771 = vpop.f32.mrb[0].mxu0
      %1772 = vmatprep.mubr.bf16.mxu0 0
      %1773 = vmatmul.mubr.bf16.gmra.mrb[0].mxu0 %v1310
      %v1774 = vpop.f32.mrb[0].mxu0
      %v1775 = vadd.f32 %v1614, %v1774
      %v1776 = vpop.f32.mrb[0].mxu0
      %v1777 = vpop.f32.mrb[0].mxu0
      %v1778 = vadd.f32 %v1617, %v1777
      %v1779 = vpop.f32.mrb[0].mxu0
      %1780 = vmatprep.mubr.bf16.mxu0 0
      %1781 = vmatmul.mubr.bf16.gmra.mrb[0].mxu0 %v1313
      %v1782 = vpop.f32.mrb[0].mxu0
      %v1783 = vadd.f32 %v1622, %v1782
      %v1784 = vpop.f32.mrb[0].mxu0
      %v1785 = vpop.f32.mrb[0].mxu0
      %v1786 = vadd.f32 %v1625, %v1785
      %v1787 = vpop.f32.mrb[0].mxu0
      %1788 = vmatprep.mubr.bf16.mxu0 0
      %1789 = vmatmul.mubr.bf16.gmra.mrb[0].mxu0 %v1316
      %v1790 = vpop.f32.mrb[0].mxu0
      %v1791 = vadd.f32 %v1630, %v1790
      %v1792 = vpop.f32.mrb[0].mxu0
      %v1793 = vpop.f32.mrb[0].mxu0
      %v1794 = vadd.f32 %v1633, %v1793
      %v1795 = vpop.f32.mrb[0].mxu0
      %1796 = vmatprep.mubr.bf16.mxu0 0
      %1797 = vmatmul.mubr.bf16.gmra.mrb[0].mxu0 %v1319
      %v1798 = vpop.f32.mrb[0].mxu0
      %v1799 = vadd.f32 %v1638, %v1798
      %v1800 = vpop.f32.mrb[0].mxu0
      %v1801 = vpop.f32.mrb[0].mxu0
      %v1802 = vadd.f32 %v1641, %v1801
      %v1803 = vpop.f32.mrb[0].mxu0
      %1804 = vmatprep.mubr.bf16.mxu0 0
      %1805 = vmatmul.mubr.bf16.gmra.mrb[0].mxu0 %v1322
      %v1806 = vpop.f32.mrb[0].mxu0
      %v1807 = vadd.f32 %v1646, %v1806
      %v1808 = vpop.f32.mrb[0].mxu0
      %v1809 = vpop.f32.mrb[0].mxu0
      %v1810 = vadd.f32 %v1649, %v1809
      %v1811 = vpop.f32.mrb[0].mxu0
      %1812 = vmatprep.mubr.bf16.mxu0 0
      %1813 = vmatmul.mubr.bf16.gmra.mrb[0].mxu0 %v1325
      %v1814 = vpop.f32.mrb[0].mxu0
      %v1815 = vadd.f32 %v1654, %v1814
      %v1816 = vpop.f32.mrb[0].mxu0
      %v1817 = vpop.f32.mrb[0].mxu0
      %v1818 = vadd.f32 %v1657, %v1817
      %v1819 = vpop.f32.mrb[0].mxu0
      %1820 = vmatprep.mubr.bf16.mxu0 0
      %1821 = vmatmul.mubr.bf16.gmra.mrb[0].mxu0 %v1328
      %v1822 = vpop.f32.mrb[0].mxu0
      %v1823 = vadd.f32 %v1662, %v1822
      %v1824 = vpop.f32.mrb[0].mxu0
      %v1825 = vpop.f32.mrb[0].mxu0
      %v1826 = vadd.f32 %v1665, %v1825
      %v1827 = vpop.f32.mrb[0].mxu0
      %1828 = vmatprep.mubr.bf16.mxu0 0
      %1829 = vmatmul.mubr.bf16.gmra.mrb[0].mxu0 %v1331
      %v1830 = vpop.f32.mrb[0].mxu0
      %v1831 = vadd.f32 %v1670, %v1830
      %v1832 = vpop.f32.mrb[0].mxu0
      %v1833 = vpop.f32.mrb[0].mxu0
      %v1834 = vadd.f32 %v1673, %v1833
      %v1835 = vpop.f32.mrb[0].mxu0
      %1836 = vmatprep.mubr.bf16.mxu0 0
      %1837 = vmatmul.mubr.bf16.gmra.mrb[0].mxu0 %v1334
      %v1838 = vpop.f32.mrb[0].mxu0
      %v1839 = vadd.f32 %v1678, %v1838
      %v1840 = vpop.f32.mrb[0].mxu0
      %v1841 = vpop.f32.mrb[0].mxu0
      %v1842 = vadd.f32 %v1681, %v1841
      %v1843 = vpop.f32.mrb[0].mxu0
      %1844 = vmatprep.mubr.bf16.mxu0 0
      %1845 = vmatmul.mubr.bf16.gmra.mrb[0].mxu0 %v1337
      %v1846 = vpop.f32.mrb[0].mxu0
      %v1847 = vadd.f32 %v1686, %v1846
      %v1848 = vpop.f32.mrb[0].mxu0
      %v1849 = vpop.f32.mrb[0].mxu0
      %v1850 = vadd.f32 %v1689, %v1849
      %v1851 = vpop.f32.mrb[0].mxu0
      %1852 = vdwg.mxu0
      %v1901 = vunpack.c.l.b16 %v1241
      %v1902 = vunpack.c.l.b16 %v1242
      %v1903 = vunpack.c.l.b16 %v1243
      %v1904 = vunpack.c.l.b16 %v1244
      %v1905 = vunpack.c.l.b16 %v1245
      %v1906 = vunpack.c.l.b16 %v1246
      %v1907 = vunpack.c.l.b16 %v1247
      %v1908 = vunpack.c.l.b16 %v1248
      %v1909 = vunpack.c.l.b16 %v1249
      %v1910 = vunpack.c.l.b16 %v1250
      %v1911 = vunpack.c.l.b16 %v1251
      %v1912 = vunpack.c.l.b16 %v1252
      %v1913 = vunpack.c.l.b16 %v1253
      %v1914 = vunpack.c.l.b16 %v1254
      %v1915 = vunpack.c.l.b16 %v1255
      %v1916 = vunpack.c.l.b16 %v1256
      %v1917 = vunpack.c.l.b16 %v1257
      %v1918 = vunpack.c.l.b16 %v1258
      %v1919 = vunpack.c.l.b16 %v1259
      %v1920 = vunpack.c.l.b16 %v1260
      %v1921 = vunpack.c.l.b16 %v1261
      %v1922 = vunpack.c.l.b16 %v1262
      %v1923 = vunpack.c.l.b16 %v1263
      %v1924 = vunpack.c.l.b16 %v1264
      %v1925 = vunpack.c.l.b16 %v1265
      %v1926 = vunpack.c.l.b16 %v1266
      %v1927 = vunpack.c.l.b16 %v1267
      %v1928 = vunpack.c.l.b16 %v1268
      %v1929 = vunpack.c.l.b16 %v1269
      %v1930 = vunpack.c.l.b16 %v1270
      %v1931 = vunpack.c.l.b16 %v1271
      %v1932 = vunpack.c.l.b16 %v1272
      %v1933 = vunpack.c.l.b16 %v1273
      %v1934 = vunpack.c.l.b16 %v1274
      %v1935 = vunpack.c.l.b16 %v1275
      %v1936 = vunpack.c.l.b16 %v1276
      %v1937 = vunpack.c.l.b16 %v1277
      %v1938 = vunpack.c.l.b16 %v1278
      %v1939 = vunpack.c.l.b16 %v1279
      %v1940 = vunpack.c.l.b16 %v1280
      %v1941 = vunpack.c.l.b16 %v1281
      %v1942 = vunpack.c.l.b16 %v1282
      %v1943 = vunpack.c.l.b16 %v1283
      %v1944 = vunpack.c.l.b16 %v1284
      %v1945 = vunpack.c.l.b16 %v1285
      %v1946 = vunpack.c.l.b16 %v1286
      %v1947 = vunpack.c.l.b16 %v1287
      %v1948 = vunpack.c.l.b16 %v1288
      %v1949 = vpack.c.b16 %v1902, %v1901
      %v1950 = vpack.c.b16 %v1904, %v1903
      %v1951 = vpack.c.b16 %v1906, %v1905
      %v1952 = vpack.c.b16 %v1908, %v1907
      %v1953 = vpack.c.b16 %v1910, %v1909
      %v1954 = vpack.c.b16 %v1912, %v1911
      %v1955 = vpack.c.b16 %v1914, %v1913
      %v1956 = vpack.c.b16 %v1916, %v1915
      %v1957 = vpack.c.b16 %v1918, %v1917
      %v1958 = vpack.c.b16 %v1920, %v1919
      %v1959 = vpack.c.b16 %v1922, %v1921
      %v1960 = vpack.c.b16 %v1924, %v1923
      %v1961 = vpack.c.b16 %v1926, %v1925
      %v1962 = vpack.c.b16 %v1928, %v1927
      %v1963 = vpack.c.b16 %v1930, %v1929
      %v1964 = vpack.c.b16 %v1932, %v1931
      %v1965 = vpack.c.b16 %v1934, %v1933
      %v1966 = vpack.c.b16 %v1936, %v1935
      %v1967 = vpack.c.b16 %v1938, %v1937
      %v1968 = vpack.c.b16 %v1940, %v1939
      %v1969 = vpack.c.b16 %v1942, %v1941
      %v1970 = vpack.c.b16 %v1944, %v1943
      %v1971 = vpack.c.b16 %v1946, %v1945
      %v1972 = vpack.c.b16 %v1948, %v1947
      %1997 = vmatprep.subr.bf16.mxu0 0
      %1998 = vmatpush1.bf16.msra.mxu0 %v1949
      %1999 = vmatprep.subr.bf16.mxu0 0
      %2000 = vmatpush1.bf16.msra.mxu0 %v1950
      %2001 = vmatprep.subr.bf16.mxu0 0
      %2002 = vmatpush1.bf16.msra.mxu0 %v1951
      %2003 = vmatprep.subr.bf16.mxu0 0
      %2004 = vmatpush1.bf16.msra.mxu0 %v1952
      %2005 = vmatprep.subr.bf16.mxu0 0
      %2006 = vmatpush1.bf16.msra.mxu0 %v1953
      %2007 = vmatprep.subr.bf16.mxu0 0
      %2008 = vmatpush1.bf16.msra.mxu0 %v1954
      %2009 = vmatprep.subr.bf16.mxu0 0
      %2010 = vmatpush1.bf16.msra.mxu0 %v1955
      %2011 = vmatprep.subr.bf16.mxu0 0
      %2012 = vmatpush1.bf16.msra.mxu0 %v1956
      %2013 = vmatprep.subr.bf16.mxu0 0
      %2014 = vmatpush1.bf16.msra.mxu0 %v1957
      %2015 = vmatprep.subr.bf16.mxu0 0
      %2016 = vmatpush1.bf16.msra.mxu0 %v1958
      %2017 = vmatprep.subr.bf16.mxu0 0
      %2018 = vmatpush1.bf16.msra.mxu0 %v1959
      %2019 = vmatprep.subr.bf16.mxu0 0
      %2020 = vmatpush1.bf16.msra.mxu0 %v1960
      %2021 = vmatprep.subr.bf16.mxu0 0
      %2022 = vmatpush1.bf16.msra.mxu0 %v1961
      %2023 = vmatprep.subr.bf16.mxu0 0
      %2024 = vmatpush1.bf16.msra.mxu0 %v1962
      %2025 = vmatprep.subr.bf16.mxu0 0
      %2026 = vmatpush1.bf16.msra.mxu0 %v1963
      %2027 = vmatprep.subr.bf16.mxu0 0
      %2028 = vmatpush1.bf16.msra.mxu0 %v1964
      %2029 = vmatprep.mubr.bf16.mxu0 %v1194
      %2030 = vmatmul.mubr.bf16.gmra.mrb[0].mxu0 %v1193
      %v2031 = vpop.f32.mrb[0].mxu0
      %v2032 = vadd.f32 %v1727, %v2031
      %v2033 = vpop.f32.mrb[0].mxu0
      %v2034 = vpop.f32.mrb[0].mxu0
      %v2035 = vadd.f32 %v1730, %v2034
      %v2036 = vpop.f32.mrb[0].mxu0
      %2037 = vmatprep.mubr.bf16.mxu0 %v1197
      %2038 = vmatmul.mubr.bf16.gmra.mrb[0].mxu0 %v1196
      %v2039 = vpop.f32.mrb[0].mxu0
      %v2040 = vadd.f32 %v1735, %v2039
      %v2041 = vpop.f32.mrb[0].mxu0
      %v2042 = vpop.f32.mrb[0].mxu0
      %v2043 = vadd.f32 %v1738, %v2042
      %v2044 = vpop.f32.mrb[0].mxu0
      %2045 = vmatprep.mubr.bf16.mxu0 %v1200
      %2046 = vmatmul.mubr.bf16.gmra.mrb[0].mxu0 %v1199
      %v2047 = vpop.f32.mrb[0].mxu0
      %v2048 = vadd.f32 %v1743, %v2047
      %v2049 = vpop.f32.mrb[0].mxu0
      %v2050 = vpop.f32.mrb[0].mxu0
      %v2051 = vadd.f32 %v1746, %v2050
      %v2052 = vpop.f32.mrb[0].mxu0
      %2053 = vmatprep.mubr.bf16.mxu0 %v1203
      %2054 = vmatmul.mubr.bf16.gmra.mrb[0].mxu0 %v1202
      %v2055 = vpop.f32.mrb[0].mxu0
      %v2056 = vadd.f32 %v1751, %v2055
      %v2057 = vpop.f32.mrb[0].mxu0
      %v2058 = vpop.f32.mrb[0].mxu0
      %v2059 = vadd.f32 %v1754, %v2058
      %v2060 = vpop.f32.mrb[0].mxu0
      %2061 = vmatprep.mubr.bf16.mxu0 %v1206
      %2062 = vmatmul.mubr.bf16.gmra.mrb[0].mxu0 %v1205
      %v2063 = vpop.f32.mrb[0].mxu0
      %v2064 = vadd.f32 %v1759, %v2063
      %v2065 = vpop.f32.mrb[0].mxu0
      %v2066 = vpop.f32.mrb[0].mxu0
      %v2067 = vadd.f32 %v1762, %v2066
      %v2068 = vpop.f32.mrb[0].mxu0
      %2069 = vmatprep.mubr.bf16.mxu0 %v1209
      %2070 = vmatmul.mubr.bf16.gmra.mrb[0].mxu0 %v1208
      %v2071 = vpop.f32.mrb[0].mxu0
      %v2072 = vadd.f32 %v1767, %v2071
      %v2073 = vpop.f32.mrb[0].mxu0
      %v2074 = vpop.f32.mrb[0].mxu0
      %v2075 = vadd.f32 %v1770, %v2074
      %v2076 = vpop.f32.mrb[0].mxu0
      %2077 = vmatprep.mubr.bf16.mxu0 %v1212
      %2078 = vmatmul.mubr.bf16.gmra.mrb[0].mxu0 %v1211
      %v2079 = vpop.f32.mrb[0].mxu0
      %v2080 = vadd.f32 %v1775, %v2079
      %v2081 = vpop.f32.mrb[0].mxu0
      %v2082 = vpop.f32.mrb[0].mxu0
      %v2083 = vadd.f32 %v1778, %v2082
      %v2084 = vpop.f32.mrb[0].mxu0
      %2085 = vmatprep.mubr.bf16.mxu0 %v1215
      %2086 = vmatmul.mubr.bf16.gmra.mrb[0].mxu0 %v1214
      %v2087 = vpop.f32.mrb[0].mxu0
      %v2088 = vadd.f32 %v1783, %v2087
      %v2089 = vpop.f32.mrb[0].mxu0
      %v2090 = vpop.f32.mrb[0].mxu0
      %v2091 = vadd.f32 %v1786, %v2090
      %v2092 = vpop.f32.mrb[0].mxu0
      %2093 = vmatprep.mubr.bf16.mxu0 %v1218
      %2094 = vmatmul.mubr.bf16.gmra.mrb[0].mxu0 %v1217
      %v2095 = vpop.f32.mrb[0].mxu0
      %v2096 = vadd.f32 %v1791, %v2095
      %v2097 = vpop.f32.mrb[0].mxu0
      %v2098 = vpop.f32.mrb[0].mxu0
      %v2099 = vadd.f32 %v1794, %v2098
      %v2100 = vpop.f32.mrb[0].mxu0
      %2101 = vmatprep.mubr.bf16.mxu0 %v1221
      %2102 = vmatmul.mubr.bf16.gmra.mrb[0].mxu0 %v1220
      %v2103 = vpop.f32.mrb[0].mxu0
      %v2104 = vadd.f32 %v1799, %v2103
      %v2105 = vpop.f32.mrb[0].mxu0
      %v2106 = vpop.f32.mrb[0].mxu0
      %v2107 = vadd.f32 %v1802, %v2106
      %v2108 = vpop.f32.mrb[0].mxu0
      %2109 = vmatprep.mubr.bf16.mxu0 %v1224
      %2110 = vmatmul.mubr.bf16.gmra.mrb[0].mxu0 %v1223
      %v2111 = vpop.f32.mrb[0].mxu0
      %v2112 = vadd.f32 %v1807, %v2111
      %v2113 = vpop.f32.mrb[0].mxu0
      %v2114 = vpop.f32.mrb[0].mxu0
      %v2115 = vadd.f32 %v1810, %v2114
      %v2116 = vpop.f32.mrb[0].mxu0
      %2117 = vmatprep.mubr.bf16.mxu0 %v1227
      %2118 = vmatmul.mubr.bf16.gmra.mrb[0].mxu0 %v1226
      %v2119 = vpop.f32.mrb[0].mxu0
      %v2120 = vadd.f32 %v1815, %v2119
      %v2121 = vpop.f32.mrb[0].mxu0
      %v2122 = vpop.f32.mrb[0].mxu0
      %v2123 = vadd.f32 %v1818, %v2122
      %v2124 = vpop.f32.mrb[0].mxu0
      %2125 = vmatprep.mubr.bf16.mxu0 %v1230
      %2126 = vmatmul.mubr.bf16.gmra.mrb[0].mxu0 %v1229
      %v2127 = vpop.f32.mrb[0].mxu0
      %v2128 = vadd.f32 %v1823, %v2127
      %v2129 = vpop.f32.mrb[0].mxu0
      %v2130 = vpop.f32.mrb[0].mxu0
      %v2131 = vadd.f32 %v1826, %v2130
      %v2132 = vpop.f32.mrb[0].mxu0
      %2133 = vmatprep.mubr.bf16.mxu0 %v1233
      %2134 = vmatmul.mubr.bf16.gmra.mrb[0].mxu0 %v1232
      %v2135 = vpop.f32.mrb[0].mxu0
      %v2136 = vadd.f32 %v1831, %v2135
      %v2137 = vpop.f32.mrb[0].mxu0
      %v2138 = vpop.f32.mrb[0].mxu0
      %v2139 = vadd.f32 %v1834, %v2138
      %v2140 = vpop.f32.mrb[0].mxu0
      %2141 = vmatprep.mubr.bf16.mxu0 %v1236
      %2142 = vmatmul.mubr.bf16.gmra.mrb[0].mxu0 %v1235
      %v2143 = vpop.f32.mrb[0].mxu0
      %v2144 = vadd.f32 %v1839, %v2143
      %v2145 = vpop.f32.mrb[0].mxu0
      %v2146 = vpop.f32.mrb[0].mxu0
      %v2147 = vadd.f32 %v1842, %v2146
      %v2148 = vpop.f32.mrb[0].mxu0
      %2149 = vmatprep.mubr.bf16.mxu0 %v1239
      %2150 = vmatmul.mubr.bf16.gmra.mrb[0].mxu0 %v1238
      %v2151 = vpop.f32.mrb[0].mxu0
      %v2152 = vadd.f32 %v1847, %v2151
      %v2153 = vpop.f32.mrb[0].mxu0
      %v2154 = vpop.f32.mrb[0].mxu0
      %v2155 = vadd.f32 %v1850, %v2154
      %v2156 = vpop.f32.mrb[0].mxu0
      %2157 = vdwg.mxu0
      %2158 = vmatprep.subr.bf16.mxu0 0
      %2159 = vmatpush1.bf16.msra.mxu0 %v1965
      %2160 = vmatprep.subr.bf16.mxu0 0
      %2161 = vmatpush1.bf16.msra.mxu0 %v1966
      %2162 = vmatprep.subr.bf16.mxu0 0
      %2163 = vmatpush1.bf16.msra.mxu0 %v1967
      %2164 = vmatprep.subr.bf16.mxu0 0
      %2165 = vmatpush1.bf16.msra.mxu0 %v1968
      %2166 = vmatprep.subr.bf16.mxu0 0
      %2167 = vmatpush1.bf16.msra.mxu0 %v1969
      %2168 = vmatprep.subr.bf16.mxu0 0
      %2169 = vmatpush1.bf16.msra.mxu0 %v1970
      %2170 = vmatprep.subr.bf16.mxu0 0
      %2171 = vmatpush1.bf16.msra.mxu0 %v1971
      %2172 = vmatprep.subr.bf16.mxu0 0
      %2173 = vmatpush1.bf16.msra.mxu0 %v1972
      %2174 = vmatprep.subr.bf16.mxu0 0
      %2175 = vmatpush1.bf16.msra.mxu0 0
      %2176 = vmatprep.subr.bf16.mxu0 0
      %2177 = vmatpush1.bf16.msra.mxu0 0
      %2178 = vmatprep.subr.bf16.mxu0 0
      %2179 = vmatpush1.bf16.msra.mxu0 0
      %2180 = vmatprep.subr.bf16.mxu0 0
      %2181 = vmatpush1.bf16.msra.mxu0 0
      %2182 = vmatprep.subr.bf16.mxu0 0
      %2183 = vmatpush1.bf16.msra.mxu0 0
      %2184 = vmatprep.subr.bf16.mxu0 0
      %2185 = vmatpush1.bf16.msra.mxu0 0
      %2186 = vmatprep.subr.bf16.mxu0 0
      %2187 = vmatpush1.bf16.msra.mxu0 0
      %2188 = vmatprep.subr.bf16.mxu0 0
      %2189 = vmatpush1.bf16.msra.mxu0 0
      %2190 = vmatprep.mubr.bf16.mxu0 0
      %2191 = vmatmul.mubr.bf16.gmra.mrb[0].mxu0 %v1195
      %v2192 = vpop.f32.mrb[0].mxu0
      %v2193 = vadd.f32 %v2032, %v2192
      %v2194 = vpop.f32.mrb[0].mxu0
      %v2195 = vpop.f32.mrb[0].mxu0
      %v2196 = vadd.f32 %v2035, %v2195
      %v2197 = vpop.f32.mrb[0].mxu0
      %2198 = vmatprep.mubr.bf16.mxu0 0
      %2199 = vmatmul.mubr.bf16.gmra.mrb[0].mxu0 %v1198
      %v2200 = vpop.f32.mrb[0].mxu0
      %v2201 = vadd.f32 %v2040, %v2200
      %v2202 = vpop.f32.mrb[0].mxu0
      %v2203 = vpop.f32.mrb[0].mxu0
      %v2204 = vadd.f32 %v2043, %v2203
      %v2205 = vpop.f32.mrb[0].mxu0
      %2206 = vmatprep.mubr.bf16.mxu0 0
      %2207 = vmatmul.mubr.bf16.gmra.mrb[0].mxu0 %v1201
      %v2208 = vpop.f32.mrb[0].mxu0
      %v2209 = vadd.f32 %v2048, %v2208
      %v2210 = vpop.f32.mrb[0].mxu0
      %v2211 = vpop.f32.mrb[0].mxu0
      %v2212 = vadd.f32 %v2051, %v2211
      %v2213 = vpop.f32.mrb[0].mxu0
      %2214 = vmatprep.mubr.bf16.mxu0 0
      %2215 = vmatmul.mubr.bf16.gmra.mrb[0].mxu0 %v1204
      %v2216 = vpop.f32.mrb[0].mxu0
      %v2217 = vadd.f32 %v2056, %v2216
      %v2218 = vpop.f32.mrb[0].mxu0
      %v2219 = vpop.f32.mrb[0].mxu0
      %v2220 = vadd.f32 %v2059, %v2219
      %v2221 = vpop.f32.mrb[0].mxu0
      %2222 = vmatprep.mubr.bf16.mxu0 0
      %2223 = vmatmul.mubr.bf16.gmra.mrb[0].mxu0 %v1207
      %v2224 = vpop.f32.mrb[0].mxu0
      %v2225 = vadd.f32 %v2064, %v2224
      %v2226 = vpop.f32.mrb[0].mxu0
      %v2227 = vpop.f32.mrb[0].mxu0
      %v2228 = vadd.f32 %v2067, %v2227
      %v2229 = vpop.f32.mrb[0].mxu0
      %2230 = vmatprep.mubr.bf16.mxu0 0
      %2231 = vmatmul.mubr.bf16.gmra.mrb[0].mxu0 %v1210
      %v2232 = vpop.f32.mrb[0].mxu0
      %v2233 = vadd.f32 %v2072, %v2232
      %v2234 = vpop.f32.mrb[0].mxu0
      %v2235 = vpop.f32.mrb[0].mxu0
      %v2236 = vadd.f32 %v2075, %v2235
      %v2237 = vpop.f32.mrb[0].mxu0
      %2238 = vmatprep.mubr.bf16.mxu0 0
      %2239 = vmatmul.mubr.bf16.gmra.mrb[0].mxu0 %v1213
      %v2240 = vpop.f32.mrb[0].mxu0
      %v2241 = vadd.f32 %v2080, %v2240
      %v2242 = vpop.f32.mrb[0].mxu0
      %v2243 = vpop.f32.mrb[0].mxu0
      %v2244 = vadd.f32 %v2083, %v2243
      %v2245 = vpop.f32.mrb[0].mxu0
      %2246 = vmatprep.mubr.bf16.mxu0 0
      %2247 = vmatmul.mubr.bf16.gmra.mrb[0].mxu0 %v1216
      %v2248 = vpop.f32.mrb[0].mxu0
      %v2249 = vadd.f32 %v2088, %v2248
      %v2250 = vpop.f32.mrb[0].mxu0
      %v2251 = vpop.f32.mrb[0].mxu0
      %v2252 = vadd.f32 %v2091, %v2251
      %v2253 = vpop.f32.mrb[0].mxu0
      %2254 = vmatprep.mubr.bf16.mxu0 0
      %2255 = vmatmul.mubr.bf16.gmra.mrb[0].mxu0 %v1219
      %v2256 = vpop.f32.mrb[0].mxu0
      %v2257 = vadd.f32 %v2096, %v2256
      %v2258 = vpop.f32.mrb[0].mxu0
      %v2259 = vpop.f32.mrb[0].mxu0
      %v2260 = vadd.f32 %v2099, %v2259
      %v2261 = vpop.f32.mrb[0].mxu0
      %2262 = vmatprep.mubr.bf16.mxu0 0
      %2263 = vmatmul.mubr.bf16.gmra.mrb[0].mxu0 %v1222
      %v2264 = vpop.f32.mrb[0].mxu0
      %v2265 = vadd.f32 %v2104, %v2264
      %v2266 = vpop.f32.mrb[0].mxu0
      %v2267 = vpop.f32.mrb[0].mxu0
      %v2268 = vadd.f32 %v2107, %v2267
      %v2269 = vpop.f32.mrb[0].mxu0
      %2270 = vmatprep.mubr.bf16.mxu0 0
      %2271 = vmatmul.mubr.bf16.gmra.mrb[0].mxu0 %v1225
      %v2272 = vpop.f32.mrb[0].mxu0
      %v2273 = vadd.f32 %v2112, %v2272
      %v2274 = vpop.f32.mrb[0].mxu0
      %v2275 = vpop.f32.mrb[0].mxu0
      %v2276 = vadd.f32 %v2115, %v2275
      %v2277 = vpop.f32.mrb[0].mxu0
      %2278 = vmatprep.mubr.bf16.mxu0 0
      %2279 = vmatmul.mubr.bf16.gmra.mrb[0].mxu0 %v1228
      %v2280 = vpop.f32.mrb[0].mxu0
      %v2281 = vadd.f32 %v2120, %v2280
      %v2282 = vpop.f32.mrb[0].mxu0
      %v2283 = vpop.f32.mrb[0].mxu0
      %v2284 = vadd.f32 %v2123, %v2283
      %v2285 = vpop.f32.mrb[0].mxu0
      %2286 = vmatprep.mubr.bf16.mxu0 0
      %2287 = vmatmul.mubr.bf16.gmra.mrb[0].mxu0 %v1231
      %v2288 = vpop.f32.mrb[0].mxu0
      %v2289 = vadd.f32 %v2128, %v2288
      %v2290 = vpop.f32.mrb[0].mxu0
      %v2291 = vpop.f32.mrb[0].mxu0
      %v2292 = vadd.f32 %v2131, %v2291
      %v2293 = vpop.f32.mrb[0].mxu0
      %2294 = vmatprep.mubr.bf16.mxu0 0
      %2295 = vmatmul.mubr.bf16.gmra.mrb[0].mxu0 %v1234
      %v2296 = vpop.f32.mrb[0].mxu0
      %v2297 = vadd.f32 %v2136, %v2296
      %v2298 = vpop.f32.mrb[0].mxu0
      %v2299 = vpop.f32.mrb[0].mxu0
      %v2300 = vadd.f32 %v2139, %v2299
      %v2301 = vpop.f32.mrb[0].mxu0
      %2302 = vmatprep.mubr.bf16.mxu0 0
      %2303 = vmatmul.mubr.bf16.gmra.mrb[0].mxu0 %v1237
      %v2304 = vpop.f32.mrb[0].mxu0
      %v2305 = vadd.f32 %v2144, %v2304
      %v2306 = vpop.f32.mrb[0].mxu0
      %v2307 = vpop.f32.mrb[0].mxu0
      %v2308 = vadd.f32 %v2147, %v2307
      %v2309 = vpop.f32.mrb[0].mxu0
      %2310 = vmatprep.mubr.bf16.mxu0 0
      %2311 = vmatmul.mubr.bf16.gmra.mrb[0].mxu0 %v1240
      %v2312 = vpop.f32.mrb[0].mxu0
      %v2313 = vadd.f32 %v2152, %v2312
      %v2314 = vpop.f32.mrb[0].mxu0
      %v2315 = vpop.f32.mrb[0].mxu0
      %v2316 = vadd.f32 %v2155, %v2315
      %v2317 = vpop.f32.mrb[0].mxu0
      %2318 = vdwg.mxu0
      %s2319 = scalar_lea.vmem [#allocation3], 48
      %v2320 = vld [vmem:[%s2319] sm:$0xff]
      %v2321 = vld [vmem:[%s2319 + $0x8] sm:$0xff]
      %v2322 = vld [vmem:[%s2319 + $0x10] sm:$0xff]
      %v2323 = vld [vmem:[%s2319 + $0x18] sm:$0xff]
      %v2324 = vld [vmem:[%s2319 + $0x20] sm:$0xff]
      %v2325 = vld [vmem:[%s2319 + $0x28] sm:$0xff]
      %v2326 = vld [vmem:[%s2319 + $0x30] sm:$0xff]
      %v2327 = vld [vmem:[%s2319 + $0x38] sm:$0xff]
      %v2328 = vld [vmem:[%s2319 + $0x40] sm:$0xff]
      %v2329 = vld [vmem:[%s2319 + $0x48] sm:$0xff]
      %v2330 = vld [vmem:[%s2319 + $0x50] sm:$0xff]
      %v2331 = vld [vmem:[%s2319 + $0x58] sm:$0xff]
      %v2332 = vld [vmem:[%s2319 + $0x60] sm:$0xff]
      %v2333 = vld [vmem:[%s2319 + $0x68] sm:$0xff]
      %v2334 = vld [vmem:[%s2319 + $0x70] sm:$0xff]
      %v2335 = vld [vmem:[%s2319 + $0x78] sm:$0xff]
      %v2336 = vld [vmem:[%s2319 + $0x80] sm:$0xff]
      %v2337 = vld [vmem:[%s2319 + $0x88] sm:$0xff]
      %v2338 = vld [vmem:[%s2319 + $0x90] sm:$0xff]
      %v2339 = vld [vmem:[%s2319 + $0x98] sm:$0xff]
      %v2340 = vld [vmem:[%s2319 + $0xa0] sm:$0xff]
      %v2341 = vld [vmem:[%s2319 + $0xa8] sm:$0xff]
      %v2342 = vld [vmem:[%s2319 + $0xb0] sm:$0xff]
      %v2343 = vld [vmem:[%s2319 + $0xb8] sm:$0xff]
      %v2344 = vld [vmem:[%s2319 + $0xc0] sm:$0xff]
      %v2345 = vld [vmem:[%s2319 + $0xc8] sm:$0xff]
      %v2346 = vld [vmem:[%s2319 + $0xd0] sm:$0xff]
      %v2347 = vld [vmem:[%s2319 + $0xd8] sm:$0xff]
      %v2348 = vld [vmem:[%s2319 + $0xe0] sm:$0xff]
      %v2349 = vld [vmem:[%s2319 + $0xe8] sm:$0xff]
      %v2350 = vld [vmem:[%s2319 + $0xf0] sm:$0xff]
      %v2351 = vld [vmem:[%s2319 + $0xf8] sm:$0xff]
      %v2352 = vld [vmem:[%s2319 + $0x100] sm:$0xff]
      %v2353 = vld [vmem:[%s2319 + $0x108] sm:$0xff]
      %v2354 = vld [vmem:[%s2319 + $0x110] sm:$0xff]
      %v2355 = vld [vmem:[%s2319 + $0x118] sm:$0xff]
      %v2356 = vld [vmem:[%s2319 + $0x120] sm:$0xff]
      %v2357 = vld [vmem:[%s2319 + $0x128] sm:$0xff]
      %v2358 = vld [vmem:[%s2319 + $0x130] sm:$0xff]
      %v2359 = vld [vmem:[%s2319 + $0x138] sm:$0xff]
      %v2360 = vld [vmem:[%s2319 + $0x140] sm:$0xff]
      %v2361 = vld [vmem:[%s2319 + $0x148] sm:$0xff]
      %v2362 = vld [vmem:[%s2319 + $0x150] sm:$0xff]
      %v2363 = vld [vmem:[%s2319 + $0x158] sm:$0xff]
      %v2364 = vld [vmem:[%s2319 + $0x160] sm:$0xff]
      %v2365 = vld [vmem:[%s2319 + $0x168] sm:$0xff]
      %v2366 = vld [vmem:[%s2319 + $0x170] sm:$0xff]
      %v2367 = vld [vmem:[%s2319 + $0x178] sm:$0xff]
      %s2368 = scalar_lea.vmem %s1, 384
      %v2369 = vld [vmem:[%s2368] sm:$0xf]
      %v2370 = vld [vmem:[%s2368 + $0x4] sm:$0xf]
      %v2371 = vld [vmem:[%s2368 + $0x8] sm:$0xf]
      %v2372 = vld [vmem:[%s2368 + $0xc] sm:$0xf]
      %v2373 = vld [vmem:[%s2368 + $0x10] sm:$0xf]
      %v2374 = vld [vmem:[%s2368 + $0x14] sm:$0xf]
      %v2375 = vld [vmem:[%s2368 + $0x18] sm:$0xf]
      %v2376 = vld [vmem:[%s2368 + $0x1c] sm:$0xf]
      %v2377 = vld [vmem:[%s2368 + $0x20] sm:$0xf]
      %v2378 = vld [vmem:[%s2368 + $0x24] sm:$0xf]
      %v2379 = vld [vmem:[%s2368 + $0x28] sm:$0xf]
      %v2380 = vld [vmem:[%s2368 + $0x2c] sm:$0xf]
      %v2381 = vld [vmem:[%s2368 + $0x30] sm:$0xf]
      %v2382 = vld [vmem:[%s2368 + $0x34] sm:$0xf]
      %v2383 = vld [vmem:[%s2368 + $0x38] sm:$0xf]
      %v2384 = vld [vmem:[%s2368 + $0x3c] sm:$0xf]
      %v2385 = vld [vmem:[%s2368 + $0x40] sm:$0xf]
      %v2386 = vld [vmem:[%s2368 + $0x44] sm:$0xf]
      %v2387 = vld [vmem:[%s2368 + $0x48] sm:$0xf]
      %v2388 = vld [vmem:[%s2368 + $0x4c] sm:$0xf]
      %v2389 = vld [vmem:[%s2368 + $0x50] sm:$0xf]
      %v2390 = vld [vmem:[%s2368 + $0x54] sm:$0xf]
      %v2391 = vld [vmem:[%s2368 + $0x58] sm:$0xf]
      %v2392 = vld [vmem:[%s2368 + $0x5c] sm:$0xf]
      %v2393 = vld [vmem:[%s2368 + $0x60] sm:$0xf]
      %v2394 = vld [vmem:[%s2368 + $0x64] sm:$0xf]
      %v2395 = vld [vmem:[%s2368 + $0x68] sm:$0xf]
      %v2396 = vld [vmem:[%s2368 + $0x6c] sm:$0xf]
      %v2397 = vld [vmem:[%s2368 + $0x70] sm:$0xf]
      %v2398 = vld [vmem:[%s2368 + $0x74] sm:$0xf]
      %v2399 = vld [vmem:[%s2368 + $0x78] sm:$0xf]
      %v2400 = vld [vmem:[%s2368 + $0x7c] sm:$0xf]
      %v2401 = vld [vmem:[%s2368 + $0x80] sm:$0xf]
      %v2402 = vld [vmem:[%s2368 + $0x84] sm:$0xf]
      %v2403 = vld [vmem:[%s2368 + $0x88] sm:$0xf]
      %v2404 = vld [vmem:[%s2368 + $0x8c] sm:$0xf]
      %v2405 = vld [vmem:[%s2368 + $0x90] sm:$0xf]
      %v2406 = vld [vmem:[%s2368 + $0x94] sm:$0xf]
      %v2407 = vld [vmem:[%s2368 + $0x98] sm:$0xf]
      %v2408 = vld [vmem:[%s2368 + $0x9c] sm:$0xf]
      %v2409 = vld [vmem:[%s2368 + $0xa0] sm:$0xf]
      %v2410 = vld [vmem:[%s2368 + $0xa4] sm:$0xf]
      %v2411 = vld [vmem:[%s2368 + $0xa8] sm:$0xf]
      %v2412 = vld [vmem:[%s2368 + $0xac] sm:$0xf]
      %v2413 = vld [vmem:[%s2368 + $0xb0] sm:$0xf]
      %v2414 = vld [vmem:[%s2368 + $0xb4] sm:$0xf]
      %v2415 = vld [vmem:[%s2368 + $0xb8] sm:$0xf]
      %v2416 = vld [vmem:[%s2368 + $0xbc] sm:$0xf]
      %v2465 = vunpack.c.l.b16 %v2369
      %v2466 = vunpack.c.l.b16 %v2370
      %v2467 = vunpack.c.l.b16 %v2371
      %v2468 = vunpack.c.l.b16 %v2372
      %v2469 = vunpack.c.l.b16 %v2373
      %v2470 = vunpack.c.l.b16 %v2374
      %v2471 = vunpack.c.l.b16 %v2375
      %v2472 = vunpack.c.l.b16 %v2376
      %v2473 = vunpack.c.l.b16 %v2377
      %v2474 = vunpack.c.l.b16 %v2378
      %v2475 = vunpack.c.l.b16 %v2379
      %v2476 = vunpack.c.l.b16 %v2380
      %v2477 = vunpack.c.l.b16 %v2381
      %v2478 = vunpack.c.l.b16 %v2382
      %v2479 = vunpack.c.l.b16 %v2383
      %v2480 = vunpack.c.l.b16 %v2384
      %v2481 = vunpack.c.l.b16 %v2385
      %v2482 = vunpack.c.l.b16 %v2386
      %v2483 = vunpack.c.l.b16 %v2387
      %v2484 = vunpack.c.l.b16 %v2388
      %v2485 = vunpack.c.l.b16 %v2389
      %v2486 = vunpack.c.l.b16 %v2390
      %v2487 = vunpack.c.l.b16 %v2391
      %v2488 = vunpack.c.l.b16 %v2392
      %v2489 = vunpack.c.l.b16 %v2393
      %v2490 = vunpack.c.l.b16 %v2394
      %v2491 = vunpack.c.l.b16 %v2395
      %v2492 = vunpack.c.l.b16 %v2396
      %v2493 = vunpack.c.l.b16 %v2397
      %v2494 = vunpack.c.l.b16 %v2398
      %v2495 = vunpack.c.l.b16 %v2399
      %v2496 = vunpack.c.l.b16 %v2400
      %v2497 = vunpack.c.l.b16 %v2401
      %v2498 = vunpack.c.l.b16 %v2402
      %v2499 = vunpack.c.l.b16 %v2403
      %v2500 = vunpack.c.l.b16 %v2404
      %v2501 = vunpack.c.l.b16 %v2405
      %v2502 = vunpack.c.l.b16 %v2406
      %v2503 = vunpack.c.l.b16 %v2407
      %v2504 = vunpack.c.l.b16 %v2408
      %v2505 = vunpack.c.l.b16 %v2409
      %v2506 = vunpack.c.l.b16 %v2410
      %v2507 = vunpack.c.l.b16 %v2411
      %v2508 = vunpack.c.l.b16 %v2412
      %v2509 = vunpack.c.l.b16 %v2413
      %v2510 = vunpack.c.l.b16 %v2414
      %v2511 = vunpack.c.l.b16 %v2415
      %v2512 = vunpack.c.l.b16 %v2416
      %v2513 = vpack.c.b16 %v2466, %v2465
      %v2514 = vpack.c.b16 %v2468, %v2467
      %v2515 = vpack.c.b16 %v2470, %v2469
      %v2516 = vpack.c.b16 %v2472, %v2471
      %v2517 = vpack.c.b16 %v2474, %v2473
      %v2518 = vpack.c.b16 %v2476, %v2475
      %v2519 = vpack.c.b16 %v2478, %v2477
      %v2520 = vpack.c.b16 %v2480, %v2479
      %v2521 = vpack.c.b16 %v2482, %v2481
      %v2522 = vpack.c.b16 %v2484, %v2483
      %v2523 = vpack.c.b16 %v2486, %v2485
      %v2524 = vpack.c.b16 %v2488, %v2487
      %v2525 = vpack.c.b16 %v2490, %v2489
      %v2526 = vpack.c.b16 %v2492, %v2491
      %v2527 = vpack.c.b16 %v2494, %v2493
      %v2528 = vpack.c.b16 %v2496, %v2495
      %v2529 = vpack.c.b16 %v2498, %v2497
      %v2530 = vpack.c.b16 %v2500, %v2499
      %v2531 = vpack.c.b16 %v2502, %v2501
      %v2532 = vpack.c.b16 %v2504, %v2503
      %v2533 = vpack.c.b16 %v2506, %v2505
      %v2534 = vpack.c.b16 %v2508, %v2507
      %v2535 = vpack.c.b16 %v2510, %v2509
      %v2536 = vpack.c.b16 %v2512, %v2511
      %2561 = vmatprep.subr.bf16.mxu0 0
      %2562 = vmatpush1.bf16.msra.mxu0 %v2513
      %2563 = vmatprep.subr.bf16.mxu0 0
      %2564 = vmatpush1.bf16.msra.mxu0 %v2514
      %2565 = vmatprep.subr.bf16.mxu0 0
      %2566 = vmatpush1.bf16.msra.mxu0 %v2515
      %2567 = vmatprep.subr.bf16.mxu0 0
      %2568 = vmatpush1.bf16.msra.mxu0 %v2516
      %2569 = vmatprep.subr.bf16.mxu0 0
      %2570 = vmatpush1.bf16.msra.mxu0 %v2517
      %2571 = vmatprep.subr.bf16.mxu0 0
      %2572 = vmatpush1.bf16.msra.mxu0 %v2518
      %2573 = vmatprep.subr.bf16.mxu0 0
      %2574 = vmatpush1.bf16.msra.mxu0 %v2519
      %2575 = vmatprep.subr.bf16.mxu0 0
      %2576 = vmatpush1.bf16.msra.mxu0 %v2520
      %2577 = vmatprep.subr.bf16.mxu0 0
      %2578 = vmatpush1.bf16.msra.mxu0 %v2521
      %2579 = vmatprep.subr.bf16.mxu0 0
      %2580 = vmatpush1.bf16.msra.mxu0 %v2522
      %2581 = vmatprep.subr.bf16.mxu0 0
      %2582 = vmatpush1.bf16.msra.mxu0 %v2523
      %2583 = vmatprep.subr.bf16.mxu0 0
      %2584 = vmatpush1.bf16.msra.mxu0 %v2524
      %2585 = vmatprep.subr.bf16.mxu0 0
      %2586 = vmatpush1.bf16.msra.mxu0 %v2525
      %2587 = vmatprep.subr.bf16.mxu0 0
      %2588 = vmatpush1.bf16.msra.mxu0 %v2526
      %2589 = vmatprep.subr.bf16.mxu0 0
      %2590 = vmatpush1.bf16.msra.mxu0 %v2527
      %2591 = vmatprep.subr.bf16.mxu0 0
      %2592 = vmatpush1.bf16.msra.mxu0 %v2528
      %2593 = vmatprep.mubr.bf16.mxu0 %v2321
      %2594 = vmatmul.mubr.bf16.gmra.mrb[0].mxu0 %v2320
      %v2595 = vpop.f32.mrb[0].mxu0
      %v2596 = vadd.f32 0.0, %v2595
      %v2597 = vpop.f32.mrb[0].mxu0
      %v2598 = vpop.f32.mrb[0].mxu0
      %v2599 = vadd.f32 0.0, %v2598
      %v2600 = vpop.f32.mrb[0].mxu0
      %2601 = vmatprep.mubr.bf16.mxu0 %v2324
      %2602 = vmatmul.mubr.bf16.gmra.mrb[0].mxu0 %v2323
      %v2603 = vpop.f32.mrb[0].mxu0
      %v2604 = vadd.f32 0.0, %v2603
      %v2605 = vpop.f32.mrb[0].mxu0
      %v2606 = vpop.f32.mrb[0].mxu0
      %v2607 = vadd.f32 0.0, %v2606
      %v2608 = vpop.f32.mrb[0].mxu0
      %2609 = vmatprep.mubr.bf16.mxu0 %v2327
      %2610 = vmatmul.mubr.bf16.gmra.mrb[0].mxu0 %v2326
      %v2611 = vpop.f32.mrb[0].mxu0
      %v2612 = vadd.f32 0.0, %v2611
      %v2613 = vpop.f32.mrb[0].mxu0
      %v2614 = vpop.f32.mrb[0].mxu0
      %v2615 = vadd.f32 0.0, %v2614
      %v2616 = vpop.f32.mrb[0].mxu0
      %2617 = vmatprep.mubr.bf16.mxu0 %v2330
      %2618 = vmatmul.mubr.bf16.gmra.mrb[0].mxu0 %v2329
      %v2619 = vpop.f32.mrb[0].mxu0
      %v2620 = vadd.f32 0.0, %v2619
      %v2621 = vpop.f32.mrb[0].mxu0
      %v2622 = vpop.f32.mrb[0].mxu0
      %v2623 = vadd.f32 0.0, %v2622
      %v2624 = vpop.f32.mrb[0].mxu0
      %2625 = vmatprep.mubr.bf16.mxu0 %v2333
      %2626 = vmatmul.mubr.bf16.gmra.mrb[0].mxu0 %v2332
      %v2627 = vpop.f32.mrb[0].mxu0
      %v2628 = vadd.f32 0.0, %v2627
      %v2629 = vpop.f32.mrb[0].mxu0
      %v2630 = vpop.f32.mrb[0].mxu0
      %v2631 = vadd.f32 0.0, %v2630
      %v2632 = vpop.f32.mrb[0].mxu0
      %2633 = vmatprep.mubr.bf16.mxu0 %v2336
      %2634 = vmatmul.mubr.bf16.gmra.mrb[0].mxu0 %v2335
      %v2635 = vpop.f32.mrb[0].mxu0
      %v2636 = vadd.f32 0.0, %v2635
      %v2637 = vpop.f32.mrb[0].mxu0
      %v2638 = vpop.f32.mrb[0].mxu0
      %v2639 = vadd.f32 0.0, %v2638
      %v2640 = vpop.f32.mrb[0].mxu0
      %2641 = vmatprep.mubr.bf16.mxu0 %v2339
      %2642 = vmatmul.mubr.bf16.gmra.mrb[0].mxu0 %v2338
      %v2643 = vpop.f32.mrb[0].mxu0
      %v2644 = vadd.f32 0.0, %v2643
      %v2645 = vpop.f32.mrb[0].mxu0
      %v2646 = vpop.f32.mrb[0].mxu0
      %v2647 = vadd.f32 0.0, %v2646
      %v2648 = vpop.f32.mrb[0].mxu0
      %2649 = vmatprep.mubr.bf16.mxu0 %v2342
      %2650 = vmatmul.mubr.bf16.gmra.mrb[0].mxu0 %v2341
      %v2651 = vpop.f32.mrb[0].mxu0
      %v2652 = vadd.f32 0.0, %v2651
      %v2653 = vpop.f32.mrb[0].mxu0
      %v2654 = vpop.f32.mrb[0].mxu0
      %v2655 = vadd.f32 0.0, %v2654
      %v2656 = vpop.f32.mrb[0].mxu0
      %2657 = vmatprep.mubr.bf16.mxu0 %v2345
      %2658 = vmatmul.mubr.bf16.gmra.mrb[0].mxu0 %v2344
      %v2659 = vpop.f32.mrb[0].mxu0
      %v2660 = vadd.f32 0.0, %v2659
      %v2661 = vpop.f32.mrb[0].mxu0
      %v2662 = vpop.f32.mrb[0].mxu0
      %v2663 = vadd.f32 0.0, %v2662
      %v2664 = vpop.f32.mrb[0].mxu0
      %2665 = vmatprep.mubr.bf16.mxu0 %v2348
      %2666 = vmatmul.mubr.bf16.gmra.mrb[0].mxu0 %v2347
      %v2667 = vpop.f32.mrb[0].mxu0
      %v2668 = vadd.f32 0.0, %v2667
      %v2669 = vpop.f32.mrb[0].mxu0
      %v2670 = vpop.f32.mrb[0].mxu0
      %v2671 = vadd.f32 0.0, %v2670
      %v2672 = vpop.f32.mrb[0].mxu0
      %2673 = vmatprep.mubr.bf16.mxu0 %v2351
      %2674 = vmatmul.mubr.bf16.gmra.mrb[0].mxu0 %v2350
      %v2675 = vpop.f32.mrb[0].mxu0
      %v2676 = vadd.f32 0.0, %v2675
      %v2677 = vpop.f32.mrb[0].mxu0
      %v2678 = vpop.f32.mrb[0].mxu0
      %v2679 = vadd.f32 0.0, %v2678
      %v2680 = vpop.f32.mrb[0].mxu0
      %2681 = vmatprep.mubr.bf16.mxu0 %v2354
      %2682 = vmatmul.mubr.bf16.gmra.mrb[0].mxu0 %v2353
      %v2683 = vpop.f32.mrb[0].mxu0
      %v2684 = vadd.f32 0.0, %v2683
      %v2685 = vpop.f32.mrb[0].mxu0
      %v2686 = vpop.f32.mrb[0].mxu0
      %v2687 = vadd.f32 0.0, %v2686
      %v2688 = vpop.f32.mrb[0].mxu0
      %2689 = vmatprep.mubr.bf16.mxu0 %v2357
      %2690 = vmatmul.mubr.bf16.gmra.mrb[0].mxu0 %v2356
      %v2691 = vpop.f32.mrb[0].mxu0
      %v2692 = vadd.f32 0.0, %v2691
      %v2693 = vpop.f32.mrb[0].mxu0
      %v2694 = vpop.f32.mrb[0].mxu0
      %v2695 = vadd.f32 0.0, %v2694
      %v2696 = vpop.f32.mrb[0].mxu0
      %2697 = vmatprep.mubr.bf16.mxu0 %v2360
      %2698 = vmatmul.mubr.bf16.gmra.mrb[0].mxu0 %v2359
      %v2699 = vpop.f32.mrb[0].mxu0
      %v2700 = vadd.f32 0.0, %v2699
      %v2701 = vpop.f32.mrb[0].mxu0
      %v2702 = vpop.f32.mrb[0].mxu0
      %v2703 = vadd.f32 0.0, %v2702
      %v2704 = vpop.f32.mrb[0].mxu0
      %2705 = vmatprep.mubr.bf16.mxu0 %v2363
      %2706 = vmatmul.mubr.bf16.gmra.mrb[0].mxu0 %v2362
      %v2707 = vpop.f32.mrb[0].mxu0
      %v2708 = vadd.f32 0.0, %v2707
      %v2709 = vpop.f32.mrb[0].mxu0
      %v2710 = vpop.f32.mrb[0].mxu0
      %v2711 = vadd.f32 0.0, %v2710
      %v2712 = vpop.f32.mrb[0].mxu0
      %2713 = vmatprep.mubr.bf16.mxu0 %v2366
      %2714 = vmatmul.mubr.bf16.gmra.mrb[0].mxu0 %v2365
      %v2715 = vpop.f32.mrb[0].mxu0
      %v2716 = vadd.f32 0.0, %v2715
      %v2717 = vpop.f32.mrb[0].mxu0
      %v2718 = vpop.f32.mrb[0].mxu0
      %v2719 = vadd.f32 0.0, %v2718
      %v2720 = vpop.f32.mrb[0].mxu0
      %2721 = vdwg.mxu0
      %2722 = vmatprep.subr.bf16.mxu0 0
      %2723 = vmatpush1.bf16.msra.mxu0 %v2529
      %2724 = vmatprep.subr.bf16.mxu0 0
      %2725 = vmatpush1.bf16.msra.mxu0 %v2530
      %2726 = vmatprep.subr.bf16.mxu0 0
      %2727 = vmatpush1.bf16.msra.mxu0 %v2531
      %2728 = vmatprep.subr.bf16.mxu0 0
      %2729 = vmatpush1.bf16.msra.mxu0 %v2532
      %2730 = vmatprep.subr.bf16.mxu0 0
      %2731 = vmatpush1.bf16.msra.mxu0 %v2533
      %2732 = vmatprep.subr.bf16.mxu0 0
      %2733 = vmatpush1.bf16.msra.mxu0 %v2534
      %2734 = vmatprep.subr.bf16.mxu0 0
      %2735 = vmatpush1.bf16.msra.mxu0 %v2535
      %2736 = vmatprep.subr.bf16.mxu0 0
      %2737 = vmatpush1.bf16.msra.mxu0 %v2536
      %2738 = vmatprep.subr.bf16.mxu0 0
      %2739 = vmatpush1.bf16.msra.mxu0 0
      %2740 = vmatprep.subr.bf16.mxu0 0
      %2741 = vmatpush1.bf16.msra.mxu0 0
      %2742 = vmatprep.subr.bf16.mxu0 0
      %2743 = vmatpush1.bf16.msra.mxu0 0
      %2744 = vmatprep.subr.bf16.mxu0 0
      %2745 = vmatpush1.bf16.msra.mxu0 0
      %2746 = vmatprep.subr.bf16.mxu0 0
      %2747 = vmatpush1.bf16.msra.mxu0 0
      %2748 = vmatprep.subr.bf16.mxu0 0
      %2749 = vmatpush1.bf16.msra.mxu0 0
      %2750 = vmatprep.subr.bf16.mxu0 0
      %2751 = vmatpush1.bf16.msra.mxu0 0
      %2752 = vmatprep.subr.bf16.mxu0 0
      %2753 = vmatpush1.bf16.msra.mxu0 0
      %2754 = vmatprep.mubr.bf16.mxu0 0
      %2755 = vmatmul.mubr.bf16.gmra.mrb[0].mxu0 %v2322
      %v2756 = vpop.f32.mrb[0].mxu0
      %v2757 = vadd.f32 %v2596, %v2756
      %v2758 = vpop.f32.mrb[0].mxu0
      %v2759 = vpop.f32.mrb[0].mxu0
      %v2760 = vadd.f32 %v2599, %v2759
      %v2761 = vpop.f32.mrb[0].mxu0
      %2762 = vmatprep.mubr.bf16.mxu0 0
      %2763 = vmatmul.mubr.bf16.gmra.mrb[0].mxu0 %v2325
      %v2764 = vpop.f32.mrb[0].mxu0
      %v2765 = vadd.f32 %v2604, %v2764
      %v2766 = vpop.f32.mrb[0].mxu0
      %v2767 = vpop.f32.mrb[0].mxu0
      %v2768 = vadd.f32 %v2607, %v2767
      %v2769 = vpop.f32.mrb[0].mxu0
      %2770 = vmatprep.mubr.bf16.mxu0 0
      %2771 = vmatmul.mubr.bf16.gmra.mrb[0].mxu0 %v2328
      %v2772 = vpop.f32.mrb[0].mxu0
      %v2773 = vadd.f32 %v2612, %v2772
      %v2774 = vpop.f32.mrb[0].mxu0
      %v2775 = vpop.f32.mrb[0].mxu0
      %v2776 = vadd.f32 %v2615, %v2775
      %v2777 = vpop.f32.mrb[0].mxu0
      %2778 = vmatprep.mubr.bf16.mxu0 0
      %2779 = vmatmul.mubr.bf16.gmra.mrb[0].mxu0 %v2331
      %v2780 = vpop.f32.mrb[0].mxu0
      %v2781 = vadd.f32 %v2620, %v2780
      %v2782 = vpop.f32.mrb[0].mxu0
      %v2783 = vpop.f32.mrb[0].mxu0
      %v2784 = vadd.f32 %v2623, %v2783
      %v2785 = vpop.f32.mrb[0].mxu0
      %2786 = vmatprep.mubr.bf16.mxu0 0
      %2787 = vmatmul.mubr.bf16.gmra.mrb[0].mxu0 %v2334
      %v2788 = vpop.f32.mrb[0].mxu0
      %v2789 = vadd.f32 %v2628, %v2788
      %v2790 = vpop.f32.mrb[0].mxu0
      %v2791 = vpop.f32.mrb[0].mxu0
      %v2792 = vadd.f32 %v2631, %v2791
      %v2793 = vpop.f32.mrb[0].mxu0
      %2794 = vmatprep.mubr.bf16.mxu0 0
      %2795 = vmatmul.mubr.bf16.gmra.mrb[0].mxu0 %v2337
      %v2796 = vpop.f32.mrb[0].mxu0
      %v2797 = vadd.f32 %v2636, %v2796
      %v2798 = vpop.f32.mrb[0].mxu0
      %v2799 = vpop.f32.mrb[0].mxu0
      %v2800 = vadd.f32 %v2639, %v2799
      %v2801 = vpop.f32.mrb[0].mxu0
      %2802 = vmatprep.mubr.bf16.mxu0 0
      %2803 = vmatmul.mubr.bf16.gmra.mrb[0].mxu0 %v2340
      %v2804 = vpop.f32.mrb[0].mxu0
      %v2805 = vadd.f32 %v2644, %v2804
      %v2806 = vpop.f32.mrb[0].mxu0
      %v2807 = vpop.f32.mrb[0].mxu0
      %v2808 = vadd.f32 %v2647, %v2807
      %v2809 = vpop.f32.mrb[0].mxu0
      %2810 = vmatprep.mubr.bf16.mxu0 0
      %2811 = vmatmul.mubr.bf16.gmra.mrb[0].mxu0 %v2343
      %v2812 = vpop.f32.mrb[0].mxu0
      %v2813 = vadd.f32 %v2652, %v2812
      %v2814 = vpop.f32.mrb[0].mxu0
      %v2815 = vpop.f32.mrb[0].mxu0
      %v2816 = vadd.f32 %v2655, %v2815
      %v2817 = vpop.f32.mrb[0].mxu0
      %2818 = vmatprep.mubr.bf16.mxu0 0
      %2819 = vmatmul.mubr.bf16.gmra.mrb[0].mxu0 %v2346
      %v2820 = vpop.f32.mrb[0].mxu0
      %v2821 = vadd.f32 %v2660, %v2820
      %v2822 = vpop.f32.mrb[0].mxu0
      %v2823 = vpop.f32.mrb[0].mxu0
      %v2824 = vadd.f32 %v2663, %v2823
      %v2825 = vpop.f32.mrb[0].mxu0
      %2826 = vmatprep.mubr.bf16.mxu0 0
      %2827 = vmatmul.mubr.bf16.gmra.mrb[0].mxu0 %v2349
      %v2828 = vpop.f32.mrb[0].mxu0
      %v2829 = vadd.f32 %v2668, %v2828
      %v2830 = vpop.f32.mrb[0].mxu0
      %v2831 = vpop.f32.mrb[0].mxu0
      %v2832 = vadd.f32 %v2671, %v2831
      %v2833 = vpop.f32.mrb[0].mxu0
      %2834 = vmatprep.mubr.bf16.mxu0 0
      %2835 = vmatmul.mubr.bf16.gmra.mrb[0].mxu0 %v2352
      %v2836 = vpop.f32.mrb[0].mxu0
      %v2837 = vadd.f32 %v2676, %v2836
      %v2838 = vpop.f32.mrb[0].mxu0
      %v2839 = vpop.f32.mrb[0].mxu0
      %v2840 = vadd.f32 %v2679, %v2839
      %v2841 = vpop.f32.mrb[0].mxu0
      %2842 = vmatprep.mubr.bf16.mxu0 0
      %2843 = vmatmul.mubr.bf16.gmra.mrb[0].mxu0 %v2355
      %v2844 = vpop.f32.mrb[0].mxu0
      %v2845 = vadd.f32 %v2684, %v2844
      %v2846 = vpop.f32.mrb[0].mxu0
      %v2847 = vpop.f32.mrb[0].mxu0
      %v2848 = vadd.f32 %v2687, %v2847
      %v2849 = vpop.f32.mrb[0].mxu0
      %2850 = vmatprep.mubr.bf16.mxu0 0
      %2851 = vmatmul.mubr.bf16.gmra.mrb[0].mxu0 %v2358
      %v2852 = vpop.f32.mrb[0].mxu0
      %v2853 = vadd.f32 %v2692, %v2852
      %v2854 = vpop.f32.mrb[0].mxu0
      %v2855 = vpop.f32.mrb[0].mxu0
      %v2856 = vadd.f32 %v2695, %v2855
      %v2857 = vpop.f32.mrb[0].mxu0
      %2858 = vmatprep.mubr.bf16.mxu0 0
      %2859 = vmatmul.mubr.bf16.gmra.mrb[0].mxu0 %v2361
      %v2860 = vpop.f32.mrb[0].mxu0
      %v2861 = vadd.f32 %v2700, %v2860
      %v2862 = vpop.f32.mrb[0].mxu0
      %v2863 = vpop.f32.mrb[0].mxu0
      %v2864 = vadd.f32 %v2703, %v2863
      %v2865 = vpop.f32.mrb[0].mxu0
      %2866 = vmatprep.mubr.bf16.mxu0 0
      %2867 = vmatmul.mubr.bf16.gmra.mrb[0].mxu0 %v2364
      %v2868 = vpop.f32.mrb[0].mxu0
      %v2869 = vadd.f32 %v2708, %v2868
      %v2870 = vpop.f32.mrb[0].mxu0
      %v2871 = vpop.f32.mrb[0].mxu0
      %v2872 = vadd.f32 %v2711, %v2871
      %v2873 = vpop.f32.mrb[0].mxu0
      %2874 = vmatprep.mubr.bf16.mxu0 0
      %2875 = vmatmul.mubr.bf16.gmra.mrb[0].mxu0 %v2367
      %v2876 = vpop.f32.mrb[0].mxu0
      %v2877 = vadd.f32 %v2716, %v2876
      %v2878 = vpop.f32.mrb[0].mxu0
      %v2879 = vpop.f32.mrb[0].mxu0
      %v2880 = vadd.f32 %v2719, %v2879
      %v2881 = vpop.f32.mrb[0].mxu0
      %2882 = vdwg.mxu0
      %v2883 = vadd.f32 %v2193, %v2757
      %v2884 = vadd.f32 %v2196, %v2760
      %v2885 = vadd.f32 %v2201, %v2765
      %v2886 = vadd.f32 %v2204, %v2768
      %v2887 = vadd.f32 %v2209, %v2773
      %v2888 = vadd.f32 %v2212, %v2776
      %v2889 = vadd.f32 %v2217, %v2781
      %v2890 = vadd.f32 %v2220, %v2784
      %v2891 = vadd.f32 %v2225, %v2789
      %v2892 = vadd.f32 %v2228, %v2792
      %v2893 = vadd.f32 %v2233, %v2797
      %v2894 = vadd.f32 %v2236, %v2800
      %v2895 = vadd.f32 %v2241, %v2805
      %v2896 = vadd.f32 %v2244, %v2808
      %v2897 = vadd.f32 %v2249, %v2813
      %v2898 = vadd.f32 %v2252, %v2816
      %v2899 = vadd.f32 %v2257, %v2821
      %v2900 = vadd.f32 %v2260, %v2824
      %v2901 = vadd.f32 %v2265, %v2829
      %v2902 = vadd.f32 %v2268, %v2832
      %v2903 = vadd.f32 %v2273, %v2837
      %v2904 = vadd.f32 %v2276, %v2840
      %v2905 = vadd.f32 %v2281, %v2845
      %v2906 = vadd.f32 %v2284, %v2848
      %v2907 = vadd.f32 %v2289, %v2853
      %v2908 = vadd.f32 %v2292, %v2856
      %v2909 = vadd.f32 %v2297, %v2861
      %v2910 = vadd.f32 %v2300, %v2864
      %v2911 = vadd.f32 %v2305, %v2869
      %v2912 = vadd.f32 %v2308, %v2872
      %v2913 = vadd.f32 %v2313, %v2877
      %v2914 = vadd.f32 %v2316, %v2880
      %v2916 = vlaneseq
      %v2917 = vshrl.u32 %v2916, 7
      %v2918 = vsub.s32 0, %v2917
      %v2919 = vrot.slane %v280, %v2918
      %v2921 = vmul.f32 %v2883, %v2919
      %v2922 = vmul.f32 %v2884, %v2919
      %v2923 = vmul.f32 %v2885, %v2919
      %v2924 = vmul.f32 %v2886, %v2919
      %v2925 = vmul.f32 %v2887, %v2919
      %v2926 = vmul.f32 %v2888, %v2919
      %v2927 = vmul.f32 %v2889, %v2919
      %v2928 = vmul.f32 %v2890, %v2919
      %v2929 = vmul.f32 %v2891, %v2919
      %v2930 = vmul.f32 %v2892, %v2919
      %v2931 = vmul.f32 %v2893, %v2919
      %v2932 = vmul.f32 %v2894, %v2919
      %v2933 = vmul.f32 %v2895, %v2919
      %v2934 = vmul.f32 %v2896, %v2919
      %v2935 = vmul.f32 %v2897, %v2919
      %v2936 = vmul.f32 %v2898, %v2919
      %v2937 = vmul.f32 %v2899, %v2919
      %v2938 = vmul.f32 %v2900, %v2919
      %v2939 = vmul.f32 %v2901, %v2919
      %v2940 = vmul.f32 %v2902, %v2919
      %v2941 = vmul.f32 %v2903, %v2919
      %v2942 = vmul.f32 %v2904, %v2919
      %v2943 = vmul.f32 %v2905, %v2919
      %v2944 = vmul.f32 %v2906, %v2919
      %v2945 = vmul.f32 %v2907, %v2919
      %v2946 = vmul.f32 %v2908, %v2919
      %v2947 = vmul.f32 %v2909, %v2919
      %v2948 = vmul.f32 %v2910, %v2919
      %v2949 = vmul.f32 %v2911, %v2919
      %v2950 = vmul.f32 %v2912, %v2919
      %v2951 = vmul.f32 %v2913, %v2919
      %v2952 = vmul.f32 %v2914, %v2919
      %v2954 = vlaneseq
      %v2955 = vshrl.u32 %v2954, 7
      %v2956 = vsub.s32 0, %v2955
      %v2957 = vrot.slane %v281, %v2956
      %v2959 = vadd.f32 %v2921, %v2957
      %v2960 = vadd.f32 %v2922, %v2957
      %v2961 = vadd.f32 %v2923, %v2957
      %v2962 = vadd.f32 %v2924, %v2957
      %v2963 = vadd.f32 %v2925, %v2957
      %v2964 = vadd.f32 %v2926, %v2957
      %v2965 = vadd.f32 %v2927, %v2957
      %v2966 = vadd.f32 %v2928, %v2957
      %v2967 = vadd.f32 %v2929, %v2957
      %v2968 = vadd.f32 %v2930, %v2957
      %v2969 = vadd.f32 %v2931, %v2957
      %v2970 = vadd.f32 %v2932, %v2957
      %v2971 = vadd.f32 %v2933, %v2957
      %v2972 = vadd.f32 %v2934, %v2957
      %v2973 = vadd.f32 %v2935, %v2957
      %v2974 = vadd.f32 %v2936, %v2957
      %v2975 = vadd.f32 %v2937, %v2957
      %v2976 = vadd.f32 %v2938, %v2957
      %v2977 = vadd.f32 %v2939, %v2957
      %v2978 = vadd.f32 %v2940, %v2957
      %v2979 = vadd.f32 %v2941, %v2957
      %v2980 = vadd.f32 %v2942, %v2957
      %v2981 = vadd.f32 %v2943, %v2957
      %v2982 = vadd.f32 %v2944, %v2957
      %v2983 = vadd.f32 %v2945, %v2957
      %v2984 = vadd.f32 %v2946, %v2957
      %v2985 = vadd.f32 %v2947, %v2957
      %v2986 = vadd.f32 %v2948, %v2957
      %v2987 = vadd.f32 %v2949, %v2957
      %v2988 = vadd.f32 %v2950, %v2957
      %v2989 = vadd.f32 %v2951, %v2957
      %v2990 = vadd.f32 %v2952, %v2957
      %v2991 = vmax.f32 %v2959, 0.0
      %v2992 = vmax.f32 %v2960, 0.0
      %v2993 = vmax.f32 %v2961, 0.0
      %v2994 = vmax.f32 %v2962, 0.0
      %v2995 = vmax.f32 %v2963, 0.0
      %v2996 = vmax.f32 %v2964, 0.0
      %v2997 = vmax.f32 %v2965, 0.0
      %v2998 = vmax.f32 %v2966, 0.0
      %v2999 = vmax.f32 %v2967, 0.0
      %v3000 = vmax.f32 %v2968, 0.0
      %v3001 = vmax.f32 %v2969, 0.0
      %v3002 = vmax.f32 %v2970, 0.0
      %v3003 = vmax.f32 %v2971, 0.0
      %v3004 = vmax.f32 %v2972, 0.0
      %v3005 = vmax.f32 %v2973, 0.0
      %v3006 = vmax.f32 %v2974, 0.0
      %v3007 = vmax.f32 %v2975, 0.0
      %v3008 = vmax.f32 %v2976, 0.0
      %v3009 = vmax.f32 %v2977, 0.0
      %v3010 = vmax.f32 %v2978, 0.0
      %v3011 = vmax.f32 %v2979, 0.0
      %v3012 = vmax.f32 %v2980, 0.0
      %v3013 = vmax.f32 %v2981, 0.0
      %v3014 = vmax.f32 %v2982, 0.0
      %v3015 = vmax.f32 %v2983, 0.0
      %v3016 = vmax.f32 %v2984, 0.0
      %v3017 = vmax.f32 %v2985, 0.0
      %v3018 = vmax.f32 %v2986, 0.0
      %v3019 = vmax.f32 %v2987, 0.0
      %v3020 = vmax.f32 %v2988, 0.0
      %v3021 = vmax.f32 %v2989, 0.0
      %v3022 = vmax.f32 %v2990, 0.0
      %v3023 = vpack.c.bf16 %v2992, %v2991
      %v3024 = vpack.c.bf16 %v2994, %v2993
      %v3025 = vpack.c.bf16 %v2996, %v2995
      %v3026 = vpack.c.bf16 %v2998, %v2997
      %v3027 = vpack.c.bf16 %v3000, %v2999
      %v3028 = vpack.c.bf16 %v3002, %v3001
      %v3029 = vpack.c.bf16 %v3004, %v3003
      %v3030 = vpack.c.bf16 %v3006, %v3005
      %v3031 = vpack.c.bf16 %v3008, %v3007
      %v3032 = vpack.c.bf16 %v3010, %v3009
      %v3033 = vpack.c.bf16 %v3012, %v3011
      %v3034 = vpack.c.bf16 %v3014, %v3013
      %v3035 = vpack.c.bf16 %v3016, %v3015
      %v3036 = vpack.c.bf16 %v3018, %v3017
      %v3037 = vpack.c.bf16 %v3020, %v3019
      %v3038 = vpack.c.bf16 %v3022, %v3021
      %v3040 = vshrl.u32 %v3023, 16
      %v3042 = vrot.slane %v3040, 7
      %v3043 = vshll.u32 %v3023, 16
      %v3045 = vor.u32 %v3042, %v3043
      %v3047 = vshrl.u32 %v3024, 16
      %v3049 = vrot.slane %v3047, 7
      %v3050 = vshll.u32 %v3024, 16
      %v3052 = vor.u32 %v3049, %v3050
      %v3054 = vshrl.u32 %v3025, 16
      %v3056 = vrot.slane %v3054, 7
      %v3057 = vshll.u32 %v3025, 16
      %v3059 = vor.u32 %v3056, %v3057
      %v3061 = vshrl.u32 %v3026, 16
      %v3063 = vrot.slane %v3061, 7
      %v3064 = vshll.u32 %v3026, 16
      %v3066 = vor.u32 %v3063, %v3064
      %v3068 = vshrl.u32 %v3027, 16
      %v3070 = vrot.slane %v3068, 7
      %v3071 = vshll.u32 %v3027, 16
      %v3073 = vor.u32 %v3070, %v3071
      %v3075 = vshrl.u32 %v3028, 16
      %v3077 = vrot.slane %v3075, 7
      %v3078 = vshll.u32 %v3028, 16
      %v3080 = vor.u32 %v3077, %v3078
      %v3082 = vshrl.u32 %v3029, 16
      %v3084 = vrot.slane %v3082, 7
      %v3085 = vshll.u32 %v3029, 16
      %v3087 = vor.u32 %v3084, %v3085
      %v3089 = vshrl.u32 %v3030, 16
      %v3091 = vrot.slane %v3089, 7
      %v3092 = vshll.u32 %v3030, 16
      %v3094 = vor.u32 %v3091, %v3092
      %v3096 = vshrl.u32 %v3031, 16
      %v3098 = vrot.slane %v3096, 7
      %v3099 = vshll.u32 %v3031, 16
      %v3101 = vor.u32 %v3098, %v3099
      %v3103 = vshrl.u32 %v3032, 16
      %v3105 = vrot.slane %v3103, 7
      %v3106 = vshll.u32 %v3032, 16
      %v3108 = vor.u32 %v3105, %v3106
      %v3110 = vshrl.u32 %v3033, 16
      %v3112 = vrot.slane %v3110, 7
      %v3113 = vshll.u32 %v3033, 16
      %v3115 = vor.u32 %v3112, %v3113
      %v3117 = vshrl.u32 %v3034, 16
      %v3119 = vrot.slane %v3117, 7
      %v3120 = vshll.u32 %v3034, 16
      %v3122 = vor.u32 %v3119, %v3120
      %v3124 = vshrl.u32 %v3035, 16
      %v3126 = vrot.slane %v3124, 7
      %v3127 = vshll.u32 %v3035, 16
      %v3129 = vor.u32 %v3126, %v3127
      %v3131 = vshrl.u32 %v3036, 16
      %v3133 = vrot.slane %v3131, 7
      %v3134 = vshll.u32 %v3036, 16
      %v3136 = vor.u32 %v3133, %v3134
      %v3138 = vshrl.u32 %v3037, 16
      %v3140 = vrot.slane %v3138, 7
      %v3141 = vshll.u32 %v3037, 16
      %v3143 = vor.u32 %v3140, %v3141
      %v3145 = vshrl.u32 %v3038, 16
      %v3147 = vrot.slane %v3145, 7
      %v3148 = vshll.u32 %v3038, 16
      %v3150 = vor.u32 %v3147, %v3148
      %vm3183 = vcmask 1040384
      %vm3184 = vsmask.f32 256
      %vm3185 = vmand %vm3183, %vm3184
      %v3186 = vsel %vm3185, 0, %v3045
      %v3187 = vsel %vm3185, 0, %v3052
      %v3188 = vsel %vm3185, 0, %v3059
      %v3189 = vsel %vm3185, 0, %v3066
      %v3190 = vsel %vm3185, 0, %v3073
      %v3191 = vsel %vm3185, 0, %v3080
      %v3192 = vsel %vm3185, 0, %v3087
      %v3193 = vsel %vm3185, 0, %v3094
      %v3194 = vsel %vm3185, 0, %v3101
      %v3195 = vsel %vm3185, 0, %v3108
      %v3196 = vsel %vm3185, 0, %v3115
      %v3197 = vsel %vm3185, 0, %v3122
      %v3198 = vsel %vm3185, 0, %v3129
      %v3199 = vsel %vm3185, 0, %v3136
      %v3200 = vsel %vm3185, 0, %v3143
      %v3201 = vsel %vm3185, 0, %v3150
      %v3202 = vsel %vm3185, %v3042, 0
      %v3203 = vsel %vm3185, %v3049, 0
      %v3204 = vsel %vm3185, %v3056, 0
      %v3205 = vsel %vm3185, %v3063, 0
      %v3206 = vsel %vm3185, %v3070, 0
      %v3207 = vsel %vm3185, %v3077, 0
      %v3208 = vsel %vm3185, %v3084, 0
      %v3209 = vsel %vm3185, %v3091, 0
      %v3210 = vsel %vm3185, %v3098, 0
      %v3211 = vsel %vm3185, %v3105, 0
      %v3212 = vsel %vm3185, %v3112, 0
      %v3213 = vsel %vm3185, %v3119, 0
      %v3214 = vsel %vm3185, %v3126, 0
      %v3215 = vsel %vm3185, %v3133, 0
      %v3216 = vsel %vm3185, %v3140, 0
      %v3217 = vsel %vm3185, %v3147, 0
      %v3250 = vunpack.c.l.b16 %v3186
      %v3251 = vunpack.c.h.b16 %v3186
      %v3252 = vunpack.c.l.b16 %v3202
      %v3253 = vunpack.c.l.b16 %v3187
      %v3254 = vunpack.c.h.b16 %v3187
      %v3255 = vunpack.c.l.b16 %v3203
      %v3256 = vunpack.c.l.b16 %v3188
      %v3257 = vunpack.c.h.b16 %v3188
      %v3258 = vunpack.c.l.b16 %v3204
      %v3259 = vunpack.c.l.b16 %v3189
      %v3260 = vunpack.c.h.b16 %v3189
      %v3261 = vunpack.c.l.b16 %v3205
      %v3262 = vunpack.c.l.b16 %v3190
      %v3263 = vunpack.c.h.b16 %v3190
      %v3264 = vunpack.c.l.b16 %v3206
      %v3265 = vunpack.c.l.b16 %v3191
      %v3266 = vunpack.c.h.b16 %v3191
      %v3267 = vunpack.c.l.b16 %v3207
      %v3268 = vunpack.c.l.b16 %v3192
      %v3269 = vunpack.c.h.b16 %v3192
      %v3270 = vunpack.c.l.b16 %v3208
      %v3271 = vunpack.c.l.b16 %v3193
      %v3272 = vunpack.c.h.b16 %v3193
      %v3273 = vunpack.c.l.b16 %v3209
      %v3274 = vunpack.c.l.b16 %v3194
      %v3275 = vunpack.c.h.b16 %v3194
      %v3276 = vunpack.c.l.b16 %v3210
      %v3277 = vunpack.c.l.b16 %v3195
      %v3278 = vunpack.c.h.b16 %v3195
      %v3279 = vunpack.c.l.b16 %v3211
      %v3280 = vunpack.c.l.b16 %v3196
      %v3281 = vunpack.c.h.b16 %v3196
      %v3282 = vunpack.c.l.b16 %v3212
      %v3283 = vunpack.c.l.b16 %v3197
      %v3284 = vunpack.c.h.b16 %v3197
      %v3285 = vunpack.c.l.b16 %v3213
      %v3286 = vunpack.c.l.b16 %v3198
      %v3287 = vunpack.c.h.b16 %v3198
      %v3288 = vunpack.c.l.b16 %v3214
      %v3289 = vunpack.c.l.b16 %v3199
      %v3290 = vunpack.c.h.b16 %v3199
      %v3291 = vunpack.c.l.b16 %v3215
      %v3292 = vunpack.c.l.b16 %v3200
      %v3293 = vunpack.c.h.b16 %v3200
      %v3294 = vunpack.c.l.b16 %v3216
      %v3295 = vunpack.c.l.b16 %v3201
      %v3296 = vunpack.c.h.b16 %v3201
      %v3297 = vunpack.c.l.b16 %v3217
      %v3298 = vpack.c.b16 %v3250, %v3250
      %v3299 = vpack.c.b16 %v3251, %v3251
      %v3300 = vpack.c.b16 %v3252, %v3252
      %v3301 = vpack.c.b16 %v3253, %v3253
      %v3302 = vpack.c.b16 %v3254, %v3254
      %v3303 = vpack.c.b16 %v3255, %v3255
      %v3304 = vpack.c.b16 %v3256, %v3256
      %v3305 = vpack.c.b16 %v3257, %v3257
      %v3306 = vpack.c.b16 %v3258, %v3258
      %v3307 = vpack.c.b16 %v3259, %v3259
      %v3308 = vpack.c.b16 %v3260, %v3260
      %v3309 = vpack.c.b16 %v3261, %v3261
      %v3310 = vpack.c.b16 %v3262, %v3262
      %v3311 = vpack.c.b16 %v3263, %v3263
      %v3312 = vpack.c.b16 %v3264, %v3264
      %v3313 = vpack.c.b16 %v3265, %v3265
      %v3314 = vpack.c.b16 %v3266, %v3266
      %v3315 = vpack.c.b16 %v3267, %v3267
      %v3316 = vpack.c.b16 %v3268, %v3268
      %v3317 = vpack.c.b16 %v3269, %v3269
      %v3318 = vpack.c.b16 %v3270, %v3270
      %v3319 = vpack.c.b16 %v3271, %v3271
      %v3320 = vpack.c.b16 %v3272, %v3272
      %v3321 = vpack.c.b16 %v3273, %v3273
      %v3322 = vpack.c.b16 %v3274, %v3274
      %v3323 = vpack.c.b16 %v3275, %v3275
      %v3324 = vpack.c.b16 %v3276, %v3276
      %v3325 = vpack.c.b16 %v3277, %v3277
      %v3326 = vpack.c.b16 %v3278, %v3278
      %v3327 = vpack.c.b16 %v3279, %v3279
      %v3328 = vpack.c.b16 %v3280, %v3280
      %v3329 = vpack.c.b16 %v3281, %v3281
      %v3330 = vpack.c.b16 %v3282, %v3282
      %v3331 = vpack.c.b16 %v3283, %v3283
      %v3332 = vpack.c.b16 %v3284, %v3284
      %v3333 = vpack.c.b16 %v3285, %v3285
      %v3334 = vpack.c.b16 %v3286, %v3286
      %v3335 = vpack.c.b16 %v3287, %v3287
      %v3336 = vpack.c.b16 %v3288, %v3288
      %v3337 = vpack.c.b16 %v3289, %v3289
      %v3338 = vpack.c.b16 %v3290, %v3290
      %v3339 = vpack.c.b16 %v3291, %v3291
      %v3340 = vpack.c.b16 %v3292, %v3292
      %v3341 = vpack.c.b16 %v3293, %v3293
      %v3342 = vpack.c.b16 %v3294, %v3294
      %v3343 = vpack.c.b16 %v3295, %v3295
      %v3344 = vpack.c.b16 %v3296, %v3296
      %v3345 = vpack.c.b16 %v3297, %v3297
      %s3394 = scalar_lea.vmem [#allocation2], 12
      %3395 = vst [vmem:[%s3394] sm:$0xf] %v3298
      %3396 = vst [vmem:[%s3394 + $0x4] sm:$0xf] %v3299
      %3397 = vst [vmem:[%s3394 + $0x8] sm:$0x1] %v3300
      %3398 = vst [vmem:[%s3394 + $0xc] sm:$0xf] %v3301
      %3399 = vst [vmem:[%s3394 + $0x10] sm:$0xf] %v3302
      %3400 = vst [vmem:[%s3394 + $0x14] sm:$0x1] %v3303
      %3401 = vst [vmem:[%s3394 + $0x18] sm:$0xf] %v3304
      %3402 = vst [vmem:[%s3394 + $0x1c] sm:$0xf] %v3305
      %3403 = vst [vmem:[%s3394 + $0x20] sm:$0x1] %v3306
      %3404 = vst [vmem:[%s3394 + $0x24] sm:$0xf] %v3307
      %3405 = vst [vmem:[%s3394 + $0x28] sm:$0xf] %v3308
      %3406 = vst [vmem:[%s3394 + $0x2c] sm:$0x1] %v3309
      %3407 = vst [vmem:[%s3394 + $0x30] sm:$0xf] %v3310
      %3408 = vst [vmem:[%s3394 + $0x34] sm:$0xf] %v3311
      %3409 = vst [vmem:[%s3394 + $0x38] sm:$0x1] %v3312
      %3410 = vst [vmem:[%s3394 + $0x3c] sm:$0xf] %v3313
      %3411 = vst [vmem:[%s3394 + $0x40] sm:$0xf] %v3314
      %3412 = vst [vmem:[%s3394 + $0x44] sm:$0x1] %v3315
      %3413 = vst [vmem:[%s3394 + $0x48] sm:$0xf] %v3316
      %3414 = vst [vmem:[%s3394 + $0x4c] sm:$0xf] %v3317
      %3415 = vst [vmem:[%s3394 + $0x50] sm:$0x1] %v3318
      %3416 = vst [vmem:[%s3394 + $0x54] sm:$0xf] %v3319
      %3417 = vst [vmem:[%s3394 + $0x58] sm:$0xf] %v3320
      %3418 = vst [vmem:[%s3394 + $0x5c] sm:$0x1] %v3321
      %3419 = vst [vmem:[%s3394 + $0x60] sm:$0xf] %v3322
      %3420 = vst [vmem:[%s3394 + $0x64] sm:$0xf] %v3323
      %3421 = vst [vmem:[%s3394 + $0x68] sm:$0x1] %v3324
      %3422 = vst [vmem:[%s3394 + $0x6c] sm:$0xf] %v3325
      %3423 = vst [vmem:[%s3394 + $0x70] sm:$0xf] %v3326
      %3424 = vst [vmem:[%s3394 + $0x74] sm:$0x1] %v3327
      %3425 = vst [vmem:[%s3394 + $0x78] sm:$0xf] %v3328
      %3426 = vst [vmem:[%s3394 + $0x7c] sm:$0xf] %v3329
      %3427 = vst [vmem:[%s3394 + $0x80] sm:$0x1] %v3330
      %3428 = vst [vmem:[%s3394 + $0x84] sm:$0xf] %v3331
      %3429 = vst [vmem:[%s3394 + $0x88] sm:$0xf] %v3332
      %3430 = vst [vmem:[%s3394 + $0x8c] sm:$0x1] %v3333
      %3431 = vst [vmem:[%s3394 + $0x90] sm:$0xf] %v3334
      %3432 = vst [vmem:[%s3394 + $0x94] sm:$0xf] %v3335
      %3433 = vst [vmem:[%s3394 + $0x98] sm:$0x1] %v3336
      %3434 = vst [vmem:[%s3394 + $0x9c] sm:$0xf] %v3337
      %3435 = vst [vmem:[%s3394 + $0xa0] sm:$0xf] %v3338
      %3436 = vst [vmem:[%s3394 + $0xa4] sm:$0x1] %v3339
      %3437 = vst [vmem:[%s3394 + $0xa8] sm:$0xf] %v3340
      %3438 = vst [vmem:[%s3394 + $0xac] sm:$0xf] %v3341
      %3439 = vst [vmem:[%s3394 + $0xb0] sm:$0x1] %v3342
      %3440 = vst [vmem:[%s3394 + $0xb4] sm:$0xf] %v3343
      %3441 = vst [vmem:[%s3394 + $0xb8] sm:$0xf] %v3344
      %3442 = vst [vmem:[%s3394 + $0xbc] sm:$0x1] %v3345
      %v3443 = vld [vmem:[#allocation2] sm:$0xf]
      %v3444 = vld [vmem:[#allocation2 + $0x4] sm:$0xf]
      %v3445 = vld [vmem:[#allocation2 + $0xc] sm:$0xf]
      %v3446 = vld [vmem:[#allocation2 + $0x10] sm:$0xf]
      %v3447 = vld [vmem:[#allocation2 + $0x18] sm:$0xf]
      %v3448 = vld [vmem:[#allocation2 + $0x1c] sm:$0xf]
      %v3449 = vld [vmem:[#allocation2 + $0x24] sm:$0xf]
      %v3450 = vld [vmem:[#allocation2 + $0x28] sm:$0xf]
      %v3451 = vld [vmem:[#allocation2 + $0x30] sm:$0xf]
      %v3452 = vld [vmem:[#allocation2 + $0x34] sm:$0xf]
      %v3453 = vld [vmem:[#allocation2 + $0x3c] sm:$0xf]
      %v3454 = vld [vmem:[#allocation2 + $0x40] sm:$0xf]
      %v3455 = vld [vmem:[#allocation2 + $0x48] sm:$0xf]
      %v3456 = vld [vmem:[#allocation2 + $0x4c] sm:$0xf]
      %v3457 = vld [vmem:[#allocation2 + $0x54] sm:$0xf]
      %v3458 = vld [vmem:[#allocation2 + $0x58] sm:$0xf]
      %v3459 = vld [vmem:[#allocation2 + $0x60] sm:$0xf]
      %v3460 = vld [vmem:[#allocation2 + $0x64] sm:$0xf]
      %v3461 = vld [vmem:[#allocation2 + $0x6c] sm:$0xf]
      %v3462 = vld [vmem:[#allocation2 + $0x70] sm:$0xf]
      %v3463 = vld [vmem:[#allocation2 + $0x78] sm:$0xf]
      %v3464 = vld [vmem:[#allocation2 + $0x7c] sm:$0xf]
      %v3465 = vld [vmem:[#allocation2 + $0x84] sm:$0xf]
      %v3466 = vld [vmem:[#allocation2 + $0x88] sm:$0xf]
      %v3467 = vld [vmem:[#allocation2 + $0x90] sm:$0xf]
      %v3468 = vld [vmem:[#allocation2 + $0x94] sm:$0xf]
      %v3469 = vld [vmem:[#allocation2 + $0x9c] sm:$0xf]
      %v3470 = vld [vmem:[#allocation2 + $0xa0] sm:$0xf]
      %v3471 = vld [vmem:[#allocation2 + $0xa8] sm:$0xf]
      %v3472 = vld [vmem:[#allocation2 + $0xac] sm:$0xf]
      %v3473 = vld [vmem:[#allocation2 + $0xb4] sm:$0xf]
      %v3474 = vld [vmem:[#allocation2 + $0xb8] sm:$0xf]
      %v3475 = vld [vmem:[#allocation2 + $0xc0] sm:$0xf]
      %v3476 = vld [vmem:[#allocation2 + $0xc4] sm:$0xf]
      %v3477 = vld [vmem:[#allocation2 + $0xcc] sm:$0xf]
      %v3478 = vld [vmem:[#allocation2 + $0xd0] sm:$0xf]
      %v3515 = vunpack.c.l.b16 %v3443
      %v3516 = vunpack.c.l.b16 %v3444
      %v3517 = vunpack.c.l.b16 %v3445
      %v3518 = vunpack.c.l.b16 %v3446
      %v3519 = vunpack.c.l.b16 %v3447
      %v3520 = vunpack.c.l.b16 %v3448
      %v3521 = vunpack.c.l.b16 %v3449
      %v3522 = vunpack.c.l.b16 %v3450
      %v3523 = vunpack.c.l.b16 %v3451
      %v3524 = vunpack.c.l.b16 %v3452
      %v3525 = vunpack.c.l.b16 %v3453
      %v3526 = vunpack.c.l.b16 %v3454
      %v3527 = vunpack.c.l.b16 %v3455
      %v3528 = vunpack.c.l.b16 %v3456
      %v3529 = vunpack.c.l.b16 %v3457
      %v3530 = vunpack.c.l.b16 %v3458
      %v3531 = vunpack.c.l.b16 %v3459
      %v3532 = vunpack.c.l.b16 %v3460
      %v3533 = vunpack.c.l.b16 %v3461
      %v3534 = vunpack.c.l.b16 %v3462
      %v3535 = vunpack.c.l.b16 %v3463
      %v3536 = vunpack.c.l.b16 %v3464
      %v3537 = vunpack.c.l.b16 %v3465
      %v3538 = vunpack.c.l.b16 %v3466
      %v3539 = vunpack.c.l.b16 %v3467
      %v3540 = vunpack.c.l.b16 %v3468
      %v3541 = vunpack.c.l.b16 %v3469
      %v3542 = vunpack.c.l.b16 %v3470
      %v3543 = vunpack.c.l.b16 %v3471
      %v3544 = vunpack.c.l.b16 %v3472
      %v3545 = vunpack.c.l.b16 %v3473
      %v3546 = vunpack.c.l.b16 %v3474
      %v3547 = vunpack.c.l.b16 %v3475
      %v3548 = vunpack.c.l.b16 %v3476
      %v3549 = vunpack.c.l.b16 %v3477
      %v3550 = vunpack.c.l.b16 %v3478
      %v3551 = vpack.c.b16 %v3516, %v3515
      %v3552 = vpack.c.b16 %v3518, %v3517
      %v3553 = vpack.c.b16 %v3520, %v3519
      %v3554 = vpack.c.b16 %v3522, %v3521
      %v3555 = vpack.c.b16 %v3524, %v3523
      %v3556 = vpack.c.b16 %v3526, %v3525
      %v3557 = vpack.c.b16 %v3528, %v3527
      %v3558 = vpack.c.b16 %v3530, %v3529
      %v3559 = vpack.c.b16 %v3532, %v3531
      %v3560 = vpack.c.b16 %v3534, %v3533
      %v3561 = vpack.c.b16 %v3536, %v3535
      %v3562 = vpack.c.b16 %v3538, %v3537
      %v3563 = vpack.c.b16 %v3540, %v3539
      %v3564 = vpack.c.b16 %v3542, %v3541
      %v3565 = vpack.c.b16 %v3544, %v3543
      %v3566 = vpack.c.b16 %v3546, %v3545
      %v3567 = vpack.c.b16 %v3548, %v3547
      %v3568 = vpack.c.b16 %v3550, %v3549
      %3587 = vst [vmem:[#allocation3] sm:$0xff] %v3551
      %3588 = vst [vmem:[#allocation3 + $0x18] sm:$0xff] %v3552
      %3589 = vst [vmem:[#allocation3 + $0x30] sm:$0xff] %v3553
      %3590 = vst [vmem:[#allocation3 + $0x48] sm:$0xff] %v3554
      %3591 = vst [vmem:[#allocation3 + $0x60] sm:$0xff] %v3555
      %3592 = vst [vmem:[#allocation3 + $0x78] sm:$0xff] %v3556
      %3593 = vst [vmem:[#allocation3 + $0x90] sm:$0xff] %v3557
      %3594 = vst [vmem:[#allocation3 + $0xa8] sm:$0xff] %v3558
      %3595 = vst [vmem:[#allocation3 + $0xc0] sm:$0xff] %v3559
      %3596 = vst [vmem:[#allocation3 + $0xd8] sm:$0xff] %v3560
      %3597 = vst [vmem:[#allocation3 + $0xf0] sm:$0xff] %v3561
      %3598 = vst [vmem:[#allocation3 + $0x108] sm:$0xff] %v3562
      %3599 = vst [vmem:[#allocation3 + $0x120] sm:$0xff] %v3563
      %3600 = vst [vmem:[#allocation3 + $0x138] sm:$0xff] %v3564
      %3601 = vst [vmem:[#allocation3 + $0x150] sm:$0xff] %v3565
      %3602 = vst [vmem:[#allocation3 + $0x168] sm:$0xff] %v3566
      %3603 = vst [vmem:[#allocation3 + $0x180] sm:$0xff] %v3567
      %3604 = vst [vmem:[#allocation3 + $0x198] sm:$0xff] %v3568
      %v3605 = vld [vmem:[#allocation2] sm:$0xf]
      %v3606 = vld [vmem:[#allocation2 + $0x4] sm:$0xf]
      %v3607 = vld [vmem:[#allocation2 + $0x8] sm:$0x1]
      %v3608 = vld [vmem:[#allocation2 + $0xc] sm:$0xf]
      %v3609 = vld [vmem:[#allocation2 + $0x10] sm:$0xf]
      %v3610 = vld [vmem:[#allocation2 + $0x14] sm:$0x1]
      %v3611 = vld [vmem:[#allocation2 + $0x18] sm:$0xf]
      %v3612 = vld [vmem:[#allocation2 + $0x1c] sm:$0xf]
      %v3613 = vld [vmem:[#allocation2 + $0x20] sm:$0x1]
      %v3614 = vld [vmem:[#allocation2 + $0x24] sm:$0xf]
      %v3615 = vld [vmem:[#allocation2 + $0x28] sm:$0xf]
      %v3616 = vld [vmem:[#allocation2 + $0x2c] sm:$0x1]
      %v3617 = vld [vmem:[#allocation2 + $0x30] sm:$0xf]
      %v3618 = vld [vmem:[#allocation2 + $0x34] sm:$0xf]
      %v3619 = vld [vmem:[#allocation2 + $0x38] sm:$0x1]
      %v3620 = vld [vmem:[#allocation2 + $0x3c] sm:$0xf]
      %v3621 = vld [vmem:[#allocation2 + $0x40] sm:$0xf]
      %v3622 = vld [vmem:[#allocation2 + $0x44] sm:$0x1]
      %v3623 = vld [vmem:[#allocation2 + $0x48] sm:$0xf]
      %v3624 = vld [vmem:[#allocation2 + $0x4c] sm:$0xf]
      %v3625 = vld [vmem:[#allocation2 + $0x50] sm:$0x1]
      %v3626 = vld [vmem:[#allocation2 + $0x54] sm:$0xf]
      %v3627 = vld [vmem:[#allocation2 + $0x58] sm:$0xf]
      %v3628 = vld [vmem:[#allocation2 + $0x5c] sm:$0x1]
      %v3629 = vld [vmem:[#allocation2 + $0x60] sm:$0xf]
      %v3630 = vld [vmem:[#allocation2 + $0x64] sm:$0xf]
      %v3631 = vld [vmem:[#allocation2 + $0x68] sm:$0x1]
      %v3632 = vld [vmem:[#allocation2 + $0x6c] sm:$0xf]
      %v3633 = vld [vmem:[#allocation2 + $0x70] sm:$0xf]
      %v3634 = vld [vmem:[#allocation2 + $0x74] sm:$0x1]
      %v3635 = vld [vmem:[#allocation2 + $0x78] sm:$0xf]
      %v3636 = vld [vmem:[#allocation2 + $0x7c] sm:$0xf]
      %v3637 = vld [vmem:[#allocation2 + $0x80] sm:$0x1]
      %v3638 = vld [vmem:[#allocation2 + $0x84] sm:$0xf]
      %v3639 = vld [vmem:[#allocation2 + $0x88] sm:$0xf]
      %v3640 = vld [vmem:[#allocation2 + $0x8c] sm:$0x1]
      %v3641 = vld [vmem:[#allocation2 + $0x90] sm:$0xf]
      %v3642 = vld [vmem:[#allocation2 + $0x94] sm:$0xf]
      %v3643 = vld [vmem:[#allocation2 + $0x98] sm:$0x1]
      %v3644 = vld [vmem:[#allocation2 + $0x9c] sm:$0xf]
      %v3645 = vld [vmem:[#allocation2 + $0xa0] sm:$0xf]
      %v3646 = vld [vmem:[#allocation2 + $0xa4] sm:$0x1]
      %v3647 = vld [vmem:[#allocation2 + $0xa8] sm:$0xf]
      %v3648 = vld [vmem:[#allocation2 + $0xac] sm:$0xf]
      %v3649 = vld [vmem:[#allocation2 + $0xb0] sm:$0x1]
      %v3650 = vld [vmem:[#allocation2 + $0xb4] sm:$0xf]
      %v3651 = vld [vmem:[#allocation2 + $0xb8] sm:$0xf]
      %v3652 = vld [vmem:[#allocation2 + $0xbc] sm:$0x1]
      %v3653 = vld [vmem:[#allocation2 + $0xc0] sm:$0xf]
      %v3654 = vld [vmem:[#allocation2 + $0xc4] sm:$0xf]
      %v3655 = vld [vmem:[#allocation2 + $0xc8] sm:$0x1]
      %v3656 = vld [vmem:[#allocation2 + $0xcc] sm:$0xf]
      %v3657 = vld [vmem:[#allocation2 + $0xd0] sm:$0xf]
      %v3658 = vld [vmem:[#allocation2 + $0xd4] sm:$0x1]
      %v3713 = vunpack.c.l.b16 %v3605
      %v3714 = vunpack.c.l.b16 %v3606
      %v3715 = vunpack.c.l.b16 %v3607
      %v3716 = vunpack.c.l.b16 %v3608
      %v3717 = vunpack.c.l.b16 %v3609
      %v3718 = vunpack.c.l.b16 %v3610
      %v3719 = vunpack.c.l.b16 %v3611
      %v3720 = vunpack.c.l.b16 %v3612
      %v3721 = vunpack.c.l.b16 %v3613
      %v3722 = vunpack.c.l.b16 %v3614
      %v3723 = vunpack.c.l.b16 %v3615
      %v3724 = vunpack.c.l.b16 %v3616
      %v3725 = vunpack.c.l.b16 %v3617
      %v3726 = vunpack.c.l.b16 %v3618
      %v3727 = vunpack.c.l.b16 %v3619
      %v3728 = vunpack.c.l.b16 %v3620
      %v3729 = vunpack.c.l.b16 %v3621
      %v3730 = vunpack.c.l.b16 %v3622
      %v3731 = vunpack.c.l.b16 %v3623
      %v3732 = vunpack.c.l.b16 %v3624
      %v3733 = vunpack.c.l.b16 %v3625
      %v3734 = vunpack.c.l.b16 %v3626
      %v3735 = vunpack.c.l.b16 %v3627
      %v3736 = vunpack.c.l.b16 %v3628
      %v3737 = vunpack.c.l.b16 %v3629
      %v3738 = vunpack.c.l.b16 %v3630
      %v3739 = vunpack.c.l.b16 %v3631
      %v3740 = vunpack.c.l.b16 %v3632
      %v3741 = vunpack.c.l.b16 %v3633
      %v3742 = vunpack.c.l.b16 %v3634
      %v3743 = vunpack.c.l.b16 %v3635
      %v3744 = vunpack.c.l.b16 %v3636
      %v3745 = vunpack.c.l.b16 %v3637
      %v3746 = vunpack.c.l.b16 %v3638
      %v3747 = vunpack.c.l.b16 %v3639
      %v3748 = vunpack.c.l.b16 %v3640
      %v3749 = vunpack.c.l.b16 %v3641
      %v3750 = vunpack.c.l.b16 %v3642
      %v3751 = vunpack.c.l.b16 %v3643
      %v3752 = vunpack.c.l.b16 %v3644
      %v3753 = vunpack.c.l.b16 %v3645
      %v3754 = vunpack.c.l.b16 %v3646
      %v3755 = vunpack.c.l.b16 %v3647
      %v3756 = vunpack.c.l.b16 %v3648
      %v3757 = vunpack.c.l.b16 %v3649
      %v3758 = vunpack.c.l.b16 %v3650
      %v3759 = vunpack.c.l.b16 %v3651
      %v3760 = vunpack.c.l.b16 %v3652
      %v3761 = vunpack.c.l.b16 %v3653
      %v3762 = vunpack.c.l.b16 %v3654
      %v3763 = vunpack.c.l.b16 %v3655
      %v3764 = vunpack.c.l.b16 %v3656
      %v3765 = vunpack.c.l.b16 %v3657
      %v3766 = vunpack.c.l.b16 %v3658
      %v3767 = vpack.c.b16 %v3714, %v3713
      %v3768 = vpack.c.b16 %v3715, %v3715
      %v3769 = vpack.c.b16 %v3717, %v3716
      %v3770 = vpack.c.b16 %v3718, %v3718
      %v3771 = vpack.c.b16 %v3720, %v3719
      %v3772 = vpack.c.b16 %v3721, %v3721
      %v3773 = vpack.c.b16 %v3723, %v3722
      %v3774 = vpack.c.b16 %v3724, %v3724
      %v3775 = vpack.c.b16 %v3726, %v3725
      %v3776 = vpack.c.b16 %v3727, %v3727
      %v3777 = vpack.c.b16 %v3729, %v3728
      %v3778 = vpack.c.b16 %v3730, %v3730
      %v3779 = vpack.c.b16 %v3732, %v3731
      %v3780 = vpack.c.b16 %v3733, %v3733
      %v3781 = vpack.c.b16 %v3735, %v3734
      %v3782 = vpack.c.b16 %v3736, %v3736
      %v3783 = vpack.c.b16 %v3738, %v3737
      %v3784 = vpack.c.b16 %v3739, %v3739
      %v3785 = vpack.c.b16 %v3741, %v3740
      %v3786 = vpack.c.b16 %v3742, %v3742
      %v3787 = vpack.c.b16 %v3744, %v3743
      %v3788 = vpack.c.b16 %v3745, %v3745
      %v3789 = vpack.c.b16 %v3747, %v3746
      %v3790 = vpack.c.b16 %v3748, %v3748
      %v3791 = vpack.c.b16 %v3750, %v3749
      %v3792 = vpack.c.b16 %v3751, %v3751
      %v3793 = vpack.c.b16 %v3753, %v3752
      %v3794 = vpack.c.b16 %v3754, %v3754
      %v3795 = vpack.c.b16 %v3756, %v3755
      %v3796 = vpack.c.b16 %v3757, %v3757
      %v3797 = vpack.c.b16 %v3759, %v3758
      %v3798 = vpack.c.b16 %v3760, %v3760
      %v3799 = vpack.c.b16 %v3762, %v3761
      %v3800 = vpack.c.b16 %v3763, %v3763
      %v3801 = vpack.c.b16 %v3765, %v3764
      %v3802 = vpack.c.b16 %v3766, %v3766
      %v3804 = vshrl.u32 %v3767, 16
      %v3806 = vshll.u32 %v3767, 16
      %v3808 = vrot.slane %v3806, 1
      %v3809 = vor.u32 %v3804, %v3808
      %v3811 = vshll.u32 %v3768, 16
      %v3813 = vrot.slane %v3811, 1
      %v3814 = vsel %vm651, %v3809, %v3813
      %v3816 = vshrl.u32 %v3769, 16
      %v3818 = vshll.u32 %v3769, 16
      %v3820 = vrot.slane %v3818, 1
      %v3821 = vor.u32 %v3816, %v3820
      %v3823 = vshll.u32 %v3770, 16
      %v3825 = vrot.slane %v3823, 1
      %v3826 = vsel %vm651, %v3821, %v3825
      %v3828 = vshrl.u32 %v3771, 16
      %v3830 = vshll.u32 %v3771, 16
      %v3832 = vrot.slane %v3830, 1
      %v3833 = vor.u32 %v3828, %v3832
      %v3835 = vshll.u32 %v3772, 16
      %v3837 = vrot.slane %v3835, 1
      %v3838 = vsel %vm651, %v3833, %v3837
      %v3840 = vshrl.u32 %v3773, 16
      %v3842 = vshll.u32 %v3773, 16
      %v3844 = vrot.slane %v3842, 1
      %v3845 = vor.u32 %v3840, %v3844
      %v3847 = vshll.u32 %v3774, 16
      %v3849 = vrot.slane %v3847, 1
      %v3850 = vsel %vm651, %v3845, %v3849
      %v3852 = vshrl.u32 %v3775, 16
      %v3854 = vshll.u32 %v3775, 16
      %v3856 = vrot.slane %v3854, 1
      %v3857 = vor.u32 %v3852, %v3856
      %v3859 = vshll.u32 %v3776, 16
      %v3861 = vrot.slane %v3859, 1
      %v3862 = vsel %vm651, %v3857, %v3861
      %v3864 = vshrl.u32 %v3777, 16
      %v3866 = vshll.u32 %v3777, 16
      %v3868 = vrot.slane %v3866, 1
      %v3869 = vor.u32 %v3864, %v3868
      %v3871 = vshll.u32 %v3778, 16
      %v3873 = vrot.slane %v3871, 1
      %v3874 = vsel %vm651, %v3869, %v3873
      %v3876 = vshrl.u32 %v3779, 16
      %v3878 = vshll.u32 %v3779, 16
      %v3880 = vrot.slane %v3878, 1
      %v3881 = vor.u32 %v3876, %v3880
      %v3883 = vshll.u32 %v3780, 16
      %v3885 = vrot.slane %v3883, 1
      %v3886 = vsel %vm651, %v3881, %v3885
      %v3888 = vshrl.u32 %v3781, 16
      %v3890 = vshll.u32 %v3781, 16
      %v3892 = vrot.slane %v3890, 1
      %v3893 = vor.u32 %v3888, %v3892
      %v3895 = vshll.u32 %v3782, 16
      %v3897 = vrot.slane %v3895, 1
      %v3898 = vsel %vm651, %v3893, %v3897
      %v3900 = vshrl.u32 %v3783, 16
      %v3902 = vshll.u32 %v3783, 16
      %v3904 = vrot.slane %v3902, 1
      %v3905 = vor.u32 %v3900, %v3904
      %v3907 = vshll.u32 %v3784, 16
      %v3909 = vrot.slane %v3907, 1
      %v3910 = vsel %vm651, %v3905, %v3909
      %v3912 = vshrl.u32 %v3785, 16
      %v3914 = vshll.u32 %v3785, 16
      %v3916 = vrot.slane %v3914, 1
      %v3917 = vor.u32 %v3912, %v3916
      %v3919 = vshll.u32 %v3786, 16
      %v3921 = vrot.slane %v3919, 1
      %v3922 = vsel %vm651, %v3917, %v3921
      %v3924 = vshrl.u32 %v3787, 16
      %v3926 = vshll.u32 %v3787, 16
      %v3928 = vrot.slane %v3926, 1
      %v3929 = vor.u32 %v3924, %v3928
      %v3931 = vshll.u32 %v3788, 16
      %v3933 = vrot.slane %v3931, 1
      %v3934 = vsel %vm651, %v3929, %v3933
      %v3936 = vshrl.u32 %v3789, 16
      %v3938 = vshll.u32 %v3789, 16
      %v3940 = vrot.slane %v3938, 1
      %v3941 = vor.u32 %v3936, %v3940
      %v3943 = vshll.u32 %v3790, 16
      %v3945 = vrot.slane %v3943, 1
      %v3946 = vsel %vm651, %v3941, %v3945
      %v3948 = vshrl.u32 %v3791, 16
      %v3950 = vshll.u32 %v3791, 16
      %v3952 = vrot.slane %v3950, 1
      %v3953 = vor.u32 %v3948, %v3952
      %v3955 = vshll.u32 %v3792, 16
      %v3957 = vrot.slane %v3955, 1
      %v3958 = vsel %vm651, %v3953, %v3957
      %v3960 = vshrl.u32 %v3793, 16
      %v3962 = vshll.u32 %v3793, 16
      %v3964 = vrot.slane %v3962, 1
      %v3965 = vor.u32 %v3960, %v3964
      %v3967 = vshll.u32 %v3794, 16
      %v3969 = vrot.slane %v3967, 1
      %v3970 = vsel %vm651, %v3965, %v3969
      %v3972 = vshrl.u32 %v3795, 16
      %v3974 = vshll.u32 %v3795, 16
      %v3976 = vrot.slane %v3974, 1
      %v3977 = vor.u32 %v3972, %v3976
      %v3979 = vshll.u32 %v3796, 16
      %v3981 = vrot.slane %v3979, 1
      %v3982 = vsel %vm651, %v3977, %v3981
      %v3984 = vshrl.u32 %v3797, 16
      %v3986 = vshll.u32 %v3797, 16
      %v3988 = vrot.slane %v3986, 1
      %v3989 = vor.u32 %v3984, %v3988
      %v3991 = vshll.u32 %v3798, 16
      %v3993 = vrot.slane %v3991, 1
      %v3994 = vsel %vm651, %v3989, %v3993
      %v3996 = vshrl.u32 %v3799, 16
      %v3998 = vshll.u32 %v3799, 16
      %v4000 = vrot.slane %v3998, 1
      %v4001 = vor.u32 %v3996, %v4000
      %v4003 = vshll.u32 %v3800, 16
      %v4005 = vrot.slane %v4003, 1
      %v4006 = vsel %vm651, %v4001, %v4005
      %v4008 = vshrl.u32 %v3801, 16
      %v4010 = vshll.u32 %v3801, 16
      %v4012 = vrot.slane %v4010, 1
      %v4013 = vor.u32 %v4008, %v4012
      %v4015 = vshll.u32 %v3802, 16
      %v4017 = vrot.slane %v4015, 1
      %v4018 = vsel %vm651, %v4013, %v4017
      %4037 = vst [vmem:[#allocation3 + $0x8] sm:$0xff] %v3814
      %4038 = vst [vmem:[#allocation3 + $0x20] sm:$0xff] %v3826
      %4039 = vst [vmem:[#allocation3 + $0x38] sm:$0xff] %v3838
      %4040 = vst [vmem:[#allocation3 + $0x50] sm:$0xff] %v3850
      %4041 = vst [vmem:[#allocation3 + $0x68] sm:$0xff] %v3862
      %4042 = vst [vmem:[#allocation3 + $0x80] sm:$0xff] %v3874
      %4043 = vst [vmem:[#allocation3 + $0x98] sm:$0xff] %v3886
      %4044 = vst [vmem:[#allocation3 + $0xb0] sm:$0xff] %v3898
      %4045 = vst [vmem:[#allocation3 + $0xc8] sm:$0xff] %v3910
      %4046 = vst [vmem:[#allocation3 + $0xe0] sm:$0xff] %v3922
      %4047 = vst [vmem:[#allocation3 + $0xf8] sm:$0xff] %v3934
      %4048 = vst [vmem:[#allocation3 + $0x110] sm:$0xff] %v3946
      %4049 = vst [vmem:[#allocation3 + $0x128] sm:$0xff] %v3958
      %4050 = vst [vmem:[#allocation3 + $0x140] sm:$0xff] %v3970
      %4051 = vst [vmem:[#allocation3 + $0x158] sm:$0xff] %v3982
      %4052 = vst [vmem:[#allocation3 + $0x170] sm:$0xff] %v3994
      %4053 = vst [vmem:[#allocation3 + $0x188] sm:$0xff] %v4006
      %4054 = vst [vmem:[#allocation3 + $0x1a0] sm:$0xff] %v4018
      %v4055 = vld [vmem:[#allocation2] sm:$0xe]
      %v4056 = vld [vmem:[#allocation2 + $0x4] sm:$0xf]
      %v4057 = vld [vmem:[#allocation2 + $0x8] sm:$0x1]
      %v4058 = vld [vmem:[#allocation2 + $0xc] sm:$0xe]
      %v4059 = vld [vmem:[#allocation2 + $0x10] sm:$0xf]
      %v4060 = vld [vmem:[#allocation2 + $0x14] sm:$0x1]
      %v4061 = vld [vmem:[#allocation2 + $0x18] sm:$0xe]
      %v4062 = vld [vmem:[#allocation2 + $0x1c] sm:$0xf]
      %v4063 = vld [vmem:[#allocation2 + $0x20] sm:$0x1]
      %v4064 = vld [vmem:[#allocation2 + $0x24] sm:$0xe]
      %v4065 = vld [vmem:[#allocation2 + $0x28] sm:$0xf]
      %v4066 = vld [vmem:[#allocation2 + $0x2c] sm:$0x1]
      %v4067 = vld [vmem:[#allocation2 + $0x30] sm:$0xe]
      %v4068 = vld [vmem:[#allocation2 + $0x34] sm:$0xf]
      %v4069 = vld [vmem:[#allocation2 + $0x38] sm:$0x1]
      %v4070 = vld [vmem:[#allocation2 + $0x3c] sm:$0xe]
      %v4071 = vld [vmem:[#allocation2 + $0x40] sm:$0xf]
      %v4072 = vld [vmem:[#allocation2 + $0x44] sm:$0x1]
      %v4073 = vld [vmem:[#allocation2 + $0x48] sm:$0xe]
      %v4074 = vld [vmem:[#allocation2 + $0x4c] sm:$0xf]
      %v4075 = vld [vmem:[#allocation2 + $0x50] sm:$0x1]
      %v4076 = vld [vmem:[#allocation2 + $0x54] sm:$0xe]
      %v4077 = vld [vmem:[#allocation2 + $0x58] sm:$0xf]
      %v4078 = vld [vmem:[#allocation2 + $0x5c] sm:$0x1]
      %v4079 = vld [vmem:[#allocation2 + $0x60] sm:$0xe]
      %v4080 = vld [vmem:[#allocation2 + $0x64] sm:$0xf]
      %v4081 = vld [vmem:[#allocation2 + $0x68] sm:$0x1]
      %v4082 = vld [vmem:[#allocation2 + $0x6c] sm:$0xe]
      %v4083 = vld [vmem:[#allocation2 + $0x70] sm:$0xf]
      %v4084 = vld [vmem:[#allocation2 + $0x74] sm:$0x1]
      %v4085 = vld [vmem:[#allocation2 + $0x78] sm:$0xe]
      %v4086 = vld [vmem:[#allocation2 + $0x7c] sm:$0xf]
      %v4087 = vld [vmem:[#allocation2 + $0x80] sm:$0x1]
      %v4088 = vld [vmem:[#allocation2 + $0x84] sm:$0xe]
      %v4089 = vld [vmem:[#allocation2 + $0x88] sm:$0xf]
      %v4090 = vld [vmem:[#allocation2 + $0x8c] sm:$0x1]
      %v4091 = vld [vmem:[#allocation2 + $0x90] sm:$0xe]
      %v4092 = vld [vmem:[#allocation2 + $0x94] sm:$0xf]
      %v4093 = vld [vmem:[#allocation2 + $0x98] sm:$0x1]
      %v4094 = vld [vmem:[#allocation2 + $0x9c] sm:$0xe]
      %v4095 = vld [vmem:[#allocation2 + $0xa0] sm:$0xf]
      %v4096 = vld [vmem:[#allocation2 + $0xa4] sm:$0x1]
      %v4097 = vld [vmem:[#allocation2 + $0xa8] sm:$0xe]
      %v4098 = vld [vmem:[#allocation2 + $0xac] sm:$0xf]
      %v4099 = vld [vmem:[#allocation2 + $0xb0] sm:$0x1]
      %v4100 = vld [vmem:[#allocation2 + $0xb4] sm:$0xe]
      %v4101 = vld [vmem:[#allocation2 + $0xb8] sm:$0xf]
      %v4102 = vld [vmem:[#allocation2 + $0xbc] sm:$0x1]
      %v4103 = vld [vmem:[#allocation2 + $0xc0] sm:$0xe]
      %v4104 = vld [vmem:[#allocation2 + $0xc4] sm:$0xf]
      %v4105 = vld [vmem:[#allocation2 + $0xc8] sm:$0x1]
      %v4106 = vld [vmem:[#allocation2 + $0xcc] sm:$0xe]
      %v4107 = vld [vmem:[#allocation2 + $0xd0] sm:$0xf]
      %v4108 = vld [vmem:[#allocation2 + $0xd4] sm:$0x1]
      %v4163 = vunpack.c.l.b16 %v4055
      %v4164 = vunpack.c.l.b16 %v4056
      %v4165 = vunpack.c.l.b16 %v4057
      %v4166 = vunpack.c.l.b16 %v4058
      %v4167 = vunpack.c.l.b16 %v4059
      %v4168 = vunpack.c.l.b16 %v4060
      %v4169 = vunpack.c.l.b16 %v4061
      %v4170 = vunpack.c.l.b16 %v4062
      %v4171 = vunpack.c.l.b16 %v4063
      %v4172 = vunpack.c.l.b16 %v4064
      %v4173 = vunpack.c.l.b16 %v4065
      %v4174 = vunpack.c.l.b16 %v4066
      %v4175 = vunpack.c.l.b16 %v4067
      %v4176 = vunpack.c.l.b16 %v4068
      %v4177 = vunpack.c.l.b16 %v4069
      %v4178 = vunpack.c.l.b16 %v4070
      %v4179 = vunpack.c.l.b16 %v4071
      %v4180 = vunpack.c.l.b16 %v4072
      %v4181 = vunpack.c.l.b16 %v4073
      %v4182 = vunpack.c.l.b16 %v4074
      %v4183 = vunpack.c.l.b16 %v4075
      %v4184 = vunpack.c.l.b16 %v4076
      %v4185 = vunpack.c.l.b16 %v4077
      %v4186 = vunpack.c.l.b16 %v4078
      %v4187 = vunpack.c.l.b16 %v4079
      %v4188 = vunpack.c.l.b16 %v4080
      %v4189 = vunpack.c.l.b16 %v4081
      %v4190 = vunpack.c.l.b16 %v4082
      %v4191 = vunpack.c.l.b16 %v4083
      %v4192 = vunpack.c.l.b16 %v4084
      %v4193 = vunpack.c.l.b16 %v4085
      %v4194 = vunpack.c.l.b16 %v4086
      %v4195 = vunpack.c.l.b16 %v4087
      %v4196 = vunpack.c.l.b16 %v4088
      %v4197 = vunpack.c.l.b16 %v4089
      %v4198 = vunpack.c.l.b16 %v4090
      %v4199 = vunpack.c.l.b16 %v4091
      %v4200 = vunpack.c.l.b16 %v4092
      %v4201 = vunpack.c.l.b16 %v4093
      %v4202 = vunpack.c.l.b16 %v4094
      %v4203 = vunpack.c.l.b16 %v4095
      %v4204 = vunpack.c.l.b16 %v4096
      %v4205 = vunpack.c.l.b16 %v4097
      %v4206 = vunpack.c.l.b16 %v4098
      %v4207 = vunpack.c.l.b16 %v4099
      %v4208 = vunpack.c.l.b16 %v4100
      %v4209 = vunpack.c.l.b16 %v4101
      %v4210 = vunpack.c.l.b16 %v4102
      %v4211 = vunpack.c.l.b16 %v4103
      %v4212 = vunpack.c.l.b16 %v4104
      %v4213 = vunpack.c.l.b16 %v4105
      %v4214 = vunpack.c.l.b16 %v4106
      %v4215 = vunpack.c.l.b16 %v4107
      %v4216 = vunpack.c.l.b16 %v4108
      %v4217 = vpack.c.b16 %v4164, %v4163
      %v4218 = vpack.c.b16 %v4165, %v4165
      %v4219 = vpack.c.b16 %v4167, %v4166
      %v4220 = vpack.c.b16 %v4168, %v4168
      %v4221 = vpack.c.b16 %v4170, %v4169
      %v4222 = vpack.c.b16 %v4171, %v4171
      %v4223 = vpack.c.b16 %v4173, %v4172
      %v4224 = vpack.c.b16 %v4174, %v4174
      %v4225 = vpack.c.b16 %v4176, %v4175
      %v4226 = vpack.c.b16 %v4177, %v4177
      %v4227 = vpack.c.b16 %v4179, %v4178
      %v4228 = vpack.c.b16 %v4180, %v4180
      %v4229 = vpack.c.b16 %v4182, %v4181
      %v4230 = vpack.c.b16 %v4183, %v4183
      %v4231 = vpack.c.b16 %v4185, %v4184
      %v4232 = vpack.c.b16 %v4186, %v4186
      %v4233 = vpack.c.b16 %v4188, %v4187
      %v4234 = vpack.c.b16 %v4189, %v4189
      %v4235 = vpack.c.b16 %v4191, %v4190
      %v4236 = vpack.c.b16 %v4192, %v4192
      %v4237 = vpack.c.b16 %v4194, %v4193
      %v4238 = vpack.c.b16 %v4195, %v4195
      %v4239 = vpack.c.b16 %v4197, %v4196
      %v4240 = vpack.c.b16 %v4198, %v4198
      %v4241 = vpack.c.b16 %v4200, %v4199
      %v4242 = vpack.c.b16 %v4201, %v4201
      %v4243 = vpack.c.b16 %v4203, %v4202
      %v4244 = vpack.c.b16 %v4204, %v4204
      %v4245 = vpack.c.b16 %v4206, %v4205
      %v4246 = vpack.c.b16 %v4207, %v4207
      %v4247 = vpack.c.b16 %v4209, %v4208
      %v4248 = vpack.c.b16 %v4210, %v4210
      %v4249 = vpack.c.b16 %v4212, %v4211
      %v4250 = vpack.c.b16 %v4213, %v4213
      %v4251 = vpack.c.b16 %v4215, %v4214
      %v4252 = vpack.c.b16 %v4216, %v4216
      %v4253 = vrot.slane %v4217, 1
      %v4254 = vrot.slane %v4218, 1
      %v4255 = vsel %vm1102, %v4253, %v4254
      %v4256 = vrot.slane %v4219, 1
      %v4257 = vrot.slane %v4220, 1
      %v4258 = vsel %vm1102, %v4256, %v4257
      %v4259 = vrot.slane %v4221, 1
      %v4260 = vrot.slane %v4222, 1
      %v4261 = vsel %vm1102, %v4259, %v4260
      %v4262 = vrot.slane %v4223, 1
      %v4263 = vrot.slane %v4224, 1
      %v4264 = vsel %vm1102, %v4262, %v4263
      %v4265 = vrot.slane %v4225, 1
      %v4266 = vrot.slane %v4226, 1
      %v4267 = vsel %vm1102, %v4265, %v4266
      %v4268 = vrot.slane %v4227, 1
      %v4269 = vrot.slane %v4228, 1
      %v4270 = vsel %vm1102, %v4268, %v4269
      %v4271 = vrot.slane %v4229, 1
      %v4272 = vrot.slane %v4230, 1
      %v4273 = vsel %vm1102, %v4271, %v4272
      %v4274 = vrot.slane %v4231, 1
      %v4275 = vrot.slane %v4232, 1
      %v4276 = vsel %vm1102, %v4274, %v4275
      %v4277 = vrot.slane %v4233, 1
      %v4278 = vrot.slane %v4234, 1
      %v4279 = vsel %vm1102, %v4277, %v4278
      %v4280 = vrot.slane %v4235, 1
      %v4281 = vrot.slane %v4236, 1
      %v4282 = vsel %vm1102, %v4280, %v4281
      %v4283 = vrot.slane %v4237, 1
      %v4284 = vrot.slane %v4238, 1
      %v4285 = vsel %vm1102, %v4283, %v4284
      %v4286 = vrot.slane %v4239, 1
      %v4287 = vrot.slane %v4240, 1
      %v4288 = vsel %vm1102, %v4286, %v4287
      %v4289 = vrot.slane %v4241, 1
      %v4290 = vrot.slane %v4242, 1
      %v4291 = vsel %vm1102, %v4289, %v4290
      %v4292 = vrot.slane %v4243, 1
      %v4293 = vrot.slane %v4244, 1
      %v4294 = vsel %vm1102, %v4292, %v4293
      %v4295 = vrot.slane %v4245, 1
      %v4296 = vrot.slane %v4246, 1
      %v4297 = vsel %vm1102, %v4295, %v4296
      %v4298 = vrot.slane %v4247, 1
      %v4299 = vrot.slane %v4248, 1
      %v4300 = vsel %vm1102, %v4298, %v4299
      %v4301 = vrot.slane %v4249, 1
      %v4302 = vrot.slane %v4250, 1
      %v4303 = vsel %vm1102, %v4301, %v4302
      %v4304 = vrot.slane %v4251, 1
      %v4305 = vrot.slane %v4252, 1
      %v4306 = vsel %vm1102, %v4304, %v4305
      %4325 = vst [vmem:[#allocation3 + $0x10] sm:$0xff] %v4255
      %4326 = vst [vmem:[#allocation3 + $0x28] sm:$0xff] %v4258
      %4327 = vst [vmem:[#allocation3 + $0x40] sm:$0xff] %v4261
      %4328 = vst [vmem:[#allocation3 + $0x58] sm:$0xff] %v4264
      %4329 = vst [vmem:[#allocation3 + $0x70] sm:$0xff] %v4267
      %4330 = vst [vmem:[#allocation3 + $0x88] sm:$0xff] %v4270
      %4331 = vst [vmem:[#allocation3 + $0xa0] sm:$0xff] %v4273
      %4332 = vst [vmem:[#allocation3 + $0xb8] sm:$0xff] %v4276
      %4333 = vst [vmem:[#allocation3 + $0xd0] sm:$0xff] %v4279
      %4334 = vst [vmem:[#allocation3 + $0xe8] sm:$0xff] %v4282
      %4335 = vst [vmem:[#allocation3 + $0x100] sm:$0xff] %v4285
      %4336 = vst [vmem:[#allocation3 + $0x118] sm:$0xff] %v4288
      %4337 = vst [vmem:[#allocation3 + $0x130] sm:$0xff] %v4291
      %4338 = vst [vmem:[#allocation3 + $0x148] sm:$0xff] %v4294
      %4339 = vst [vmem:[#allocation3 + $0x160] sm:$0xff] %v4297
      %4340 = vst [vmem:[#allocation3 + $0x178] sm:$0xff] %v4300
      %4341 = vst [vmem:[#allocation3 + $0x190] sm:$0xff] %v4303
      %4342 = vst [vmem:[#allocation3 + $0x1a8] sm:$0xff] %v4306
      %v4343 = vld [vmem:[#allocation3] sm:$0xff]
      %v4344 = vld [vmem:[#allocation3 + $0x8] sm:$0xff]
      %v4345 = vld [vmem:[#allocation3 + $0x10] sm:$0xff]
      %v4346 = vld [vmem:[#allocation3 + $0x18] sm:$0xff]
      %v4347 = vld [vmem:[#allocation3 + $0x20] sm:$0xff]
      %v4348 = vld [vmem:[#allocation3 + $0x28] sm:$0xff]
      %v4349 = vld [vmem:[#allocation3 + $0x30] sm:$0xff]
      %v4350 = vld [vmem:[#allocation3 + $0x38] sm:$0xff]
      %v4351 = vld [vmem:[#allocation3 + $0x40] sm:$0xff]
      %v4352 = vld [vmem:[#allocation3 + $0x48] sm:$0xff]
      %v4353 = vld [vmem:[#allocation3 + $0x50] sm:$0xff]
      %v4354 = vld [vmem:[#allocation3 + $0x58] sm:$0xff]
      %v4355 = vld [vmem:[#allocation3 + $0x60] sm:$0xff]
      %v4356 = vld [vmem:[#allocation3 + $0x68] sm:$0xff]
      %v4357 = vld [vmem:[#allocation3 + $0x70] sm:$0xff]
      %v4358 = vld [vmem:[#allocation3 + $0x78] sm:$0xff]
      %v4359 = vld [vmem:[#allocation3 + $0x80] sm:$0xff]
      %v4360 = vld [vmem:[#allocation3 + $0x88] sm:$0xff]
      %v4361 = vld [vmem:[#allocation3 + $0x90] sm:$0xff]
      %v4362 = vld [vmem:[#allocation3 + $0x98] sm:$0xff]
      %v4363 = vld [vmem:[#allocation3 + $0xa0] sm:$0xff]
      %v4364 = vld [vmem:[#allocation3 + $0xa8] sm:$0xff]
      %v4365 = vld [vmem:[#allocation3 + $0xb0] sm:$0xff]
      %v4366 = vld [vmem:[#allocation3 + $0xb8] sm:$0xff]
      %v4367 = vld [vmem:[#allocation3 + $0xc0] sm:$0xff]
      %v4368 = vld [vmem:[#allocation3 + $0xc8] sm:$0xff]
      %v4369 = vld [vmem:[#allocation3 + $0xd0] sm:$0xff]
      %v4370 = vld [vmem:[#allocation3 + $0xd8] sm:$0xff]
      %v4371 = vld [vmem:[#allocation3 + $0xe0] sm:$0xff]
      %v4372 = vld [vmem:[#allocation3 + $0xe8] sm:$0xff]
      %v4373 = vld [vmem:[#allocation3 + $0xf0] sm:$0xff]
      %v4374 = vld [vmem:[#allocation3 + $0xf8] sm:$0xff]
      %v4375 = vld [vmem:[#allocation3 + $0x100] sm:$0xff]
      %v4376 = vld [vmem:[#allocation3 + $0x108] sm:$0xff]
      %v4377 = vld [vmem:[#allocation3 + $0x110] sm:$0xff]
      %v4378 = vld [vmem:[#allocation3 + $0x118] sm:$0xff]
      %v4379 = vld [vmem:[#allocation3 + $0x120] sm:$0xff]
      %v4380 = vld [vmem:[#allocation3 + $0x128] sm:$0xff]
      %v4381 = vld [vmem:[#allocation3 + $0x130] sm:$0xff]
      %v4382 = vld [vmem:[#allocation3 + $0x138] sm:$0xff]
      %v4383 = vld [vmem:[#allocation3 + $0x140] sm:$0xff]
      %v4384 = vld [vmem:[#allocation3 + $0x148] sm:$0xff]
      %v4385 = vld [vmem:[#allocation3 + $0x150] sm:$0xff]
      %v4386 = vld [vmem:[#allocation3 + $0x158] sm:$0xff]
      %v4387 = vld [vmem:[#allocation3 + $0x160] sm:$0xff]
      %v4388 = vld [vmem:[#allocation3 + $0x168] sm:$0xff]
      %v4389 = vld [vmem:[#allocation3 + $0x170] sm:$0xff]
      %v4390 = vld [vmem:[#allocation3 + $0x178] sm:$0xff]
      %v4391 = vld [vmem:[%s4] sm:$0xf]
      %v4392 = vld [vmem:[%s4 + $0x4] sm:$0xf]
      %v4393 = vld [vmem:[%s4 + $0x8] sm:$0xf]
      %v4394 = vld [vmem:[%s4 + $0xc] sm:$0xf]
      %v4395 = vld [vmem:[%s4 + $0x10] sm:$0xf]
      %v4396 = vld [vmem:[%s4 + $0x14] sm:$0xf]
      %v4397 = vld [vmem:[%s4 + $0x18] sm:$0xf]
      %v4398 = vld [vmem:[%s4 + $0x1c] sm:$0xf]
      %v4399 = vld [vmem:[%s4 + $0x20] sm:$0xf]
      %v4400 = vld [vmem:[%s4 + $0x24] sm:$0xf]
      %v4401 = vld [vmem:[%s4 + $0x28] sm:$0xf]
      %v4402 = vld [vmem:[%s4 + $0x2c] sm:$0xf]
      %v4403 = vld [vmem:[%s4 + $0x30] sm:$0xf]
      %v4404 = vld [vmem:[%s4 + $0x34] sm:$0xf]
      %v4405 = vld [vmem:[%s4 + $0x38] sm:$0xf]
      %v4406 = vld [vmem:[%s4 + $0x3c] sm:$0xf]
      %v4407 = vld [vmem:[%s4 + $0x40] sm:$0xf]
      %v4408 = vld [vmem:[%s4 + $0x44] sm:$0xf]
      %v4409 = vld [vmem:[%s4 + $0x48] sm:$0xf]
      %v4410 = vld [vmem:[%s4 + $0x4c] sm:$0xf]
      %v4411 = vld [vmem:[%s4 + $0x50] sm:$0xf]
      %v4412 = vld [vmem:[%s4 + $0x54] sm:$0xf]
      %v4413 = vld [vmem:[%s4 + $0x58] sm:$0xf]
      %v4414 = vld [vmem:[%s4 + $0x5c] sm:$0xf]
      %v4415 = vld [vmem:[%s4 + $0x60] sm:$0xf]
      %v4416 = vld [vmem:[%s4 + $0x64] sm:$0xf]
      %v4417 = vld [vmem:[%s4 + $0x68] sm:$0xf]
      %v4418 = vld [vmem:[%s4 + $0x6c] sm:$0xf]
      %v4419 = vld [vmem:[%s4 + $0x70] sm:$0xf]
      %v4420 = vld [vmem:[%s4 + $0x74] sm:$0xf]
      %v4421 = vld [vmem:[%s4 + $0x78] sm:$0xf]
      %v4422 = vld [vmem:[%s4 + $0x7c] sm:$0xf]
      %v4423 = vld [vmem:[%s4 + $0x80] sm:$0xf]
      %v4424 = vld [vmem:[%s4 + $0x84] sm:$0xf]
      %v4425 = vld [vmem:[%s4 + $0x88] sm:$0xf]
      %v4426 = vld [vmem:[%s4 + $0x8c] sm:$0xf]
      %v4427 = vld [vmem:[%s4 + $0x90] sm:$0xf]
      %v4428 = vld [vmem:[%s4 + $0x94] sm:$0xf]
      %v4429 = vld [vmem:[%s4 + $0x98] sm:$0xf]
      %v4430 = vld [vmem:[%s4 + $0x9c] sm:$0xf]
      %v4431 = vld [vmem:[%s4 + $0xa0] sm:$0xf]
      %v4432 = vld [vmem:[%s4 + $0xa4] sm:$0xf]
      %v4433 = vld [vmem:[%s4 + $0xa8] sm:$0xf]
      %v4434 = vld [vmem:[%s4 + $0xac] sm:$0xf]
      %v4435 = vld [vmem:[%s4 + $0xb0] sm:$0xf]
      %v4436 = vld [vmem:[%s4 + $0xb4] sm:$0xf]
      %v4437 = vld [vmem:[%s4 + $0xb8] sm:$0xf]
      %v4438 = vld [vmem:[%s4 + $0xbc] sm:$0xf]
      %v4439 = vld [vmem:[%s1289] sm:$0xff]
      %v4440 = vld [vmem:[%s1289 + $0x8] sm:$0xff]
      %v4441 = vld [vmem:[%s1289 + $0x10] sm:$0xff]
      %v4442 = vld [vmem:[%s1289 + $0x18] sm:$0xff]
      %v4443 = vld [vmem:[%s1289 + $0x20] sm:$0xff]
      %v4444 = vld [vmem:[%s1289 + $0x28] sm:$0xff]
      %v4445 = vld [vmem:[%s1289 + $0x30] sm:$0xff]
      %v4446 = vld [vmem:[%s1289 + $0x38] sm:$0xff]
      %v4447 = vld [vmem:[%s1289 + $0x40] sm:$0xff]
      %v4448 = vld [vmem:[%s1289 + $0x48] sm:$0xff]
      %v4449 = vld [vmem:[%s1289 + $0x50] sm:$0xff]
      %v4450 = vld [vmem:[%s1289 + $0x58] sm:$0xff]
      %v4451 = vld [vmem:[%s1289 + $0x60] sm:$0xff]
      %v4452 = vld [vmem:[%s1289 + $0x68] sm:$0xff]
      %v4453 = vld [vmem:[%s1289 + $0x70] sm:$0xff]
      %v4454 = vld [vmem:[%s1289 + $0x78] sm:$0xff]
      %v4455 = vld [vmem:[%s1289 + $0x80] sm:$0xff]
      %v4456 = vld [vmem:[%s1289 + $0x88] sm:$0xff]
      %v4457 = vld [vmem:[%s1289 + $0x90] sm:$0xff]
      %v4458 = vld [vmem:[%s1289 + $0x98] sm:$0xff]
      %v4459 = vld [vmem:[%s1289 + $0xa0] sm:$0xff]
      %v4460 = vld [vmem:[%s1289 + $0xa8] sm:$0xff]
      %v4461 = vld [vmem:[%s1289 + $0xb0] sm:$0xff]
      %v4462 = vld [vmem:[%s1289 + $0xb8] sm:$0xff]
      %v4463 = vld [vmem:[%s1289 + $0xc0] sm:$0xff]
      %v4464 = vld [vmem:[%s1289 + $0xc8] sm:$0xff]
      %v4465 = vld [vmem:[%s1289 + $0xd0] sm:$0xff]
      %v4466 = vld [vmem:[%s1289 + $0xd8] sm:$0xff]
      %v4467 = vld [vmem:[%s1289 + $0xe0] sm:$0xff]
      %v4468 = vld [vmem:[%s1289 + $0xe8] sm:$0xff]
      %v4469 = vld [vmem:[%s1289 + $0xf0] sm:$0xff]
      %v4470 = vld [vmem:[%s1289 + $0xf8] sm:$0xff]
      %v4471 = vld [vmem:[%s1289 + $0x100] sm:$0xff]
      %v4472 = vld [vmem:[%s1289 + $0x108] sm:$0xff]
      %v4473 = vld [vmem:[%s1289 + $0x110] sm:$0xff]
      %v4474 = vld [vmem:[%s1289 + $0x118] sm:$0xff]
      %v4475 = vld [vmem:[%s1289 + $0x120] sm:$0xff]
      %v4476 = vld [vmem:[%s1289 + $0x128] sm:$0xff]
      %v4477 = vld [vmem:[%s1289 + $0x130] sm:$0xff]
      %v4478 = vld [vmem:[%s1289 + $0x138] sm:$0xff]
      %v4479 = vld [vmem:[%s1289 + $0x140] sm:$0xff]
      %v4480 = vld [vmem:[%s1289 + $0x148] sm:$0xff]
      %v4481 = vld [vmem:[%s1289 + $0x150] sm:$0xff]
      %v4482 = vld [vmem:[%s1289 + $0x158] sm:$0xff]
      %v4483 = vld [vmem:[%s1289 + $0x160] sm:$0xff]
      %v4484 = vld [vmem:[%s1289 + $0x168] sm:$0xff]
      %v4485 = vld [vmem:[%s1289 + $0x170] sm:$0xff]
      %v4486 = vld [vmem:[%s1289 + $0x178] sm:$0xff]
      %s4487 = scalar_lea.vmem %s4, 192
      %v4488 = vld [vmem:[%s4487] sm:$0xf]
      %v4489 = vld [vmem:[%s4487 + $0x4] sm:$0xf]
      %v4490 = vld [vmem:[%s4487 + $0x8] sm:$0xf]
      %v4491 = vld [vmem:[%s4487 + $0xc] sm:$0xf]
      %v4492 = vld [vmem:[%s4487 + $0x10] sm:$0xf]
      %v4493 = vld [vmem:[%s4487 + $0x14] sm:$0xf]
      %v4494 = vld [vmem:[%s4487 + $0x18] sm:$0xf]
      %v4495 = vld [vmem:[%s4487 + $0x1c] sm:$0xf]
      %v4496 = vld [vmem:[%s4487 + $0x20] sm:$0xf]
      %v4497 = vld [vmem:[%s4487 + $0x24] sm:$0xf]
      %v4498 = vld [vmem:[%s4487 + $0x28] sm:$0xf]
      %v4499 = vld [vmem:[%s4487 + $0x2c] sm:$0xf]
      %v4500 = vld [vmem:[%s4487 + $0x30] sm:$0xf]
      %v4501 = vld [vmem:[%s4487 + $0x34] sm:$0xf]
      %v4502 = vld [vmem:[%s4487 + $0x38] sm:$0xf]
      %v4503 = vld [vmem:[%s4487 + $0x3c] sm:$0xf]
      %v4504 = vld [vmem:[%s4487 + $0x40] sm:$0xf]
      %v4505 = vld [vmem:[%s4487 + $0x44] sm:$0xf]
      %v4506 = vld [vmem:[%s4487 + $0x48] sm:$0xf]
      %v4507 = vld [vmem:[%s4487 + $0x4c] sm:$0xf]
      %v4508 = vld [vmem:[%s4487 + $0x50] sm:$0xf]
      %v4509 = vld [vmem:[%s4487 + $0x54] sm:$0xf]
      %v4510 = vld [vmem:[%s4487 + $0x58] sm:$0xf]
      %v4511 = vld [vmem:[%s4487 + $0x5c] sm:$0xf]
      %v4512 = vld [vmem:[%s4487 + $0x60] sm:$0xf]
      %v4513 = vld [vmem:[%s4487 + $0x64] sm:$0xf]
      %v4514 = vld [vmem:[%s4487 + $0x68] sm:$0xf]
      %v4515 = vld [vmem:[%s4487 + $0x6c] sm:$0xf]
      %v4516 = vld [vmem:[%s4487 + $0x70] sm:$0xf]
      %v4517 = vld [vmem:[%s4487 + $0x74] sm:$0xf]
      %v4518 = vld [vmem:[%s4487 + $0x78] sm:$0xf]
      %v4519 = vld [vmem:[%s4487 + $0x7c] sm:$0xf]
      %v4520 = vld [vmem:[%s4487 + $0x80] sm:$0xf]
      %v4521 = vld [vmem:[%s4487 + $0x84] sm:$0xf]
      %v4522 = vld [vmem:[%s4487 + $0x88] sm:$0xf]
      %v4523 = vld [vmem:[%s4487 + $0x8c] sm:$0xf]
      %v4524 = vld [vmem:[%s4487 + $0x90] sm:$0xf]
      %v4525 = vld [vmem:[%s4487 + $0x94] sm:$0xf]
      %v4526 = vld [vmem:[%s4487 + $0x98] sm:$0xf]
      %v4527 = vld [vmem:[%s4487 + $0x9c] sm:$0xf]
      %v4528 = vld [vmem:[%s4487 + $0xa0] sm:$0xf]
      %v4529 = vld [vmem:[%s4487 + $0xa4] sm:$0xf]
      %v4530 = vld [vmem:[%s4487 + $0xa8] sm:$0xf]
      %v4531 = vld [vmem:[%s4487 + $0xac] sm:$0xf]
      %v4532 = vld [vmem:[%s4487 + $0xb0] sm:$0xf]
      %v4533 = vld [vmem:[%s4487 + $0xb4] sm:$0xf]
      %v4534 = vld [vmem:[%s4487 + $0xb8] sm:$0xf]
      %v4535 = vld [vmem:[%s4487 + $0xbc] sm:$0xf]
      %v4584 = vunpack.c.l.b16 %v4488
      %v4585 = vunpack.c.l.b16 %v4489
      %v4586 = vunpack.c.l.b16 %v4490
      %v4587 = vunpack.c.l.b16 %v4491
      %v4588 = vunpack.c.l.b16 %v4492
      %v4589 = vunpack.c.l.b16 %v4493
      %v4590 = vunpack.c.l.b16 %v4494
      %v4591 = vunpack.c.l.b16 %v4495
      %v4592 = vunpack.c.l.b16 %v4496
      %v4593 = vunpack.c.l.b16 %v4497
      %v4594 = vunpack.c.l.b16 %v4498
      %v4595 = vunpack.c.l.b16 %v4499
      %v4596 = vunpack.c.l.b16 %v4500
      %v4597 = vunpack.c.l.b16 %v4501
      %v4598 = vunpack.c.l.b16 %v4502
      %v4599 = vunpack.c.l.b16 %v4503
      %v4600 = vunpack.c.l.b16 %v4504
      %v4601 = vunpack.c.l.b16 %v4505
      %v4602 = vunpack.c.l.b16 %v4506
      %v4603 = vunpack.c.l.b16 %v4507
      %v4604 = vunpack.c.l.b16 %v4508
      %v4605 = vunpack.c.l.b16 %v4509
      %v4606 = vunpack.c.l.b16 %v4510
      %v4607 = vunpack.c.l.b16 %v4511
      %v4608 = vunpack.c.l.b16 %v4512
      %v4609 = vunpack.c.l.b16 %v4513
      %v4610 = vunpack.c.l.b16 %v4514
      %v4611 = vunpack.c.l.b16 %v4515
      %v4612 = vunpack.c.l.b16 %v4516
      %v4613 = vunpack.c.l.b16 %v4517
      %v4614 = vunpack.c.l.b16 %v4518
      %v4615 = vunpack.c.l.b16 %v4519
      %v4616 = vunpack.c.l.b16 %v4520
      %v4617 = vunpack.c.l.b16 %v4521
      %v4618 = vunpack.c.l.b16 %v4522
      %v4619 = vunpack.c.l.b16 %v4523
      %v4620 = vunpack.c.l.b16 %v4524
      %v4621 = vunpack.c.l.b16 %v4525
      %v4622 = vunpack.c.l.b16 %v4526
      %v4623 = vunpack.c.l.b16 %v4527
      %v4624 = vunpack.c.l.b16 %v4528
      %v4625 = vunpack.c.l.b16 %v4529
      %v4626 = vunpack.c.l.b16 %v4530
      %v4627 = vunpack.c.l.b16 %v4531
      %v4628 = vunpack.c.l.b16 %v4532
      %v4629 = vunpack.c.l.b16 %v4533
      %v4630 = vunpack.c.l.b16 %v4534
      %v4631 = vunpack.c.l.b16 %v4535
      %v4632 = vpack.c.b16 %v4585, %v4584
      %v4633 = vpack.c.b16 %v4587, %v4586
      %v4634 = vpack.c.b16 %v4589, %v4588
      %v4635 = vpack.c.b16 %v4591, %v4590
      %v4636 = vpack.c.b16 %v4593, %v4592
      %v4637 = vpack.c.b16 %v4595, %v4594
      %v4638 = vpack.c.b16 %v4597, %v4596
      %v4639 = vpack.c.b16 %v4599, %v4598
      %v4640 = vpack.c.b16 %v4601, %v4600
      %v4641 = vpack.c.b16 %v4603, %v4602
      %v4642 = vpack.c.b16 %v4605, %v4604
      %v4643 = vpack.c.b16 %v4607, %v4606
      %v4644 = vpack.c.b16 %v4609, %v4608
      %v4645 = vpack.c.b16 %v4611, %v4610
      %v4646 = vpack.c.b16 %v4613, %v4612
      %v4647 = vpack.c.b16 %v4615, %v4614
      %v4648 = vpack.c.b16 %v4617, %v4616
      %v4649 = vpack.c.b16 %v4619, %v4618
      %v4650 = vpack.c.b16 %v4621, %v4620
      %v4651 = vpack.c.b16 %v4623, %v4622
      %v4652 = vpack.c.b16 %v4625, %v4624
      %v4653 = vpack.c.b16 %v4627, %v4626
      %v4654 = vpack.c.b16 %v4629, %v4628
      %v4655 = vpack.c.b16 %v4631, %v4630
      %4680 = vmatprep.subr.bf16.mxu0 0
      %4681 = vmatpush1.bf16.msra.mxu0 %v4632
      %4682 = vmatprep.subr.bf16.mxu0 0
      %4683 = vmatpush1.bf16.msra.mxu0 %v4633
      %4684 = vmatprep.subr.bf16.mxu0 0
      %4685 = vmatpush1.bf16.msra.mxu0 %v4634
      %4686 = vmatprep.subr.bf16.mxu0 0
      %4687 = vmatpush1.bf16.msra.mxu0 %v4635
      %4688 = vmatprep.subr.bf16.mxu0 0
      %4689 = vmatpush1.bf16.msra.mxu0 %v4636
      %4690 = vmatprep.subr.bf16.mxu0 0
      %4691 = vmatpush1.bf16.msra.mxu0 %v4637
      %4692 = vmatprep.subr.bf16.mxu0 0
      %4693 = vmatpush1.bf16.msra.mxu0 %v4638
      %4694 = vmatprep.subr.bf16.mxu0 0
      %4695 = vmatpush1.bf16.msra.mxu0 %v4639
      %4696 = vmatprep.subr.bf16.mxu0 0
      %4697 = vmatpush1.bf16.msra.mxu0 %v4640
      %4698 = vmatprep.subr.bf16.mxu0 0
      %4699 = vmatpush1.bf16.msra.mxu0 %v4641
      %4700 = vmatprep.subr.bf16.mxu0 0
      %4701 = vmatpush1.bf16.msra.mxu0 %v4642
      %4702 = vmatprep.subr.bf16.mxu0 0
      %4703 = vmatpush1.bf16.msra.mxu0 %v4643
      %4704 = vmatprep.subr.bf16.mxu0 0
      %4705 = vmatpush1.bf16.msra.mxu0 %v4644
      %4706 = vmatprep.subr.bf16.mxu0 0
      %4707 = vmatpush1.bf16.msra.mxu0 %v4645
      %4708 = vmatprep.subr.bf16.mxu0 0
      %4709 = vmatpush1.bf16.msra.mxu0 %v4646
      %4710 = vmatprep.subr.bf16.mxu0 0
      %4711 = vmatpush1.bf16.msra.mxu0 %v4647
      %4712 = vmatprep.mubr.bf16.mxu0 %v4440
      %4713 = vmatmul.mubr.bf16.gmra.mrb[0].mxu0 %v4439
      %v4714 = vpop.f32.mrb[0].mxu0
      %v4715 = vadd.f32 0.0, %v4714
      %v4716 = vpop.f32.mrb[0].mxu0
      %v4717 = vpop.f32.mrb[0].mxu0
      %v4718 = vadd.f32 0.0, %v4717
      %v4719 = vpop.f32.mrb[0].mxu0
      %4720 = vmatprep.mubr.bf16.mxu0 %v4443
      %4721 = vmatmul.mubr.bf16.gmra.mrb[0].mxu0 %v4442
      %v4722 = vpop.f32.mrb[0].mxu0
      %v4723 = vadd.f32 0.0, %v4722
      %v4724 = vpop.f32.mrb[0].mxu0
      %v4725 = vpop.f32.mrb[0].mxu0
      %v4726 = vadd.f32 0.0, %v4725
      %v4727 = vpop.f32.mrb[0].mxu0
      %4728 = vmatprep.mubr.bf16.mxu0 %v4446
      %4729 = vmatmul.mubr.bf16.gmra.mrb[0].mxu0 %v4445
      %v4730 = vpop.f32.mrb[0].mxu0
      %v4731 = vadd.f32 0.0, %v4730
      %v4732 = vpop.f32.mrb[0].mxu0
      %v4733 = vpop.f32.mrb[0].mxu0
      %v4734 = vadd.f32 0.0, %v4733
      %v4735 = vpop.f32.mrb[0].mxu0
      %4736 = vmatprep.mubr.bf16.mxu0 %v4449
      %4737 = vmatmul.mubr.bf16.gmra.mrb[0].mxu0 %v4448
      %v4738 = vpop.f32.mrb[0].mxu0
      %v4739 = vadd.f32 0.0, %v4738
      %v4740 = vpop.f32.mrb[0].mxu0
      %v4741 = vpop.f32.mrb[0].mxu0
      %v4742 = vadd.f32 0.0, %v4741
      %v4743 = vpop.f32.mrb[0].mxu0
      %4744 = vmatprep.mubr.bf16.mxu0 %v4452
      %4745 = vmatmul.mubr.bf16.gmra.mrb[0].mxu0 %v4451
      %v4746 = vpop.f32.mrb[0].mxu0
      %v4747 = vadd.f32 0.0, %v4746
      %v4748 = vpop.f32.mrb[0].mxu0
      %v4749 = vpop.f32.mrb[0].mxu0
      %v4750 = vadd.f32 0.0, %v4749
      %v4751 = vpop.f32.mrb[0].mxu0
      %4752 = vmatprep.mubr.bf16.mxu0 %v4455
      %4753 = vmatmul.mubr.bf16.gmra.mrb[0].mxu0 %v4454
      %v4754 = vpop.f32.mrb[0].mxu0
      %v4755 = vadd.f32 0.0, %v4754
      %v4756 = vpop.f32.mrb[0].mxu0
      %v4757 = vpop.f32.mrb[0].mxu0
      %v4758 = vadd.f32 0.0, %v4757
      %v4759 = vpop.f32.mrb[0].mxu0
      %4760 = vmatprep.mubr.bf16.mxu0 %v4458
      %4761 = vmatmul.mubr.bf16.gmra.mrb[0].mxu0 %v4457
      %v4762 = vpop.f32.mrb[0].mxu0
      %v4763 = vadd.f32 0.0, %v4762
      %v4764 = vpop.f32.mrb[0].mxu0
      %v4765 = vpop.f32.mrb[0].mxu0
      %v4766 = vadd.f32 0.0, %v4765
      %v4767 = vpop.f32.mrb[0].mxu0
      %4768 = vmatprep.mubr.bf16.mxu0 %v4461
      %4769 = vmatmul.mubr.bf16.gmra.mrb[0].mxu0 %v4460
      %v4770 = vpop.f32.mrb[0].mxu0
      %v4771 = vadd.f32 0.0, %v4770
      %v4772 = vpop.f32.mrb[0].mxu0
      %v4773 = vpop.f32.mrb[0].mxu0
      %v4774 = vadd.f32 0.0, %v4773
      %v4775 = vpop.f32.mrb[0].mxu0
      %4776 = vmatprep.mubr.bf16.mxu0 %v4464
      %4777 = vmatmul.mubr.bf16.gmra.mrb[0].mxu0 %v4463
      %v4778 = vpop.f32.mrb[0].mxu0
      %v4779 = vadd.f32 0.0, %v4778
      %v4780 = vpop.f32.mrb[0].mxu0
      %v4781 = vpop.f32.mrb[0].mxu0
      %v4782 = vadd.f32 0.0, %v4781
      %v4783 = vpop.f32.mrb[0].mxu0
      %4784 = vmatprep.mubr.bf16.mxu0 %v4467
      %4785 = vmatmul.mubr.bf16.gmra.mrb[0].mxu0 %v4466
      %v4786 = vpop.f32.mrb[0].mxu0
      %v4787 = vadd.f32 0.0, %v4786
      %v4788 = vpop.f32.mrb[0].mxu0
      %v4789 = vpop.f32.mrb[0].mxu0
      %v4790 = vadd.f32 0.0, %v4789
      %v4791 = vpop.f32.mrb[0].mxu0
      %4792 = vmatprep.mubr.bf16.mxu0 %v4470
      %4793 = vmatmul.mubr.bf16.gmra.mrb[0].mxu0 %v4469
      %v4794 = vpop.f32.mrb[0].mxu0
      %v4795 = vadd.f32 0.0, %v4794
      %v4796 = vpop.f32.mrb[0].mxu0
      %v4797 = vpop.f32.mrb[0].mxu0
      %v4798 = vadd.f32 0.0, %v4797
      %v4799 = vpop.f32.mrb[0].mxu0
      %4800 = vmatprep.mubr.bf16.mxu0 %v4473
      %4801 = vmatmul.mubr.bf16.gmra.mrb[0].mxu0 %v4472
      %v4802 = vpop.f32.mrb[0].mxu0
      %v4803 = vadd.f32 0.0, %v4802
      %v4804 = vpop.f32.mrb[0].mxu0
      %v4805 = vpop.f32.mrb[0].mxu0
      %v4806 = vadd.f32 0.0, %v4805
      %v4807 = vpop.f32.mrb[0].mxu0
      %4808 = vmatprep.mubr.bf16.mxu0 %v4476
      %4809 = vmatmul.mubr.bf16.gmra.mrb[0].mxu0 %v4475
      %v4810 = vpop.f32.mrb[0].mxu0
      %v4811 = vadd.f32 0.0, %v4810
      %v4812 = vpop.f32.mrb[0].mxu0
      %v4813 = vpop.f32.mrb[0].mxu0
      %v4814 = vadd.f32 0.0, %v4813
      %v4815 = vpop.f32.mrb[0].mxu0
      %4816 = vmatprep.mubr.bf16.mxu0 %v4479
      %4817 = vmatmul.mubr.bf16.gmra.mrb[0].mxu0 %v4478
      %v4818 = vpop.f32.mrb[0].mxu0
      %v4819 = vadd.f32 0.0, %v4818
      %v4820 = vpop.f32.mrb[0].mxu0
      %v4821 = vpop.f32.mrb[0].mxu0
      %v4822 = vadd.f32 0.0, %v4821
      %v4823 = vpop.f32.mrb[0].mxu0
      %4824 = vmatprep.mubr.bf16.mxu0 %v4482
      %4825 = vmatmul.mubr.bf16.gmra.mrb[0].mxu0 %v4481
      %v4826 = vpop.f32.mrb[0].mxu0
      %v4827 = vadd.f32 0.0, %v4826
      %v4828 = vpop.f32.mrb[0].mxu0
      %v4829 = vpop.f32.mrb[0].mxu0
      %v4830 = vadd.f32 0.0, %v4829
      %v4831 = vpop.f32.mrb[0].mxu0
      %4832 = vmatprep.mubr.bf16.mxu0 %v4485
      %4833 = vmatmul.mubr.bf16.gmra.mrb[0].mxu0 %v4484
      %v4834 = vpop.f32.mrb[0].mxu0
      %v4835 = vadd.f32 0.0, %v4834
      %v4836 = vpop.f32.mrb[0].mxu0
      %v4837 = vpop.f32.mrb[0].mxu0
      %v4838 = vadd.f32 0.0, %v4837
      %v4839 = vpop.f32.mrb[0].mxu0
      %4840 = vdwg.mxu0
      %4841 = vmatprep.subr.bf16.mxu0 0
      %4842 = vmatpush1.bf16.msra.mxu0 %v4648
      %4843 = vmatprep.subr.bf16.mxu0 0
      %4844 = vmatpush1.bf16.msra.mxu0 %v4649
      %4845 = vmatprep.subr.bf16.mxu0 0
      %4846 = vmatpush1.bf16.msra.mxu0 %v4650
      %4847 = vmatprep.subr.bf16.mxu0 0
      %4848 = vmatpush1.bf16.msra.mxu0 %v4651
      %4849 = vmatprep.subr.bf16.mxu0 0
      %4850 = vmatpush1.bf16.msra.mxu0 %v4652
      %4851 = vmatprep.subr.bf16.mxu0 0
      %4852 = vmatpush1.bf16.msra.mxu0 %v4653
      %4853 = vmatprep.subr.bf16.mxu0 0
      %4854 = vmatpush1.bf16.msra.mxu0 %v4654
      %4855 = vmatprep.subr.bf16.mxu0 0
      %4856 = vmatpush1.bf16.msra.mxu0 %v4655
      %4857 = vmatprep.subr.bf16.mxu0 0
      %4858 = vmatpush1.bf16.msra.mxu0 0
      %4859 = vmatprep.subr.bf16.mxu0 0
      %4860 = vmatpush1.bf16.msra.mxu0 0
      %4861 = vmatprep.subr.bf16.mxu0 0
      %4862 = vmatpush1.bf16.msra.mxu0 0
      %4863 = vmatprep.subr.bf16.mxu0 0
      %4864 = vmatpush1.bf16.msra.mxu0 0
      %4865 = vmatprep.subr.bf16.mxu0 0
      %4866 = vmatpush1.bf16.msra.mxu0 0
      %4867 = vmatprep.subr.bf16.mxu0 0
      %4868 = vmatpush1.bf16.msra.mxu0 0
      %4869 = vmatprep.subr.bf16.mxu0 0
      %4870 = vmatpush1.bf16.msra.mxu0 0
      %4871 = vmatprep.subr.bf16.mxu0 0
      %4872 = vmatpush1.bf16.msra.mxu0 0
      %4873 = vmatprep.mubr.bf16.mxu0 0
      %4874 = vmatmul.mubr.bf16.gmra.mrb[0].mxu0 %v4441
      %v4875 = vpop.f32.mrb[0].mxu0
      %v4876 = vadd.f32 %v4715, %v4875
      %v4877 = vpop.f32.mrb[0].mxu0
      %v4878 = vpop.f32.mrb[0].mxu0
      %v4879 = vadd.f32 %v4718, %v4878
      %v4880 = vpop.f32.mrb[0].mxu0
      %4881 = vmatprep.mubr.bf16.mxu0 0
      %4882 = vmatmul.mubr.bf16.gmra.mrb[0].mxu0 %v4444
      %v4883 = vpop.f32.mrb[0].mxu0
      %v4884 = vadd.f32 %v4723, %v4883
      %v4885 = vpop.f32.mrb[0].mxu0
      %v4886 = vpop.f32.mrb[0].mxu0
      %v4887 = vadd.f32 %v4726, %v4886
      %v4888 = vpop.f32.mrb[0].mxu0
      %4889 = vmatprep.mubr.bf16.mxu0 0
      %4890 = vmatmul.mubr.bf16.gmra.mrb[0].mxu0 %v4447
      %v4891 = vpop.f32.mrb[0].mxu0
      %v4892 = vadd.f32 %v4731, %v4891
      %v4893 = vpop.f32.mrb[0].mxu0
      %v4894 = vpop.f32.mrb[0].mxu0
      %v4895 = vadd.f32 %v4734, %v4894
      %v4896 = vpop.f32.mrb[0].mxu0
      %4897 = vmatprep.mubr.bf16.mxu0 0
      %4898 = vmatmul.mubr.bf16.gmra.mrb[0].mxu0 %v4450
      %v4899 = vpop.f32.mrb[0].mxu0
      %v4900 = vadd.f32 %v4739, %v4899
      %v4901 = vpop.f32.mrb[0].mxu0
      %v4902 = vpop.f32.mrb[0].mxu0
      %v4903 = vadd.f32 %v4742, %v4902
      %v4904 = vpop.f32.mrb[0].mxu0
      %4905 = vmatprep.mubr.bf16.mxu0 0
      %4906 = vmatmul.mubr.bf16.gmra.mrb[0].mxu0 %v4453
      %v4907 = vpop.f32.mrb[0].mxu0
      %v4908 = vadd.f32 %v4747, %v4907
      %v4909 = vpop.f32.mrb[0].mxu0
      %v4910 = vpop.f32.mrb[0].mxu0
      %v4911 = vadd.f32 %v4750, %v4910
      %v4912 = vpop.f32.mrb[0].mxu0
      %4913 = vmatprep.mubr.bf16.mxu0 0
      %4914 = vmatmul.mubr.bf16.gmra.mrb[0].mxu0 %v4456
      %v4915 = vpop.f32.mrb[0].mxu0
      %v4916 = vadd.f32 %v4755, %v4915
      %v4917 = vpop.f32.mrb[0].mxu0
      %v4918 = vpop.f32.mrb[0].mxu0
      %v4919 = vadd.f32 %v4758, %v4918
      %v4920 = vpop.f32.mrb[0].mxu0
      %4921 = vmatprep.mubr.bf16.mxu0 0
      %4922 = vmatmul.mubr.bf16.gmra.mrb[0].mxu0 %v4459
      %v4923 = vpop.f32.mrb[0].mxu0
      %v4924 = vadd.f32 %v4763, %v4923
      %v4925 = vpop.f32.mrb[0].mxu0
      %v4926 = vpop.f32.mrb[0].mxu0
      %v4927 = vadd.f32 %v4766, %v4926
      %v4928 = vpop.f32.mrb[0].mxu0
      %4929 = vmatprep.mubr.bf16.mxu0 0
      %4930 = vmatmul.mubr.bf16.gmra.mrb[0].mxu0 %v4462
      %v4931 = vpop.f32.mrb[0].mxu0
      %v4932 = vadd.f32 %v4771, %v4931
      %v4933 = vpop.f32.mrb[0].mxu0
      %v4934 = vpop.f32.mrb[0].mxu0
      %v4935 = vadd.f32 %v4774, %v4934
      %v4936 = vpop.f32.mrb[0].mxu0
      %4937 = vmatprep.mubr.bf16.mxu0 0
      %4938 = vmatmul.mubr.bf16.gmra.mrb[0].mxu0 %v4465
      %v4939 = vpop.f32.mrb[0].mxu0
      %v4940 = vadd.f32 %v4779, %v4939
      %v4941 = vpop.f32.mrb[0].mxu0
      %v4942 = vpop.f32.mrb[0].mxu0
      %v4943 = vadd.f32 %v4782, %v4942
      %v4944 = vpop.f32.mrb[0].mxu0
      %4945 = vmatprep.mubr.bf16.mxu0 0
      %4946 = vmatmul.mubr.bf16.gmra.mrb[0].mxu0 %v4468
      %v4947 = vpop.f32.mrb[0].mxu0
      %v4948 = vadd.f32 %v4787, %v4947
      %v4949 = vpop.f32.mrb[0].mxu0
      %v4950 = vpop.f32.mrb[0].mxu0
      %v4951 = vadd.f32 %v4790, %v4950
      %v4952 = vpop.f32.mrb[0].mxu0
      %4953 = vmatprep.mubr.bf16.mxu0 0
      %4954 = vmatmul.mubr.bf16.gmra.mrb[0].mxu0 %v4471
      %v4955 = vpop.f32.mrb[0].mxu0
      %v4956 = vadd.f32 %v4795, %v4955
      %v4957 = vpop.f32.mrb[0].mxu0
      %v4958 = vpop.f32.mrb[0].mxu0
      %v4959 = vadd.f32 %v4798, %v4958
      %v4960 = vpop.f32.mrb[0].mxu0
      %4961 = vmatprep.mubr.bf16.mxu0 0
      %4962 = vmatmul.mubr.bf16.gmra.mrb[0].mxu0 %v4474
      %v4963 = vpop.f32.mrb[0].mxu0
      %v4964 = vadd.f32 %v4803, %v4963
      %v4965 = vpop.f32.mrb[0].mxu0
      %v4966 = vpop.f32.mrb[0].mxu0
      %v4967 = vadd.f32 %v4806, %v4966
      %v4968 = vpop.f32.mrb[0].mxu0
      %4969 = vmatprep.mubr.bf16.mxu0 0
      %4970 = vmatmul.mubr.bf16.gmra.mrb[0].mxu0 %v4477
      %v4971 = vpop.f32.mrb[0].mxu0
      %v4972 = vadd.f32 %v4811, %v4971
      %v4973 = vpop.f32.mrb[0].mxu0
      %v4974 = vpop.f32.mrb[0].mxu0
      %v4975 = vadd.f32 %v4814, %v4974
      %v4976 = vpop.f32.mrb[0].mxu0
      %4977 = vmatprep.mubr.bf16.mxu0 0
      %4978 = vmatmul.mubr.bf16.gmra.mrb[0].mxu0 %v4480
      %v4979 = vpop.f32.mrb[0].mxu0
      %v4980 = vadd.f32 %v4819, %v4979
      %v4981 = vpop.f32.mrb[0].mxu0
      %v4982 = vpop.f32.mrb[0].mxu0
      %v4983 = vadd.f32 %v4822, %v4982
      %v4984 = vpop.f32.mrb[0].mxu0
      %4985 = vmatprep.mubr.bf16.mxu0 0
      %4986 = vmatmul.mubr.bf16.gmra.mrb[0].mxu0 %v4483
      %v4987 = vpop.f32.mrb[0].mxu0
      %v4988 = vadd.f32 %v4827, %v4987
      %v4989 = vpop.f32.mrb[0].mxu0
      %v4990 = vpop.f32.mrb[0].mxu0
      %v4991 = vadd.f32 %v4830, %v4990
      %v4992 = vpop.f32.mrb[0].mxu0
      %4993 = vmatprep.mubr.bf16.mxu0 0
      %4994 = vmatmul.mubr.bf16.gmra.mrb[0].mxu0 %v4486
      %v4995 = vpop.f32.mrb[0].mxu0
      %v4996 = vadd.f32 %v4835, %v4995
      %v4997 = vpop.f32.mrb[0].mxu0
      %v4998 = vpop.f32.mrb[0].mxu0
      %v4999 = vadd.f32 %v4838, %v4998
      %v5000 = vpop.f32.mrb[0].mxu0
      %5001 = vdwg.mxu0
      %v5050 = vunpack.c.l.b16 %v4391
      %v5051 = vunpack.c.l.b16 %v4392
      %v5052 = vunpack.c.l.b16 %v4393
      %v5053 = vunpack.c.l.b16 %v4394
      %v5054 = vunpack.c.l.b16 %v4395
      %v5055 = vunpack.c.l.b16 %v4396
      %v5056 = vunpack.c.l.b16 %v4397
      %v5057 = vunpack.c.l.b16 %v4398
      %v5058 = vunpack.c.l.b16 %v4399
      %v5059 = vunpack.c.l.b16 %v4400
      %v5060 = vunpack.c.l.b16 %v4401
      %v5061 = vunpack.c.l.b16 %v4402
      %v5062 = vunpack.c.l.b16 %v4403
      %v5063 = vunpack.c.l.b16 %v4404
      %v5064 = vunpack.c.l.b16 %v4405
      %v5065 = vunpack.c.l.b16 %v4406
      %v5066 = vunpack.c.l.b16 %v4407
      %v5067 = vunpack.c.l.b16 %v4408
      %v5068 = vunpack.c.l.b16 %v4409
      %v5069 = vunpack.c.l.b16 %v4410
      %v5070 = vunpack.c.l.b16 %v4411
      %v5071 = vunpack.c.l.b16 %v4412
      %v5072 = vunpack.c.l.b16 %v4413
      %v5073 = vunpack.c.l.b16 %v4414
      %v5074 = vunpack.c.l.b16 %v4415
      %v5075 = vunpack.c.l.b16 %v4416
      %v5076 = vunpack.c.l.b16 %v4417
      %v5077 = vunpack.c.l.b16 %v4418
      %v5078 = vunpack.c.l.b16 %v4419
      %v5079 = vunpack.c.l.b16 %v4420
      %v5080 = vunpack.c.l.b16 %v4421
      %v5081 = vunpack.c.l.b16 %v4422
      %v5082 = vunpack.c.l.b16 %v4423
      %v5083 = vunpack.c.l.b16 %v4424
      %v5084 = vunpack.c.l.b16 %v4425
      %v5085 = vunpack.c.l.b16 %v4426
      %v5086 = vunpack.c.l.b16 %v4427
      %v5087 = vunpack.c.l.b16 %v4428
      %v5088 = vunpack.c.l.b16 %v4429
      %v5089 = vunpack.c.l.b16 %v4430
      %v5090 = vunpack.c.l.b16 %v4431
      %v5091 = vunpack.c.l.b16 %v4432
      %v5092 = vunpack.c.l.b16 %v4433
      %v5093 = vunpack.c.l.b16 %v4434
      %v5094 = vunpack.c.l.b16 %v4435
      %v5095 = vunpack.c.l.b16 %v4436
      %v5096 = vunpack.c.l.b16 %v4437
      %v5097 = vunpack.c.l.b16 %v4438
      %v5098 = vpack.c.b16 %v5051, %v5050
      %v5099 = vpack.c.b16 %v5053, %v5052
      %v5100 = vpack.c.b16 %v5055, %v5054
      %v5101 = vpack.c.b16 %v5057, %v5056
      %v5102 = vpack.c.b16 %v5059, %v5058
      %v5103 = vpack.c.b16 %v5061, %v5060
      %v5104 = vpack.c.b16 %v5063, %v5062
      %v5105 = vpack.c.b16 %v5065, %v5064
      %v5106 = vpack.c.b16 %v5067, %v5066
      %v5107 = vpack.c.b16 %v5069, %v5068
      %v5108 = vpack.c.b16 %v5071, %v5070
      %v5109 = vpack.c.b16 %v5073, %v5072
      %v5110 = vpack.c.b16 %v5075, %v5074
      %v5111 = vpack.c.b16 %v5077, %v5076
      %v5112 = vpack.c.b16 %v5079, %v5078
      %v5113 = vpack.c.b16 %v5081, %v5080
      %v5114 = vpack.c.b16 %v5083, %v5082
      %v5115 = vpack.c.b16 %v5085, %v5084
      %v5116 = vpack.c.b16 %v5087, %v5086
      %v5117 = vpack.c.b16 %v5089, %v5088
      %v5118 = vpack.c.b16 %v5091, %v5090
      %v5119 = vpack.c.b16 %v5093, %v5092
      %v5120 = vpack.c.b16 %v5095, %v5094
      %v5121 = vpack.c.b16 %v5097, %v5096
      %5146 = vmatprep.subr.bf16.mxu0 0
      %5147 = vmatpush1.bf16.msra.mxu0 %v5098
      %5148 = vmatprep.subr.bf16.mxu0 0
      %5149 = vmatpush1.bf16.msra.mxu0 %v5099
      %5150 = vmatprep.subr.bf16.mxu0 0
      %5151 = vmatpush1.bf16.msra.mxu0 %v5100
      %5152 = vmatprep.subr.bf16.mxu0 0
      %5153 = vmatpush1.bf16.msra.mxu0 %v5101
      %5154 = vmatprep.subr.bf16.mxu0 0
      %5155 = vmatpush1.bf16.msra.mxu0 %v5102
      %5156 = vmatprep.subr.bf16.mxu0 0
      %5157 = vmatpush1.bf16.msra.mxu0 %v5103
      %5158 = vmatprep.subr.bf16.mxu0 0
      %5159 = vmatpush1.bf16.msra.mxu0 %v5104
      %5160 = vmatprep.subr.bf16.mxu0 0
      %5161 = vmatpush1.bf16.msra.mxu0 %v5105
      %5162 = vmatprep.subr.bf16.mxu0 0
      %5163 = vmatpush1.bf16.msra.mxu0 %v5106
      %5164 = vmatprep.subr.bf16.mxu0 0
      %5165 = vmatpush1.bf16.msra.mxu0 %v5107
      %5166 = vmatprep.subr.bf16.mxu0 0
      %5167 = vmatpush1.bf16.msra.mxu0 %v5108
      %5168 = vmatprep.subr.bf16.mxu0 0
      %5169 = vmatpush1.bf16.msra.mxu0 %v5109
      %5170 = vmatprep.subr.bf16.mxu0 0
      %5171 = vmatpush1.bf16.msra.mxu0 %v5110
      %5172 = vmatprep.subr.bf16.mxu0 0
      %5173 = vmatpush1.bf16.msra.mxu0 %v5111
      %5174 = vmatprep.subr.bf16.mxu0 0
      %5175 = vmatpush1.bf16.msra.mxu0 %v5112
      %5176 = vmatprep.subr.bf16.mxu0 0
      %5177 = vmatpush1.bf16.msra.mxu0 %v5113
      %5178 = vmatprep.mubr.bf16.mxu0 %v4344
      %5179 = vmatmul.mubr.bf16.gmra.mrb[0].mxu0 %v4343
      %v5180 = vpop.f32.mrb[0].mxu0
      %v5181 = vadd.f32 %v4876, %v5180
      %v5182 = vpop.f32.mrb[0].mxu0
      %v5183 = vpop.f32.mrb[0].mxu0
      %v5184 = vadd.f32 %v4879, %v5183
      %v5185 = vpop.f32.mrb[0].mxu0
      %5186 = vmatprep.mubr.bf16.mxu0 %v4347
      %5187 = vmatmul.mubr.bf16.gmra.mrb[0].mxu0 %v4346
      %v5188 = vpop.f32.mrb[0].mxu0
      %v5189 = vadd.f32 %v4884, %v5188
      %v5190 = vpop.f32.mrb[0].mxu0
      %v5191 = vpop.f32.mrb[0].mxu0
      %v5192 = vadd.f32 %v4887, %v5191
      %v5193 = vpop.f32.mrb[0].mxu0
      %5194 = vmatprep.mubr.bf16.mxu0 %v4350
      %5195 = vmatmul.mubr.bf16.gmra.mrb[0].mxu0 %v4349
      %v5196 = vpop.f32.mrb[0].mxu0
      %v5197 = vadd.f32 %v4892, %v5196
      %v5198 = vpop.f32.mrb[0].mxu0
      %v5199 = vpop.f32.mrb[0].mxu0
      %v5200 = vadd.f32 %v4895, %v5199
      %v5201 = vpop.f32.mrb[0].mxu0
      %5202 = vmatprep.mubr.bf16.mxu0 %v4353
      %5203 = vmatmul.mubr.bf16.gmra.mrb[0].mxu0 %v4352
      %v5204 = vpop.f32.mrb[0].mxu0
      %v5205 = vadd.f32 %v4900, %v5204
      %v5206 = vpop.f32.mrb[0].mxu0
      %v5207 = vpop.f32.mrb[0].mxu0
      %v5208 = vadd.f32 %v4903, %v5207
      %v5209 = vpop.f32.mrb[0].mxu0
      %5210 = vmatprep.mubr.bf16.mxu0 %v4356
      %5211 = vmatmul.mubr.bf16.gmra.mrb[0].mxu0 %v4355
      %v5212 = vpop.f32.mrb[0].mxu0
      %v5213 = vadd.f32 %v4908, %v5212
      %v5214 = vpop.f32.mrb[0].mxu0
      %v5215 = vpop.f32.mrb[0].mxu0
      %v5216 = vadd.f32 %v4911, %v5215
      %v5217 = vpop.f32.mrb[0].mxu0
      %5218 = vmatprep.mubr.bf16.mxu0 %v4359
      %5219 = vmatmul.mubr.bf16.gmra.mrb[0].mxu0 %v4358
      %v5220 = vpop.f32.mrb[0].mxu0
      %v5221 = vadd.f32 %v4916, %v5220
      %v5222 = vpop.f32.mrb[0].mxu0
      %v5223 = vpop.f32.mrb[0].mxu0
      %v5224 = vadd.f32 %v4919, %v5223
      %v5225 = vpop.f32.mrb[0].mxu0
      %5226 = vmatprep.mubr.bf16.mxu0 %v4362
      %5227 = vmatmul.mubr.bf16.gmra.mrb[0].mxu0 %v4361
      %v5228 = vpop.f32.mrb[0].mxu0
      %v5229 = vadd.f32 %v4924, %v5228
      %v5230 = vpop.f32.mrb[0].mxu0
      %v5231 = vpop.f32.mrb[0].mxu0
      %v5232 = vadd.f32 %v4927, %v5231
      %v5233 = vpop.f32.mrb[0].mxu0
      %5234 = vmatprep.mubr.bf16.mxu0 %v4365
      %5235 = vmatmul.mubr.bf16.gmra.mrb[0].mxu0 %v4364
      %v5236 = vpop.f32.mrb[0].mxu0
      %v5237 = vadd.f32 %v4932, %v5236
      %v5238 = vpop.f32.mrb[0].mxu0
      %v5239 = vpop.f32.mrb[0].mxu0
      %v5240 = vadd.f32 %v4935, %v5239
      %v5241 = vpop.f32.mrb[0].mxu0
      %5242 = vmatprep.mubr.bf16.mxu0 %v4368
      %5243 = vmatmul.mubr.bf16.gmra.mrb[0].mxu0 %v4367
      %v5244 = vpop.f32.mrb[0].mxu0
      %v5245 = vadd.f32 %v4940, %v5244
      %v5246 = vpop.f32.mrb[0].mxu0
      %v5247 = vpop.f32.mrb[0].mxu0
      %v5248 = vadd.f32 %v4943, %v5247
      %v5249 = vpop.f32.mrb[0].mxu0
      %5250 = vmatprep.mubr.bf16.mxu0 %v4371
      %5251 = vmatmul.mubr.bf16.gmra.mrb[0].mxu0 %v4370
      %v5252 = vpop.f32.mrb[0].mxu0
      %v5253 = vadd.f32 %v4948, %v5252
      %v5254 = vpop.f32.mrb[0].mxu0
      %v5255 = vpop.f32.mrb[0].mxu0
      %v5256 = vadd.f32 %v4951, %v5255
      %v5257 = vpop.f32.mrb[0].mxu0
      %5258 = vmatprep.mubr.bf16.mxu0 %v4374
      %5259 = vmatmul.mubr.bf16.gmra.mrb[0].mxu0 %v4373
      %v5260 = vpop.f32.mrb[0].mxu0
      %v5261 = vadd.f32 %v4956, %v5260
      %v5262 = vpop.f32.mrb[0].mxu0
      %v5263 = vpop.f32.mrb[0].mxu0
      %v5264 = vadd.f32 %v4959, %v5263
      %v5265 = vpop.f32.mrb[0].mxu0
      %5266 = vmatprep.mubr.bf16.mxu0 %v4377
      %5267 = vmatmul.mubr.bf16.gmra.mrb[0].mxu0 %v4376
      %v5268 = vpop.f32.mrb[0].mxu0
      %v5269 = vadd.f32 %v4964, %v5268
      %v5270 = vpop.f32.mrb[0].mxu0
      %v5271 = vpop.f32.mrb[0].mxu0
      %v5272 = vadd.f32 %v4967, %v5271
      %v5273 = vpop.f32.mrb[0].mxu0
      %5274 = vmatprep.mubr.bf16.mxu0 %v4380
      %5275 = vmatmul.mubr.bf16.gmra.mrb[0].mxu0 %v4379
      %v5276 = vpop.f32.mrb[0].mxu0
      %v5277 = vadd.f32 %v4972, %v5276
      %v5278 = vpop.f32.mrb[0].mxu0
      %v5279 = vpop.f32.mrb[0].mxu0
      %v5280 = vadd.f32 %v4975, %v5279
      %v5281 = vpop.f32.mrb[0].mxu0
      %5282 = vmatprep.mubr.bf16.mxu0 %v4383
      %5283 = vmatmul.mubr.bf16.gmra.mrb[0].mxu0 %v4382
      %v5284 = vpop.f32.mrb[0].mxu0
      %v5285 = vadd.f32 %v4980, %v5284
      %v5286 = vpop.f32.mrb[0].mxu0
      %v5287 = vpop.f32.mrb[0].mxu0
      %v5288 = vadd.f32 %v4983, %v5287
      %v5289 = vpop.f32.mrb[0].mxu0
      %5290 = vmatprep.mubr.bf16.mxu0 %v4386
      %5291 = vmatmul.mubr.bf16.gmra.mrb[0].mxu0 %v4385
      %v5292 = vpop.f32.mrb[0].mxu0
      %v5293 = vadd.f32 %v4988, %v5292
      %v5294 = vpop.f32.mrb[0].mxu0
      %v5295 = vpop.f32.mrb[0].mxu0
      %v5296 = vadd.f32 %v4991, %v5295
      %v5297 = vpop.f32.mrb[0].mxu0
      %5298 = vmatprep.mubr.bf16.mxu0 %v4389
      %5299 = vmatmul.mubr.bf16.gmra.mrb[0].mxu0 %v4388
      %v5300 = vpop.f32.mrb[0].mxu0
      %v5301 = vadd.f32 %v4996, %v5300
      %v5302 = vpop.f32.mrb[0].mxu0
      %v5303 = vpop.f32.mrb[0].mxu0
      %v5304 = vadd.f32 %v4999, %v5303
      %v5305 = vpop.f32.mrb[0].mxu0
      %5306 = vdwg.mxu0
      %5307 = vmatprep.subr.bf16.mxu0 0
      %5308 = vmatpush1.bf16.msra.mxu0 %v5114
      %5309 = vmatprep.subr.bf16.mxu0 0
      %5310 = vmatpush1.bf16.msra.mxu0 %v5115
      %5311 = vmatprep.subr.bf16.mxu0 0
      %5312 = vmatpush1.bf16.msra.mxu0 %v5116
      %5313 = vmatprep.subr.bf16.mxu0 0
      %5314 = vmatpush1.bf16.msra.mxu0 %v5117
      %5315 = vmatprep.subr.bf16.mxu0 0
      %5316 = vmatpush1.bf16.msra.mxu0 %v5118
      %5317 = vmatprep.subr.bf16.mxu0 0
      %5318 = vmatpush1.bf16.msra.mxu0 %v5119
      %5319 = vmatprep.subr.bf16.mxu0 0
      %5320 = vmatpush1.bf16.msra.mxu0 %v5120
      %5321 = vmatprep.subr.bf16.mxu0 0
      %5322 = vmatpush1.bf16.msra.mxu0 %v5121
      %5323 = vmatprep.subr.bf16.mxu0 0
      %5324 = vmatpush1.bf16.msra.mxu0 0
      %5325 = vmatprep.subr.bf16.mxu0 0
      %5326 = vmatpush1.bf16.msra.mxu0 0
      %5327 = vmatprep.subr.bf16.mxu0 0
      %5328 = vmatpush1.bf16.msra.mxu0 0
      %5329 = vmatprep.subr.bf16.mxu0 0
      %5330 = vmatpush1.bf16.msra.mxu0 0
      %5331 = vmatprep.subr.bf16.mxu0 0
      %5332 = vmatpush1.bf16.msra.mxu0 0
      %5333 = vmatprep.subr.bf16.mxu0 0
      %5334 = vmatpush1.bf16.msra.mxu0 0
      %5335 = vmatprep.subr.bf16.mxu0 0
      %5336 = vmatpush1.bf16.msra.mxu0 0
      %5337 = vmatprep.subr.bf16.mxu0 0
      %5338 = vmatpush1.bf16.msra.mxu0 0
      %5339 = vmatprep.mubr.bf16.mxu0 0
      %5340 = vmatmul.mubr.bf16.gmra.mrb[0].mxu0 %v4345
      %v5341 = vpop.f32.mrb[0].mxu0
      %v5342 = vadd.f32 %v5181, %v5341
      %v5343 = vpop.f32.mrb[0].mxu0
      %v5344 = vpop.f32.mrb[0].mxu0
      %v5345 = vadd.f32 %v5184, %v5344
      %v5346 = vpop.f32.mrb[0].mxu0
      %5347 = vmatprep.mubr.bf16.mxu0 0
      %5348 = vmatmul.mubr.bf16.gmra.mrb[0].mxu0 %v4348
      %v5349 = vpop.f32.mrb[0].mxu0
      %v5350 = vadd.f32 %v5189, %v5349
      %v5351 = vpop.f32.mrb[0].mxu0
      %v5352 = vpop.f32.mrb[0].mxu0
      %v5353 = vadd.f32 %v5192, %v5352
      %v5354 = vpop.f32.mrb[0].mxu0
      %5355 = vmatprep.mubr.bf16.mxu0 0
      %5356 = vmatmul.mubr.bf16.gmra.mrb[0].mxu0 %v4351
      %v5357 = vpop.f32.mrb[0].mxu0
      %v5358 = vadd.f32 %v5197, %v5357
      %v5359 = vpop.f32.mrb[0].mxu0
      %v5360 = vpop.f32.mrb[0].mxu0
      %v5361 = vadd.f32 %v5200, %v5360
      %v5362 = vpop.f32.mrb[0].mxu0
      %5363 = vmatprep.mubr.bf16.mxu0 0
      %5364 = vmatmul.mubr.bf16.gmra.mrb[0].mxu0 %v4354
      %v5365 = vpop.f32.mrb[0].mxu0
      %v5366 = vadd.f32 %v5205, %v5365
      %v5367 = vpop.f32.mrb[0].mxu0
      %v5368 = vpop.f32.mrb[0].mxu0
      %v5369 = vadd.f32 %v5208, %v5368
      %v5370 = vpop.f32.mrb[0].mxu0
      %5371 = vmatprep.mubr.bf16.mxu0 0
      %5372 = vmatmul.mubr.bf16.gmra.mrb[0].mxu0 %v4357
      %v5373 = vpop.f32.mrb[0].mxu0
      %v5374 = vadd.f32 %v5213, %v5373
      %v5375 = vpop.f32.mrb[0].mxu0
      %v5376 = vpop.f32.mrb[0].mxu0
      %v5377 = vadd.f32 %v5216, %v5376
      %v5378 = vpop.f32.mrb[0].mxu0
      %5379 = vmatprep.mubr.bf16.mxu0 0
      %5380 = vmatmul.mubr.bf16.gmra.mrb[0].mxu0 %v4360
      %v5381 = vpop.f32.mrb[0].mxu0
      %v5382 = vadd.f32 %v5221, %v5381
      %v5383 = vpop.f32.mrb[0].mxu0
      %v5384 = vpop.f32.mrb[0].mxu0
      %v5385 = vadd.f32 %v5224, %v5384
      %v5386 = vpop.f32.mrb[0].mxu0
      %5387 = vmatprep.mubr.bf16.mxu0 0
      %5388 = vmatmul.mubr.bf16.gmra.mrb[0].mxu0 %v4363
      %v5389 = vpop.f32.mrb[0].mxu0
      %v5390 = vadd.f32 %v5229, %v5389
      %v5391 = vpop.f32.mrb[0].mxu0
      %v5392 = vpop.f32.mrb[0].mxu0
      %v5393 = vadd.f32 %v5232, %v5392
      %v5394 = vpop.f32.mrb[0].mxu0
      %5395 = vmatprep.mubr.bf16.mxu0 0
      %5396 = vmatmul.mubr.bf16.gmra.mrb[0].mxu0 %v4366
      %v5397 = vpop.f32.mrb[0].mxu0
      %v5398 = vadd.f32 %v5237, %v5397
      %v5399 = vpop.f32.mrb[0].mxu0
      %v5400 = vpop.f32.mrb[0].mxu0
      %v5401 = vadd.f32 %v5240, %v5400
      %v5402 = vpop.f32.mrb[0].mxu0
      %5403 = vmatprep.mubr.bf16.mxu0 0
      %5404 = vmatmul.mubr.bf16.gmra.mrb[0].mxu0 %v4369
      %v5405 = vpop.f32.mrb[0].mxu0
      %v5406 = vadd.f32 %v5245, %v5405
      %v5407 = vpop.f32.mrb[0].mxu0
      %v5408 = vpop.f32.mrb[0].mxu0
      %v5409 = vadd.f32 %v5248, %v5408
      %v5410 = vpop.f32.mrb[0].mxu0
      %5411 = vmatprep.mubr.bf16.mxu0 0
      %5412 = vmatmul.mubr.bf16.gmra.mrb[0].mxu0 %v4372
      %v5413 = vpop.f32.mrb[0].mxu0
      %v5414 = vadd.f32 %v5253, %v5413
      %v5415 = vpop.f32.mrb[0].mxu0
      %v5416 = vpop.f32.mrb[0].mxu0
      %v5417 = vadd.f32 %v5256, %v5416
      %v5418 = vpop.f32.mrb[0].mxu0
      %5419 = vmatprep.mubr.bf16.mxu0 0
      %5420 = vmatmul.mubr.bf16.gmra.mrb[0].mxu0 %v4375
      %v5421 = vpop.f32.mrb[0].mxu0
      %v5422 = vadd.f32 %v5261, %v5421
      %v5423 = vpop.f32.mrb[0].mxu0
      %v5424 = vpop.f32.mrb[0].mxu0
      %v5425 = vadd.f32 %v5264, %v5424
      %v5426 = vpop.f32.mrb[0].mxu0
      %5427 = vmatprep.mubr.bf16.mxu0 0
      %5428 = vmatmul.mubr.bf16.gmra.mrb[0].mxu0 %v4378
      %v5429 = vpop.f32.mrb[0].mxu0
      %v5430 = vadd.f32 %v5269, %v5429
      %v5431 = vpop.f32.mrb[0].mxu0
      %v5432 = vpop.f32.mrb[0].mxu0
      %v5433 = vadd.f32 %v5272, %v5432
      %v5434 = vpop.f32.mrb[0].mxu0
      %5435 = vmatprep.mubr.bf16.mxu0 0
      %5436 = vmatmul.mubr.bf16.gmra.mrb[0].mxu0 %v4381
      %v5437 = vpop.f32.mrb[0].mxu0
      %v5438 = vadd.f32 %v5277, %v5437
      %v5439 = vpop.f32.mrb[0].mxu0
      %v5440 = vpop.f32.mrb[0].mxu0
      %v5441 = vadd.f32 %v5280, %v5440
      %v5442 = vpop.f32.mrb[0].mxu0
      %5443 = vmatprep.mubr.bf16.mxu0 0
      %5444 = vmatmul.mubr.bf16.gmra.mrb[0].mxu0 %v4384
      %v5445 = vpop.f32.mrb[0].mxu0
      %v5446 = vadd.f32 %v5285, %v5445
      %v5447 = vpop.f32.mrb[0].mxu0
      %v5448 = vpop.f32.mrb[0].mxu0
      %v5449 = vadd.f32 %v5288, %v5448
      %v5450 = vpop.f32.mrb[0].mxu0
      %5451 = vmatprep.mubr.bf16.mxu0 0
      %5452 = vmatmul.mubr.bf16.gmra.mrb[0].mxu0 %v4387
      %v5453 = vpop.f32.mrb[0].mxu0
      %v5454 = vadd.f32 %v5293, %v5453
      %v5455 = vpop.f32.mrb[0].mxu0
      %v5456 = vpop.f32.mrb[0].mxu0
      %v5457 = vadd.f32 %v5296, %v5456
      %v5458 = vpop.f32.mrb[0].mxu0
      %5459 = vmatprep.mubr.bf16.mxu0 0
      %5460 = vmatmul.mubr.bf16.gmra.mrb[0].mxu0 %v4390
      %v5461 = vpop.f32.mrb[0].mxu0
      %v5462 = vadd.f32 %v5301, %v5461
      %v5463 = vpop.f32.mrb[0].mxu0
      %v5464 = vpop.f32.mrb[0].mxu0
      %v5465 = vadd.f32 %v5304, %v5464
      %v5466 = vpop.f32.mrb[0].mxu0
      %5467 = vdwg.mxu0
      %v5468 = vld [vmem:[%s2319] sm:$0xff]
      %v5469 = vld [vmem:[%s2319 + $0x8] sm:$0xff]
      %v5470 = vld [vmem:[%s2319 + $0x10] sm:$0xff]
      %v5471 = vld [vmem:[%s2319 + $0x18] sm:$0xff]
      %v5472 = vld [vmem:[%s2319 + $0x20] sm:$0xff]
      %v5473 = vld [vmem:[%s2319 + $0x28] sm:$0xff]
      %v5474 = vld [vmem:[%s2319 + $0x30] sm:$0xff]
      %v5475 = vld [vmem:[%s2319 + $0x38] sm:$0xff]
      %v5476 = vld [vmem:[%s2319 + $0x40] sm:$0xff]
      %v5477 = vld [vmem:[%s2319 + $0x48] sm:$0xff]
      %v5478 = vld [vmem:[%s2319 + $0x50] sm:$0xff]
      %v5479 = vld [vmem:[%s2319 + $0x58] sm:$0xff]
      %v5480 = vld [vmem:[%s2319 + $0x60] sm:$0xff]
      %v5481 = vld [vmem:[%s2319 + $0x68] sm:$0xff]
      %v5482 = vld [vmem:[%s2319 + $0x70] sm:$0xff]
      %v5483 = vld [vmem:[%s2319 + $0x78] sm:$0xff]
      %v5484 = vld [vmem:[%s2319 + $0x80] sm:$0xff]
      %v5485 = vld [vmem:[%s2319 + $0x88] sm:$0xff]
      %v5486 = vld [vmem:[%s2319 + $0x90] sm:$0xff]
      %v5487 = vld [vmem:[%s2319 + $0x98] sm:$0xff]
      %v5488 = vld [vmem:[%s2319 + $0xa0] sm:$0xff]
      %v5489 = vld [vmem:[%s2319 + $0xa8] sm:$0xff]
      %v5490 = vld [vmem:[%s2319 + $0xb0] sm:$0xff]
      %v5491 = vld [vmem:[%s2319 + $0xb8] sm:$0xff]
      %v5492 = vld [vmem:[%s2319 + $0xc0] sm:$0xff]
      %v5493 = vld [vmem:[%s2319 + $0xc8] sm:$0xff]
      %v5494 = vld [vmem:[%s2319 + $0xd0] sm:$0xff]
      %v5495 = vld [vmem:[%s2319 + $0xd8] sm:$0xff]
      %v5496 = vld [vmem:[%s2319 + $0xe0] sm:$0xff]
      %v5497 = vld [vmem:[%s2319 + $0xe8] sm:$0xff]
      %v5498 = vld [vmem:[%s2319 + $0xf0] sm:$0xff]
      %v5499 = vld [vmem:[%s2319 + $0xf8] sm:$0xff]
      %v5500 = vld [vmem:[%s2319 + $0x100] sm:$0xff]
      %v5501 = vld [vmem:[%s2319 + $0x108] sm:$0xff]
      %v5502 = vld [vmem:[%s2319 + $0x110] sm:$0xff]
      %v5503 = vld [vmem:[%s2319 + $0x118] sm:$0xff]
      %v5504 = vld [vmem:[%s2319 + $0x120] sm:$0xff]
      %v5505 = vld [vmem:[%s2319 + $0x128] sm:$0xff]
      %v5506 = vld [vmem:[%s2319 + $0x130] sm:$0xff]
      %v5507 = vld [vmem:[%s2319 + $0x138] sm:$0xff]
      %v5508 = vld [vmem:[%s2319 + $0x140] sm:$0xff]
      %v5509 = vld [vmem:[%s2319 + $0x148] sm:$0xff]
      %v5510 = vld [vmem:[%s2319 + $0x150] sm:$0xff]
      %v5511 = vld [vmem:[%s2319 + $0x158] sm:$0xff]
      %v5512 = vld [vmem:[%s2319 + $0x160] sm:$0xff]
      %v5513 = vld [vmem:[%s2319 + $0x168] sm:$0xff]
      %v5514 = vld [vmem:[%s2319 + $0x170] sm:$0xff]
      %v5515 = vld [vmem:[%s2319 + $0x178] sm:$0xff]
      %s5516 = scalar_lea.vmem %s4, 384
      %v5517 = vld [vmem:[%s5516] sm:$0xf]
      %v5518 = vld [vmem:[%s5516 + $0x4] sm:$0xf]
      %v5519 = vld [vmem:[%s5516 + $0x8] sm:$0xf]
      %v5520 = vld [vmem:[%s5516 + $0xc] sm:$0xf]
      %v5521 = vld [vmem:[%s5516 + $0x10] sm:$0xf]
      %v5522 = vld [vmem:[%s5516 + $0x14] sm:$0xf]
      %v5523 = vld [vmem:[%s5516 + $0x18] sm:$0xf]
      %v5524 = vld [vmem:[%s5516 + $0x1c] sm:$0xf]
      %v5525 = vld [vmem:[%s5516 + $0x20] sm:$0xf]
      %v5526 = vld [vmem:[%s5516 + $0x24] sm:$0xf]
      %v5527 = vld [vmem:[%s5516 + $0x28] sm:$0xf]
      %v5528 = vld [vmem:[%s5516 + $0x2c] sm:$0xf]
      %v5529 = vld [vmem:[%s5516 + $0x30] sm:$0xf]
      %v5530 = vld [vmem:[%s5516 + $0x34] sm:$0xf]
      %v5531 = vld [vmem:[%s5516 + $0x38] sm:$0xf]
      %v5532 = vld [vmem:[%s5516 + $0x3c] sm:$0xf]
      %v5533 = vld [vmem:[%s5516 + $0x40] sm:$0xf]
      %v5534 = vld [vmem:[%s5516 + $0x44] sm:$0xf]
      %v5535 = vld [vmem:[%s5516 + $0x48] sm:$0xf]
      %v5536 = vld [vmem:[%s5516 + $0x4c] sm:$0xf]
      %v5537 = vld [vmem:[%s5516 + $0x50] sm:$0xf]
      %v5538 = vld [vmem:[%s5516 + $0x54] sm:$0xf]
      %v5539 = vld [vmem:[%s5516 + $0x58] sm:$0xf]
      %v5540 = vld [vmem:[%s5516 + $0x5c] sm:$0xf]
      %v5541 = vld [vmem:[%s5516 + $0x60] sm:$0xf]
      %v5542 = vld [vmem:[%s5516 + $0x64] sm:$0xf]
      %v5543 = vld [vmem:[%s5516 + $0x68] sm:$0xf]
      %v5544 = vld [vmem:[%s5516 + $0x6c] sm:$0xf]
      %v5545 = vld [vmem:[%s5516 + $0x70] sm:$0xf]
      %v5546 = vld [vmem:[%s5516 + $0x74] sm:$0xf]
      %v5547 = vld [vmem:[%s5516 + $0x78] sm:$0xf]
      %v5548 = vld [vmem:[%s5516 + $0x7c] sm:$0xf]
      %v5549 = vld [vmem:[%s5516 + $0x80] sm:$0xf]
      %v5550 = vld [vmem:[%s5516 + $0x84] sm:$0xf]
      %v5551 = vld [vmem:[%s5516 + $0x88] sm:$0xf]
      %v5552 = vld [vmem:[%s5516 + $0x8c] sm:$0xf]
      %v5553 = vld [vmem:[%s5516 + $0x90] sm:$0xf]
      %v5554 = vld [vmem:[%s5516 + $0x94] sm:$0xf]
      %v5555 = vld [vmem:[%s5516 + $0x98] sm:$0xf]
      %v5556 = vld [vmem:[%s5516 + $0x9c] sm:$0xf]
      %v5557 = vld [vmem:[%s5516 + $0xa0] sm:$0xf]
      %v5558 = vld [vmem:[%s5516 + $0xa4] sm:$0xf]
      %v5559 = vld [vmem:[%s5516 + $0xa8] sm:$0xf]
      %v5560 = vld [vmem:[%s5516 + $0xac] sm:$0xf]
      %v5561 = vld [vmem:[%s5516 + $0xb0] sm:$0xf]
      %v5562 = vld [vmem:[%s5516 + $0xb4] sm:$0xf]
      %v5563 = vld [vmem:[%s5516 + $0xb8] sm:$0xf]
      %v5564 = vld [vmem:[%s5516 + $0xbc] sm:$0xf]
      %v5613 = vunpack.c.l.b16 %v5517
      %v5614 = vunpack.c.l.b16 %v5518
      %v5615 = vunpack.c.l.b16 %v5519
      %v5616 = vunpack.c.l.b16 %v5520
      %v5617 = vunpack.c.l.b16 %v5521
      %v5618 = vunpack.c.l.b16 %v5522
      %v5619 = vunpack.c.l.b16 %v5523
      %v5620 = vunpack.c.l.b16 %v5524
      %v5621 = vunpack.c.l.b16 %v5525
      %v5622 = vunpack.c.l.b16 %v5526
      %v5623 = vunpack.c.l.b16 %v5527
      %v5624 = vunpack.c.l.b16 %v5528
      %v5625 = vunpack.c.l.b16 %v5529
      %v5626 = vunpack.c.l.b16 %v5530
      %v5627 = vunpack.c.l.b16 %v5531
      %v5628 = vunpack.c.l.b16 %v5532
      %v5629 = vunpack.c.l.b16 %v5533
      %v5630 = vunpack.c.l.b16 %v5534
      %v5631 = vunpack.c.l.b16 %v5535
      %v5632 = vunpack.c.l.b16 %v5536
      %v5633 = vunpack.c.l.b16 %v5537
      %v5634 = vunpack.c.l.b16 %v5538
      %v5635 = vunpack.c.l.b16 %v5539
      %v5636 = vunpack.c.l.b16 %v5540
      %v5637 = vunpack.c.l.b16 %v5541
      %v5638 = vunpack.c.l.b16 %v5542
      %v5639 = vunpack.c.l.b16 %v5543
      %v5640 = vunpack.c.l.b16 %v5544
      %v5641 = vunpack.c.l.b16 %v5545
      %v5642 = vunpack.c.l.b16 %v5546
      %v5643 = vunpack.c.l.b16 %v5547
      %v5644 = vunpack.c.l.b16 %v5548
      %v5645 = vunpack.c.l.b16 %v5549
      %v5646 = vunpack.c.l.b16 %v5550
      %v5647 = vunpack.c.l.b16 %v5551
      %v5648 = vunpack.c.l.b16 %v5552
      %v5649 = vunpack.c.l.b16 %v5553
      %v5650 = vunpack.c.l.b16 %v5554
      %v5651 = vunpack.c.l.b16 %v5555
      %v5652 = vunpack.c.l.b16 %v5556
      %v5653 = vunpack.c.l.b16 %v5557
      %v5654 = vunpack.c.l.b16 %v5558
      %v5655 = vunpack.c.l.b16 %v5559
      %v5656 = vunpack.c.l.b16 %v5560
      %v5657 = vunpack.c.l.b16 %v5561
      %v5658 = vunpack.c.l.b16 %v5562
      %v5659 = vunpack.c.l.b16 %v5563
      %v5660 = vunpack.c.l.b16 %v5564
      %v5661 = vpack.c.b16 %v5614, %v5613
      %v5662 = vpack.c.b16 %v5616, %v5615
      %v5663 = vpack.c.b16 %v5618, %v5617
      %v5664 = vpack.c.b16 %v5620, %v5619
      %v5665 = vpack.c.b16 %v5622, %v5621
      %v5666 = vpack.c.b16 %v5624, %v5623
      %v5667 = vpack.c.b16 %v5626, %v5625
      %v5668 = vpack.c.b16 %v5628, %v5627
      %v5669 = vpack.c.b16 %v5630, %v5629
      %v5670 = vpack.c.b16 %v5632, %v5631
      %v5671 = vpack.c.b16 %v5634, %v5633
      %v5672 = vpack.c.b16 %v5636, %v5635
      %v5673 = vpack.c.b16 %v5638, %v5637
      %v5674 = vpack.c.b16 %v5640, %v5639
      %v5675 = vpack.c.b16 %v5642, %v5641
      %v5676 = vpack.c.b16 %v5644, %v5643
      %v5677 = vpack.c.b16 %v5646, %v5645
      %v5678 = vpack.c.b16 %v5648, %v5647
      %v5679 = vpack.c.b16 %v5650, %v5649
      %v5680 = vpack.c.b16 %v5652, %v5651
      %v5681 = vpack.c.b16 %v5654, %v5653
      %v5682 = vpack.c.b16 %v5656, %v5655
      %v5683 = vpack.c.b16 %v5658, %v5657
      %v5684 = vpack.c.b16 %v5660, %v5659
      %5709 = vmatprep.subr.bf16.mxu0 0
      %5710 = vmatpush1.bf16.msra.mxu0 %v5661
      %5711 = vmatprep.subr.bf16.mxu0 0
      %5712 = vmatpush1.bf16.msra.mxu0 %v5662
      %5713 = vmatprep.subr.bf16.mxu0 0
      %5714 = vmatpush1.bf16.msra.mxu0 %v5663
      %5715 = vmatprep.subr.bf16.mxu0 0
      %5716 = vmatpush1.bf16.msra.mxu0 %v5664
      %5717 = vmatprep.subr.bf16.mxu0 0
      %5718 = vmatpush1.bf16.msra.mxu0 %v5665
      %5719 = vmatprep.subr.bf16.mxu0 0
      %5720 = vmatpush1.bf16.msra.mxu0 %v5666
      %5721 = vmatprep.subr.bf16.mxu0 0
      %5722 = vmatpush1.bf16.msra.mxu0 %v5667
      %5723 = vmatprep.subr.bf16.mxu0 0
      %5724 = vmatpush1.bf16.msra.mxu0 %v5668
      %5725 = vmatprep.subr.bf16.mxu0 0
      %5726 = vmatpush1.bf16.msra.mxu0 %v5669
      %5727 = vmatprep.subr.bf16.mxu0 0
      %5728 = vmatpush1.bf16.msra.mxu0 %v5670
      %5729 = vmatprep.subr.bf16.mxu0 0
      %5730 = vmatpush1.bf16.msra.mxu0 %v5671
      %5731 = vmatprep.subr.bf16.mxu0 0
      %5732 = vmatpush1.bf16.msra.mxu0 %v5672
      %5733 = vmatprep.subr.bf16.mxu0 0
      %5734 = vmatpush1.bf16.msra.mxu0 %v5673
      %5735 = vmatprep.subr.bf16.mxu0 0
      %5736 = vmatpush1.bf16.msra.mxu0 %v5674
      %5737 = vmatprep.subr.bf16.mxu0 0
      %5738 = vmatpush1.bf16.msra.mxu0 %v5675
      %5739 = vmatprep.subr.bf16.mxu0 0
      %5740 = vmatpush1.bf16.msra.mxu0 %v5676
      %5741 = vmatprep.mubr.bf16.mxu0 %v5469
      %5742 = vmatmul.mubr.bf16.gmra.mrb[0].mxu0 %v5468
      %v5743 = vpop.f32.mrb[0].mxu0
      %v5744 = vadd.f32 0.0, %v5743
      %v5745 = vpop.f32.mrb[0].mxu0
      %v5746 = vpop.f32.mrb[0].mxu0
      %v5747 = vadd.f32 0.0, %v5746
      %v5748 = vpop.f32.mrb[0].mxu0
      %5749 = vmatprep.mubr.bf16.mxu0 %v5472
      %5750 = vmatmul.mubr.bf16.gmra.mrb[0].mxu0 %v5471
      %v5751 = vpop.f32.mrb[0].mxu0
      %v5752 = vadd.f32 0.0, %v5751
      %v5753 = vpop.f32.mrb[0].mxu0
      %v5754 = vpop.f32.mrb[0].mxu0
      %v5755 = vadd.f32 0.0, %v5754
      %v5756 = vpop.f32.mrb[0].mxu0
      %5757 = vmatprep.mubr.bf16.mxu0 %v5475
      %5758 = vmatmul.mubr.bf16.gmra.mrb[0].mxu0 %v5474
      %v5759 = vpop.f32.mrb[0].mxu0
      %v5760 = vadd.f32 0.0, %v5759
      %v5761 = vpop.f32.mrb[0].mxu0
      %v5762 = vpop.f32.mrb[0].mxu0
      %v5763 = vadd.f32 0.0, %v5762
      %v5764 = vpop.f32.mrb[0].mxu0
      %5765 = vmatprep.mubr.bf16.mxu0 %v5478
      %5766 = vmatmul.mubr.bf16.gmra.mrb[0].mxu0 %v5477
      %v5767 = vpop.f32.mrb[0].mxu0
      %v5768 = vadd.f32 0.0, %v5767
      %v5769 = vpop.f32.mrb[0].mxu0
      %v5770 = vpop.f32.mrb[0].mxu0
      %v5771 = vadd.f32 0.0, %v5770
      %v5772 = vpop.f32.mrb[0].mxu0
      %5773 = vmatprep.mubr.bf16.mxu0 %v5481
      %5774 = vmatmul.mubr.bf16.gmra.mrb[0].mxu0 %v5480
      %v5775 = vpop.f32.mrb[0].mxu0
      %v5776 = vadd.f32 0.0, %v5775
      %v5777 = vpop.f32.mrb[0].mxu0
      %v5778 = vpop.f32.mrb[0].mxu0
      %v5779 = vadd.f32 0.0, %v5778
      %v5780 = vpop.f32.mrb[0].mxu0
      %5781 = vmatprep.mubr.bf16.mxu0 %v5484
      %5782 = vmatmul.mubr.bf16.gmra.mrb[0].mxu0 %v5483
      %v5783 = vpop.f32.mrb[0].mxu0
      %v5784 = vadd.f32 0.0, %v5783
      %v5785 = vpop.f32.mrb[0].mxu0
      %v5786 = vpop.f32.mrb[0].mxu0
      %v5787 = vadd.f32 0.0, %v5786
      %v5788 = vpop.f32.mrb[0].mxu0
      %5789 = vmatprep.mubr.bf16.mxu0 %v5487
      %5790 = vmatmul.mubr.bf16.gmra.mrb[0].mxu0 %v5486
      %v5791 = vpop.f32.mrb[0].mxu0
      %v5792 = vadd.f32 0.0, %v5791
      %v5793 = vpop.f32.mrb[0].mxu0
      %v5794 = vpop.f32.mrb[0].mxu0
      %v5795 = vadd.f32 0.0, %v5794
      %v5796 = vpop.f32.mrb[0].mxu0
      %5797 = vmatprep.mubr.bf16.mxu0 %v5490
      %5798 = vmatmul.mubr.bf16.gmra.mrb[0].mxu0 %v5489
      %v5799 = vpop.f32.mrb[0].mxu0
      %v5800 = vadd.f32 0.0, %v5799
      %v5801 = vpop.f32.mrb[0].mxu0
      %v5802 = vpop.f32.mrb[0].mxu0
      %v5803 = vadd.f32 0.0, %v5802
      %v5804 = vpop.f32.mrb[0].mxu0
      %5805 = vmatprep.mubr.bf16.mxu0 %v5493
      %5806 = vmatmul.mubr.bf16.gmra.mrb[0].mxu0 %v5492
      %v5807 = vpop.f32.mrb[0].mxu0
      %v5808 = vadd.f32 0.0, %v5807
      %v5809 = vpop.f32.mrb[0].mxu0
      %v5810 = vpop.f32.mrb[0].mxu0
      %v5811 = vadd.f32 0.0, %v5810
      %v5812 = vpop.f32.mrb[0].mxu0
      %5813 = vmatprep.mubr.bf16.mxu0 %v5496
      %5814 = vmatmul.mubr.bf16.gmra.mrb[0].mxu0 %v5495
      %v5815 = vpop.f32.mrb[0].mxu0
      %v5816 = vadd.f32 0.0, %v5815
      %v5817 = vpop.f32.mrb[0].mxu0
      %v5818 = vpop.f32.mrb[0].mxu0
      %v5819 = vadd.f32 0.0, %v5818
      %v5820 = vpop.f32.mrb[0].mxu0
      %5821 = vmatprep.mubr.bf16.mxu0 %v5499
      %5822 = vmatmul.mubr.bf16.gmra.mrb[0].mxu0 %v5498
      %v5823 = vpop.f32.mrb[0].mxu0
      %v5824 = vadd.f32 0.0, %v5823
      %v5825 = vpop.f32.mrb[0].mxu0
      %v5826 = vpop.f32.mrb[0].mxu0
      %v5827 = vadd.f32 0.0, %v5826
      %v5828 = vpop.f32.mrb[0].mxu0
      %5829 = vmatprep.mubr.bf16.mxu0 %v5502
      %5830 = vmatmul.mubr.bf16.gmra.mrb[0].mxu0 %v5501
      %v5831 = vpop.f32.mrb[0].mxu0
      %v5832 = vadd.f32 0.0, %v5831
      %v5833 = vpop.f32.mrb[0].mxu0
      %v5834 = vpop.f32.mrb[0].mxu0
      %v5835 = vadd.f32 0.0, %v5834
      %v5836 = vpop.f32.mrb[0].mxu0
      %5837 = vmatprep.mubr.bf16.mxu0 %v5505
      %5838 = vmatmul.mubr.bf16.gmra.mrb[0].mxu0 %v5504
      %v5839 = vpop.f32.mrb[0].mxu0
      %v5840 = vadd.f32 0.0, %v5839
      %v5841 = vpop.f32.mrb[0].mxu0
      %v5842 = vpop.f32.mrb[0].mxu0
      %v5843 = vadd.f32 0.0, %v5842
      %v5844 = vpop.f32.mrb[0].mxu0
      %5845 = vmatprep.mubr.bf16.mxu0 %v5508
      %5846 = vmatmul.mubr.bf16.gmra.mrb[0].mxu0 %v5507
      %v5847 = vpop.f32.mrb[0].mxu0
      %v5848 = vadd.f32 0.0, %v5847
      %v5849 = vpop.f32.mrb[0].mxu0
      %v5850 = vpop.f32.mrb[0].mxu0
      %v5851 = vadd.f32 0.0, %v5850
      %v5852 = vpop.f32.mrb[0].mxu0
      %5853 = vmatprep.mubr.bf16.mxu0 %v5511
      %5854 = vmatmul.mubr.bf16.gmra.mrb[0].mxu0 %v5510
      %v5855 = vpop.f32.mrb[0].mxu0
      %v5856 = vadd.f32 0.0, %v5855
      %v5857 = vpop.f32.mrb[0].mxu0
      %v5858 = vpop.f32.mrb[0].mxu0
      %v5859 = vadd.f32 0.0, %v5858
      %v5860 = vpop.f32.mrb[0].mxu0
      %5861 = vmatprep.mubr.bf16.mxu0 %v5514
      %5862 = vmatmul.mubr.bf16.gmra.mrb[0].mxu0 %v5513
      %v5863 = vpop.f32.mrb[0].mxu0
      %v5864 = vadd.f32 0.0, %v5863
      %v5865 = vpop.f32.mrb[0].mxu0
      %v5866 = vpop.f32.mrb[0].mxu0
      %v5867 = vadd.f32 0.0, %v5866
      %v5868 = vpop.f32.mrb[0].mxu0
      %5869 = vdwg.mxu0
      %5870 = vmatprep.subr.bf16.mxu0 0
      %5871 = vmatpush1.bf16.msra.mxu0 %v5677
      %5872 = vmatprep.subr.bf16.mxu0 0
      %5873 = vmatpush1.bf16.msra.mxu0 %v5678
      %5874 = vmatprep.subr.bf16.mxu0 0
      %5875 = vmatpush1.bf16.msra.mxu0 %v5679
      %5876 = vmatprep.subr.bf16.mxu0 0
      %5877 = vmatpush1.bf16.msra.mxu0 %v5680
      %5878 = vmatprep.subr.bf16.mxu0 0
      %5879 = vmatpush1.bf16.msra.mxu0 %v5681
      %5880 = vmatprep.subr.bf16.mxu0 0
      %5881 = vmatpush1.bf16.msra.mxu0 %v5682
      %5882 = vmatprep.subr.bf16.mxu0 0
      %5883 = vmatpush1.bf16.msra.mxu0 %v5683
      %5884 = vmatprep.subr.bf16.mxu0 0
      %5885 = vmatpush1.bf16.msra.mxu0 %v5684
      %5886 = vmatprep.subr.bf16.mxu0 0
      %5887 = vmatpush1.bf16.msra.mxu0 0
      %5888 = vmatprep.subr.bf16.mxu0 0
      %5889 = vmatpush1.bf16.msra.mxu0 0
      %5890 = vmatprep.subr.bf16.mxu0 0
      %5891 = vmatpush1.bf16.msra.mxu0 0
      %5892 = vmatprep.subr.bf16.mxu0 0
      %5893 = vmatpush1.bf16.msra.mxu0 0
      %5894 = vmatprep.subr.bf16.mxu0 0
      %5895 = vmatpush1.bf16.msra.mxu0 0
      %5896 = vmatprep.subr.bf16.mxu0 0
      %5897 = vmatpush1.bf16.msra.mxu0 0
      %5898 = vmatprep.subr.bf16.mxu0 0
      %5899 = vmatpush1.bf16.msra.mxu0 0
      %5900 = vmatprep.subr.bf16.mxu0 0
      %5901 = vmatpush1.bf16.msra.mxu0 0
      %5902 = vmatprep.mubr.bf16.mxu0 0
      %5903 = vmatmul.mubr.bf16.gmra.mrb[0].mxu0 %v5470
      %v5904 = vpop.f32.mrb[0].mxu0
      %v5905 = vadd.f32 %v5744, %v5904
      %v5906 = vpop.f32.mrb[0].mxu0
      %v5907 = vpop.f32.mrb[0].mxu0
      %v5908 = vadd.f32 %v5747, %v5907
      %v5909 = vpop.f32.mrb[0].mxu0
      %5910 = vmatprep.mubr.bf16.mxu0 0
      %5911 = vmatmul.mubr.bf16.gmra.mrb[0].mxu0 %v5473
      %v5912 = vpop.f32.mrb[0].mxu0
      %v5913 = vadd.f32 %v5752, %v5912
      %v5914 = vpop.f32.mrb[0].mxu0
      %v5915 = vpop.f32.mrb[0].mxu0
      %v5916 = vadd.f32 %v5755, %v5915
      %v5917 = vpop.f32.mrb[0].mxu0
      %5918 = vmatprep.mubr.bf16.mxu0 0
      %5919 = vmatmul.mubr.bf16.gmra.mrb[0].mxu0 %v5476
      %v5920 = vpop.f32.mrb[0].mxu0
      %v5921 = vadd.f32 %v5760, %v5920
      %v5922 = vpop.f32.mrb[0].mxu0
      %v5923 = vpop.f32.mrb[0].mxu0
      %v5924 = vadd.f32 %v5763, %v5923
      %v5925 = vpop.f32.mrb[0].mxu0
      %5926 = vmatprep.mubr.bf16.mxu0 0
      %5927 = vmatmul.mubr.bf16.gmra.mrb[0].mxu0 %v5479
      %v5928 = vpop.f32.mrb[0].mxu0
      %v5929 = vadd.f32 %v5768, %v5928
      %v5930 = vpop.f32.mrb[0].mxu0
      %v5931 = vpop.f32.mrb[0].mxu0
      %v5932 = vadd.f32 %v5771, %v5931
      %v5933 = vpop.f32.mrb[0].mxu0
      %5934 = vmatprep.mubr.bf16.mxu0 0
      %5935 = vmatmul.mubr.bf16.gmra.mrb[0].mxu0 %v5482
      %v5936 = vpop.f32.mrb[0].mxu0
      %v5937 = vadd.f32 %v5776, %v5936
      %v5938 = vpop.f32.mrb[0].mxu0
      %v5939 = vpop.f32.mrb[0].mxu0
      %v5940 = vadd.f32 %v5779, %v5939
      %v5941 = vpop.f32.mrb[0].mxu0
      %5942 = vmatprep.mubr.bf16.mxu0 0
      %5943 = vmatmul.mubr.bf16.gmra.mrb[0].mxu0 %v5485
      %v5944 = vpop.f32.mrb[0].mxu0
      %v5945 = vadd.f32 %v5784, %v5944
      %v5946 = vpop.f32.mrb[0].mxu0
      %v5947 = vpop.f32.mrb[0].mxu0
      %v5948 = vadd.f32 %v5787, %v5947
      %v5949 = vpop.f32.mrb[0].mxu0
      %5950 = vmatprep.mubr.bf16.mxu0 0
      %5951 = vmatmul.mubr.bf16.gmra.mrb[0].mxu0 %v5488
      %v5952 = vpop.f32.mrb[0].mxu0
      %v5953 = vadd.f32 %v5792, %v5952
      %v5954 = vpop.f32.mrb[0].mxu0
      %v5955 = vpop.f32.mrb[0].mxu0
      %v5956 = vadd.f32 %v5795, %v5955
      %v5957 = vpop.f32.mrb[0].mxu0
      %5958 = vmatprep.mubr.bf16.mxu0 0
      %5959 = vmatmul.mubr.bf16.gmra.mrb[0].mxu0 %v5491
      %v5960 = vpop.f32.mrb[0].mxu0
      %v5961 = vadd.f32 %v5800, %v5960
      %v5962 = vpop.f32.mrb[0].mxu0
      %v5963 = vpop.f32.mrb[0].mxu0
      %v5964 = vadd.f32 %v5803, %v5963
      %v5965 = vpop.f32.mrb[0].mxu0
      %5966 = vmatprep.mubr.bf16.mxu0 0
      %5967 = vmatmul.mubr.bf16.gmra.mrb[0].mxu0 %v5494
      %v5968 = vpop.f32.mrb[0].mxu0
      %v5969 = vadd.f32 %v5808, %v5968
      %v5970 = vpop.f32.mrb[0].mxu0
      %v5971 = vpop.f32.mrb[0].mxu0
      %v5972 = vadd.f32 %v5811, %v5971
      %v5973 = vpop.f32.mrb[0].mxu0
      %5974 = vmatprep.mubr.bf16.mxu0 0
      %5975 = vmatmul.mubr.bf16.gmra.mrb[0].mxu0 %v5497
      %v5976 = vpop.f32.mrb[0].mxu0
      %v5977 = vadd.f32 %v5816, %v5976
      %v5978 = vpop.f32.mrb[0].mxu0
      %v5979 = vpop.f32.mrb[0].mxu0
      %v5980 = vadd.f32 %v5819, %v5979
      %v5981 = vpop.f32.mrb[0].mxu0
      %5982 = vmatprep.mubr.bf16.mxu0 0
      %5983 = vmatmul.mubr.bf16.gmra.mrb[0].mxu0 %v5500
      %v5984 = vpop.f32.mrb[0].mxu0
      %v5985 = vadd.f32 %v5824, %v5984
      %v5986 = vpop.f32.mrb[0].mxu0
      %v5987 = vpop.f32.mrb[0].mxu0
      %v5988 = vadd.f32 %v5827, %v5987
      %v5989 = vpop.f32.mrb[0].mxu0
      %5990 = vmatprep.mubr.bf16.mxu0 0
      %5991 = vmatmul.mubr.bf16.gmra.mrb[0].mxu0 %v5503
      %v5992 = vpop.f32.mrb[0].mxu0
      %v5993 = vadd.f32 %v5832, %v5992
      %v5994 = vpop.f32.mrb[0].mxu0
      %v5995 = vpop.f32.mrb[0].mxu0
      %v5996 = vadd.f32 %v5835, %v5995
      %v5997 = vpop.f32.mrb[0].mxu0
      %5998 = vmatprep.mubr.bf16.mxu0 0
      %5999 = vmatmul.mubr.bf16.gmra.mrb[0].mxu0 %v5506
      %v6000 = vpop.f32.mrb[0].mxu0
      %v6001 = vadd.f32 %v5840, %v6000
      %v6002 = vpop.f32.mrb[0].mxu0
      %v6003 = vpop.f32.mrb[0].mxu0
      %v6004 = vadd.f32 %v5843, %v6003
      %v6005 = vpop.f32.mrb[0].mxu0
      %6006 = vmatprep.mubr.bf16.mxu0 0
      %6007 = vmatmul.mubr.bf16.gmra.mrb[0].mxu0 %v5509
      %v6008 = vpop.f32.mrb[0].mxu0
      %v6009 = vadd.f32 %v5848, %v6008
      %v6010 = vpop.f32.mrb[0].mxu0
      %v6011 = vpop.f32.mrb[0].mxu0
      %v6012 = vadd.f32 %v5851, %v6011
      %v6013 = vpop.f32.mrb[0].mxu0
      %6014 = vmatprep.mubr.bf16.mxu0 0
      %6015 = vmatmul.mubr.bf16.gmra.mrb[0].mxu0 %v5512
      %v6016 = vpop.f32.mrb[0].mxu0
      %v6017 = vadd.f32 %v5856, %v6016
      %v6018 = vpop.f32.mrb[0].mxu0
      %v6019 = vpop.f32.mrb[0].mxu0
      %v6020 = vadd.f32 %v5859, %v6019
      %v6021 = vpop.f32.mrb[0].mxu0
      %6022 = vmatprep.mubr.bf16.mxu0 0
      %6023 = vmatmul.mubr.bf16.gmra.mrb[0].mxu0 %v5515
      %v6024 = vpop.f32.mrb[0].mxu0
      %v6025 = vadd.f32 %v5864, %v6024
      %v6026 = vpop.f32.mrb[0].mxu0
      %v6027 = vpop.f32.mrb[0].mxu0
      %v6028 = vadd.f32 %v5867, %v6027
      %v6029 = vpop.f32.mrb[0].mxu0
      %6030 = vdwg.mxu0
      %v6031 = vadd.f32 %v5342, %v5905
      %v6032 = vadd.f32 %v5345, %v5908
      %v6033 = vadd.f32 %v5350, %v5913
      %v6034 = vadd.f32 %v5353, %v5916
      %v6035 = vadd.f32 %v5358, %v5921
      %v6036 = vadd.f32 %v5361, %v5924
      %v6037 = vadd.f32 %v5366, %v5929
      %v6038 = vadd.f32 %v5369, %v5932
      %v6039 = vadd.f32 %v5374, %v5937
      %v6040 = vadd.f32 %v5377, %v5940
      %v6041 = vadd.f32 %v5382, %v5945
      %v6042 = vadd.f32 %v5385, %v5948
      %v6043 = vadd.f32 %v5390, %v5953
      %v6044 = vadd.f32 %v5393, %v5956
      %v6045 = vadd.f32 %v5398, %v5961
      %v6046 = vadd.f32 %v5401, %v5964
      %v6047 = vadd.f32 %v5406, %v5969
      %v6048 = vadd.f32 %v5409, %v5972
      %v6049 = vadd.f32 %v5414, %v5977
      %v6050 = vadd.f32 %v5417, %v5980
      %v6051 = vadd.f32 %v5422, %v5985
      %v6052 = vadd.f32 %v5425, %v5988
      %v6053 = vadd.f32 %v5430, %v5993
      %v6054 = vadd.f32 %v5433, %v5996
      %v6055 = vadd.f32 %v5438, %v6001
      %v6056 = vadd.f32 %v5441, %v6004
      %v6057 = vadd.f32 %v5446, %v6009
      %v6058 = vadd.f32 %v5449, %v6012
      %v6059 = vadd.f32 %v5454, %v6017
      %v6060 = vadd.f32 %v5457, %v6020
      %v6061 = vadd.f32 %v5462, %v6025
      %v6062 = vadd.f32 %v5465, %v6028
      %s6063 = scalar_lea.vmem %s273, 12
      %v6064 = vld [vmem:[%s6063] sm:$0xf]
      %v6065 = vld [vmem:[%s6063 + $0x4] sm:$0xf]
      %v6066 = vld [vmem:[%s6063 + $0x8] sm:$0x1]
      %v6067 = vld [vmem:[%s6063 + $0xc] sm:$0xf]
      %v6068 = vld [vmem:[%s6063 + $0x10] sm:$0xf]
      %v6069 = vld [vmem:[%s6063 + $0x14] sm:$0x1]
      %v6070 = vld [vmem:[%s6063 + $0x18] sm:$0xf]
      %v6071 = vld [vmem:[%s6063 + $0x1c] sm:$0xf]
      %v6072 = vld [vmem:[%s6063 + $0x20] sm:$0x1]
      %v6073 = vld [vmem:[%s6063 + $0x24] sm:$0xf]
      %v6074 = vld [vmem:[%s6063 + $0x28] sm:$0xf]
      %v6075 = vld [vmem:[%s6063 + $0x2c] sm:$0x1]
      %v6076 = vld [vmem:[%s6063 + $0x30] sm:$0xf]
      %v6077 = vld [vmem:[%s6063 + $0x34] sm:$0xf]
      %v6078 = vld [vmem:[%s6063 + $0x38] sm:$0x1]
      %v6079 = vld [vmem:[%s6063 + $0x3c] sm:$0xf]
      %v6080 = vld [vmem:[%s6063 + $0x40] sm:$0xf]
      %v6081 = vld [vmem:[%s6063 + $0x44] sm:$0x1]
      %v6082 = vld [vmem:[%s6063 + $0x48] sm:$0xf]
      %v6083 = vld [vmem:[%s6063 + $0x4c] sm:$0xf]
      %v6084 = vld [vmem:[%s6063 + $0x50] sm:$0x1]
      %v6085 = vld [vmem:[%s6063 + $0x54] sm:$0xf]
      %v6086 = vld [vmem:[%s6063 + $0x58] sm:$0xf]
      %v6087 = vld [vmem:[%s6063 + $0x5c] sm:$0x1]
      %v6088 = vld [vmem:[%s6063 + $0x60] sm:$0xf]
      %v6089 = vld [vmem:[%s6063 + $0x64] sm:$0xf]
      %v6090 = vld [vmem:[%s6063 + $0x68] sm:$0x1]
      %v6091 = vld [vmem:[%s6063 + $0x6c] sm:$0xf]
      %v6092 = vld [vmem:[%s6063 + $0x70] sm:$0xf]
      %v6093 = vld [vmem:[%s6063 + $0x74] sm:$0x1]
      %v6094 = vld [vmem:[%s6063 + $0x78] sm:$0xf]
      %v6095 = vld [vmem:[%s6063 + $0x7c] sm:$0xf]
      %v6096 = vld [vmem:[%s6063 + $0x80] sm:$0x1]
      %v6097 = vld [vmem:[%s6063 + $0x84] sm:$0xf]
      %v6098 = vld [vmem:[%s6063 + $0x88] sm:$0xf]
      %v6099 = vld [vmem:[%s6063 + $0x8c] sm:$0x1]
      %v6100 = vld [vmem:[%s6063 + $0x90] sm:$0xf]
      %v6101 = vld [vmem:[%s6063 + $0x94] sm:$0xf]
      %v6102 = vld [vmem:[%s6063 + $0x98] sm:$0x1]
      %v6103 = vld [vmem:[%s6063 + $0x9c] sm:$0xf]
      %v6104 = vld [vmem:[%s6063 + $0xa0] sm:$0xf]
      %v6105 = vld [vmem:[%s6063 + $0xa4] sm:$0x1]
      %v6106 = vld [vmem:[%s6063 + $0xa8] sm:$0xf]
      %v6107 = vld [vmem:[%s6063 + $0xac] sm:$0xf]
      %v6108 = vld [vmem:[%s6063 + $0xb0] sm:$0x1]
      %v6109 = vld [vmem:[%s6063 + $0xb4] sm:$0xf]
      %v6110 = vld [vmem:[%s6063 + $0xb8] sm:$0xf]
      %v6111 = vld [vmem:[%s6063 + $0xbc] sm:$0x1]
      %vm6112 = vsmask.f32 3328
      %vm6113 = vsmask.f32 7440
      %vm6114 = vmor %vm6112, %vm6113
      %v6116 = vshrl.u32 %v6064, 16
      %v6118 = vrot.slane %v6116, 4
      %v6119 = vshll.u32 %v6064, 16
      %v6121 = vrot.slane %v6119, 5
      %v6122 = vor.u32 %v6118, %v6121
      %v6123 = vrot.slane %v6122, 4
      %v6125 = vshll.u32 %v6065, 16
      %v6127 = vrot.slane %v6125, 5
      %v6128 = vsel %vm6114, %v6123, %v6127
      %v6129 = vshrl.u32 %v6065, 16
      %v6131 = vrot.slane %v6129, 4
      %v6132 = vor.u32 %v6131, %v6127
      %v6133 = vrot.slane %v6132, 4
      %v6135 = vshll.u32 %v6066, 16
      %v6137 = vrot.slane %v6135, 5
      %v6138 = vsel %vm6114, %v6133, %v6137
      %v6140 = vshrl.u32 %v6067, 16
      %v6142 = vrot.slane %v6140, 4
      %v6143 = vshll.u32 %v6067, 16
      %v6145 = vrot.slane %v6143, 5
      %v6146 = vor.u32 %v6142, %v6145
      %v6147 = vrot.slane %v6146, 4
      %v6149 = vshll.u32 %v6068, 16
      %v6151 = vrot.slane %v6149, 5
      %v6152 = vsel %vm6114, %v6147, %v6151
      %v6153 = vshrl.u32 %v6068, 16
      %v6155 = vrot.slane %v6153, 4
      %v6156 = vor.u32 %v6155, %v6151
      %v6157 = vrot.slane %v6156, 4
      %v6159 = vshll.u32 %v6069, 16
      %v6161 = vrot.slane %v6159, 5
      %v6162 = vsel %vm6114, %v6157, %v6161
      %v6164 = vshrl.u32 %v6070, 16
      %v6166 = vrot.slane %v6164, 4
      %v6167 = vshll.u32 %v6070, 16
      %v6169 = vrot.slane %v6167, 5
      %v6170 = vor.u32 %v6166, %v6169
      %v6171 = vrot.slane %v6170, 4
      %v6173 = vshll.u32 %v6071, 16
      %v6175 = vrot.slane %v6173, 5
      %v6176 = vsel %vm6114, %v6171, %v6175
      %v6177 = vshrl.u32 %v6071, 16
      %v6179 = vrot.slane %v6177, 4
      %v6180 = vor.u32 %v6179, %v6175
      %v6181 = vrot.slane %v6180, 4
      %v6183 = vshll.u32 %v6072, 16
      %v6185 = vrot.slane %v6183, 5
      %v6186 = vsel %vm6114, %v6181, %v6185
      %v6188 = vshrl.u32 %v6073, 16
      %v6190 = vrot.slane %v6188, 4
      %v6191 = vshll.u32 %v6073, 16
      %v6193 = vrot.slane %v6191, 5
      %v6194 = vor.u32 %v6190, %v6193
      %v6195 = vrot.slane %v6194, 4
      %v6197 = vshll.u32 %v6074, 16
      %v6199 = vrot.slane %v6197, 5
      %v6200 = vsel %vm6114, %v6195, %v6199
      %v6201 = vshrl.u32 %v6074, 16
      %v6203 = vrot.slane %v6201, 4
      %v6204 = vor.u32 %v6203, %v6199
      %v6205 = vrot.slane %v6204, 4
      %v6207 = vshll.u32 %v6075, 16
      %v6209 = vrot.slane %v6207, 5
      %v6210 = vsel %vm6114, %v6205, %v6209
      %v6212 = vshrl.u32 %v6076, 16
      %v6214 = vrot.slane %v6212, 4
      %v6215 = vshll.u32 %v6076, 16
      %v6217 = vrot.slane %v6215, 5
      %v6218 = vor.u32 %v6214, %v6217
      %v6219 = vrot.slane %v6218, 4
      %v6221 = vshll.u32 %v6077, 16
      %v6223 = vrot.slane %v6221, 5
      %v6224 = vsel %vm6114, %v6219, %v6223
      %v6225 = vshrl.u32 %v6077, 16
      %v6227 = vrot.slane %v6225, 4
      %v6228 = vor.u32 %v6227, %v6223
      %v6229 = vrot.slane %v6228, 4
      %v6231 = vshll.u32 %v6078, 16
      %v6233 = vrot.slane %v6231, 5
      %v6234 = vsel %vm6114, %v6229, %v6233
      %v6236 = vshrl.u32 %v6079, 16
      %v6238 = vrot.slane %v6236, 4
      %v6239 = vshll.u32 %v6079, 16
      %v6241 = vrot.slane %v6239, 5
      %v6242 = vor.u32 %v6238, %v6241
      %v6243 = vrot.slane %v6242, 4
      %v6245 = vshll.u32 %v6080, 16
      %v6247 = vrot.slane %v6245, 5
      %v6248 = vsel %vm6114, %v6243, %v6247
      %v6249 = vshrl.u32 %v6080, 16
      %v6251 = vrot.slane %v6249, 4
      %v6252 = vor.u32 %v6251, %v6247
      %v6253 = vrot.slane %v6252, 4
      %v6255 = vshll.u32 %v6081, 16
      %v6257 = vrot.slane %v6255, 5
      %v6258 = vsel %vm6114, %v6253, %v6257
      %v6260 = vshrl.u32 %v6082, 16
      %v6262 = vrot.slane %v6260, 4
      %v6263 = vshll.u32 %v6082, 16
      %v6265 = vrot.slane %v6263, 5
      %v6266 = vor.u32 %v6262, %v6265
      %v6267 = vrot.slane %v6266, 4
      %v6269 = vshll.u32 %v6083, 16
      %v6271 = vrot.slane %v6269, 5
      %v6272 = vsel %vm6114, %v6267, %v6271
      %v6273 = vshrl.u32 %v6083, 16
      %v6275 = vrot.slane %v6273, 4
      %v6276 = vor.u32 %v6275, %v6271
      %v6277 = vrot.slane %v6276, 4
      %v6279 = vshll.u32 %v6084, 16
      %v6281 = vrot.slane %v6279, 5
      %v6282 = vsel %vm6114, %v6277, %v6281
      %v6284 = vshrl.u32 %v6085, 16
      %v6286 = vrot.slane %v6284, 4
      %v6287 = vshll.u32 %v6085, 16
      %v6289 = vrot.slane %v6287, 5
      %v6290 = vor.u32 %v6286, %v6289
      %v6291 = vrot.slane %v6290, 4
      %v6293 = vshll.u32 %v6086, 16
      %v6295 = vrot.slane %v6293, 5
      %v6296 = vsel %vm6114, %v6291, %v6295
      %v6297 = vshrl.u32 %v6086, 16
      %v6299 = vrot.slane %v6297, 4
      %v6300 = vor.u32 %v6299, %v6295
      %v6301 = vrot.slane %v6300, 4
      %v6303 = vshll.u32 %v6087, 16
      %v6305 = vrot.slane %v6303, 5
      %v6306 = vsel %vm6114, %v6301, %v6305
      %v6308 = vshrl.u32 %v6088, 16
      %v6310 = vrot.slane %v6308, 4
      %v6311 = vshll.u32 %v6088, 16
      %v6313 = vrot.slane %v6311, 5
      %v6314 = vor.u32 %v6310, %v6313
      %v6315 = vrot.slane %v6314, 4
      %v6317 = vshll.u32 %v6089, 16
      %v6319 = vrot.slane %v6317, 5
      %v6320 = vsel %vm6114, %v6315, %v6319
      %v6321 = vshrl.u32 %v6089, 16
      %v6323 = vrot.slane %v6321, 4
      %v6324 = vor.u32 %v6323, %v6319
      %v6325 = vrot.slane %v6324, 4
      %v6327 = vshll.u32 %v6090, 16
      %v6329 = vrot.slane %v6327, 5
      %v6330 = vsel %vm6114, %v6325, %v6329
      %v6332 = vshrl.u32 %v6091, 16
      %v6334 = vrot.slane %v6332, 4
      %v6335 = vshll.u32 %v6091, 16
      %v6337 = vrot.slane %v6335, 5
      %v6338 = vor.u32 %v6334, %v6337
      %v6339 = vrot.slane %v6338, 4
      %v6341 = vshll.u32 %v6092, 16
      %v6343 = vrot.slane %v6341, 5
      %v6344 = vsel %vm6114, %v6339, %v6343
      %v6345 = vshrl.u32 %v6092, 16
      %v6347 = vrot.slane %v6345, 4
      %v6348 = vor.u32 %v6347, %v6343
      %v6349 = vrot.slane %v6348, 4
      %v6351 = vshll.u32 %v6093, 16
      %v6353 = vrot.slane %v6351, 5
      %v6354 = vsel %vm6114, %v6349, %v6353
      %v6356 = vshrl.u32 %v6094, 16
      %v6358 = vrot.slane %v6356, 4
      %v6359 = vshll.u32 %v6094, 16
      %v6361 = vrot.slane %v6359, 5
      %v6362 = vor.u32 %v6358, %v6361
      %v6363 = vrot.slane %v6362, 4
      %v6365 = vshll.u32 %v6095, 16
      %v6367 = vrot.slane %v6365, 5
      %v6368 = vsel %vm6114, %v6363, %v6367
      %v6369 = vshrl.u32 %v6095, 16
      %v6371 = vrot.slane %v6369, 4
      %v6372 = vor.u32 %v6371, %v6367
      %v6373 = vrot.slane %v6372, 4
      %v6375 = vshll.u32 %v6096, 16
      %v6377 = vrot.slane %v6375, 5
      %v6378 = vsel %vm6114, %v6373, %v6377
      %v6380 = vshrl.u32 %v6097, 16
      %v6382 = vrot.slane %v6380, 4
      %v6383 = vshll.u32 %v6097, 16
      %v6385 = vrot.slane %v6383, 5
      %v6386 = vor.u32 %v6382, %v6385
      %v6387 = vrot.slane %v6386, 4
      %v6389 = vshll.u32 %v6098, 16
      %v6391 = vrot.slane %v6389, 5
      %v6392 = vsel %vm6114, %v6387, %v6391
      %v6393 = vshrl.u32 %v6098, 16
      %v6395 = vrot.slane %v6393, 4
      %v6396 = vor.u32 %v6395, %v6391
      %v6397 = vrot.slane %v6396, 4
      %v6399 = vshll.u32 %v6099, 16
      %v6401 = vrot.slane %v6399, 5
      %v6402 = vsel %vm6114, %v6397, %v6401
      %v6404 = vshrl.u32 %v6100, 16
      %v6406 = vrot.slane %v6404, 4
      %v6407 = vshll.u32 %v6100, 16
      %v6409 = vrot.slane %v6407, 5
      %v6410 = vor.u32 %v6406, %v6409
      %v6411 = vrot.slane %v6410, 4
      %v6413 = vshll.u32 %v6101, 16
      %v6415 = vrot.slane %v6413, 5
      %v6416 = vsel %vm6114, %v6411, %v6415
      %v6417 = vshrl.u32 %v6101, 16
      %v6419 = vrot.slane %v6417, 4
      %v6420 = vor.u32 %v6419, %v6415
      %v6421 = vrot.slane %v6420, 4
      %v6423 = vshll.u32 %v6102, 16
      %v6425 = vrot.slane %v6423, 5
      %v6426 = vsel %vm6114, %v6421, %v6425
      %v6428 = vshrl.u32 %v6103, 16
      %v6430 = vrot.slane %v6428, 4
      %v6431 = vshll.u32 %v6103, 16
      %v6433 = vrot.slane %v6431, 5
      %v6434 = vor.u32 %v6430, %v6433
      %v6435 = vrot.slane %v6434, 4
      %v6437 = vshll.u32 %v6104, 16
      %v6439 = vrot.slane %v6437, 5
      %v6440 = vsel %vm6114, %v6435, %v6439
      %v6441 = vshrl.u32 %v6104, 16
      %v6443 = vrot.slane %v6441, 4
      %v6444 = vor.u32 %v6443, %v6439
      %v6445 = vrot.slane %v6444, 4
      %v6447 = vshll.u32 %v6105, 16
      %v6449 = vrot.slane %v6447, 5
      %v6450 = vsel %vm6114, %v6445, %v6449
      %v6452 = vshrl.u32 %v6106, 16
      %v6454 = vrot.slane %v6452, 4
      %v6455 = vshll.u32 %v6106, 16
      %v6457 = vrot.slane %v6455, 5
      %v6458 = vor.u32 %v6454, %v6457
      %v6459 = vrot.slane %v6458, 4
      %v6461 = vshll.u32 %v6107, 16
      %v6463 = vrot.slane %v6461, 5
      %v6464 = vsel %vm6114, %v6459, %v6463
      %v6465 = vshrl.u32 %v6107, 16
      %v6467 = vrot.slane %v6465, 4
      %v6468 = vor.u32 %v6467, %v6463
      %v6469 = vrot.slane %v6468, 4
      %v6471 = vshll.u32 %v6108, 16
      %v6473 = vrot.slane %v6471, 5
      %v6474 = vsel %vm6114, %v6469, %v6473
      %v6476 = vshrl.u32 %v6109, 16
      %v6478 = vrot.slane %v6476, 4
      %v6479 = vshll.u32 %v6109, 16
      %v6481 = vrot.slane %v6479, 5
      %v6482 = vor.u32 %v6478, %v6481
      %v6483 = vrot.slane %v6482, 4
      %v6485 = vshll.u32 %v6110, 16
      %v6487 = vrot.slane %v6485, 5
      %v6488 = vsel %vm6114, %v6483, %v6487
      %v6489 = vshrl.u32 %v6110, 16
      %v6491 = vrot.slane %v6489, 4
      %v6492 = vor.u32 %v6491, %v6487
      %v6493 = vrot.slane %v6492, 4
      %v6495 = vshll.u32 %v6111, 16
      %v6497 = vrot.slane %v6495, 5
      %v6498 = vsel %vm6114, %v6493, %v6497
      %v6532 = vlaneseq
      %v6533 = vshrl.u32 %v6532, 7
      %v6534 = vsub.s32 0, %v6533
      %v6535 = vrot.slane %v282, %v6534
      %v6537 = vmul.f32 %v6031, %v6535
      %v6538 = vmul.f32 %v6032, %v6535
      %v6539 = vmul.f32 %v6033, %v6535
      %v6540 = vmul.f32 %v6034, %v6535
      %v6541 = vmul.f32 %v6035, %v6535
      %v6542 = vmul.f32 %v6036, %v6535
      %v6543 = vmul.f32 %v6037, %v6535
      %v6544 = vmul.f32 %v6038, %v6535
      %v6545 = vmul.f32 %v6039, %v6535
      %v6546 = vmul.f32 %v6040, %v6535
      %v6547 = vmul.f32 %v6041, %v6535
      %v6548 = vmul.f32 %v6042, %v6535
      %v6549 = vmul.f32 %v6043, %v6535
      %v6550 = vmul.f32 %v6044, %v6535
      %v6551 = vmul.f32 %v6045, %v6535
      %v6552 = vmul.f32 %v6046, %v6535
      %v6553 = vmul.f32 %v6047, %v6535
      %v6554 = vmul.f32 %v6048, %v6535
      %v6555 = vmul.f32 %v6049, %v6535
      %v6556 = vmul.f32 %v6050, %v6535
      %v6557 = vmul.f32 %v6051, %v6535
      %v6558 = vmul.f32 %v6052, %v6535
      %v6559 = vmul.f32 %v6053, %v6535
      %v6560 = vmul.f32 %v6054, %v6535
      %v6561 = vmul.f32 %v6055, %v6535
      %v6562 = vmul.f32 %v6056, %v6535
      %v6563 = vmul.f32 %v6057, %v6535
      %v6564 = vmul.f32 %v6058, %v6535
      %v6565 = vmul.f32 %v6059, %v6535
      %v6566 = vmul.f32 %v6060, %v6535
      %v6567 = vmul.f32 %v6061, %v6535
      %v6568 = vmul.f32 %v6062, %v6535
      %v6570 = vlaneseq
      %v6571 = vshrl.u32 %v6570, 7
      %v6572 = vsub.s32 0, %v6571
      %v6573 = vrot.slane %v283, %v6572
      %v6575 = vadd.f32 %v6537, %v6573
      %v6576 = vadd.f32 %v6538, %v6573
      %v6577 = vadd.f32 %v6539, %v6573
      %v6578 = vadd.f32 %v6540, %v6573
      %v6579 = vadd.f32 %v6541, %v6573
      %v6580 = vadd.f32 %v6542, %v6573
      %v6581 = vadd.f32 %v6543, %v6573
      %v6582 = vadd.f32 %v6544, %v6573
      %v6583 = vadd.f32 %v6545, %v6573
      %v6584 = vadd.f32 %v6546, %v6573
      %v6585 = vadd.f32 %v6547, %v6573
      %v6586 = vadd.f32 %v6548, %v6573
      %v6587 = vadd.f32 %v6549, %v6573
      %v6588 = vadd.f32 %v6550, %v6573
      %v6589 = vadd.f32 %v6551, %v6573
      %v6590 = vadd.f32 %v6552, %v6573
      %v6591 = vadd.f32 %v6553, %v6573
      %v6592 = vadd.f32 %v6554, %v6573
      %v6593 = vadd.f32 %v6555, %v6573
      %v6594 = vadd.f32 %v6556, %v6573
      %v6595 = vadd.f32 %v6557, %v6573
      %v6596 = vadd.f32 %v6558, %v6573
      %v6597 = vadd.f32 %v6559, %v6573
      %v6598 = vadd.f32 %v6560, %v6573
      %v6599 = vadd.f32 %v6561, %v6573
      %v6600 = vadd.f32 %v6562, %v6573
      %v6601 = vadd.f32 %v6563, %v6573
      %v6602 = vadd.f32 %v6564, %v6573
      %v6603 = vadd.f32 %v6565, %v6573
      %v6604 = vadd.f32 %v6566, %v6573
      %v6605 = vadd.f32 %v6567, %v6573
      %v6606 = vadd.f32 %v6568, %v6573
      %v6607 = vunpack.c.l.bf16 %v6128
      %v6608 = vunpack.c.l.bf16 %v6138
      %v6609 = vunpack.c.l.bf16 %v6152
      %v6610 = vunpack.c.l.bf16 %v6162
      %v6611 = vunpack.c.l.bf16 %v6176
      %v6612 = vunpack.c.l.bf16 %v6186
      %v6613 = vunpack.c.l.bf16 %v6200
      %v6614 = vunpack.c.l.bf16 %v6210
      %v6615 = vunpack.c.l.bf16 %v6224
      %v6616 = vunpack.c.l.bf16 %v6234
      %v6617 = vunpack.c.l.bf16 %v6248
      %v6618 = vunpack.c.l.bf16 %v6258
      %v6619 = vunpack.c.l.bf16 %v6272
      %v6620 = vunpack.c.l.bf16 %v6282
      %v6621 = vunpack.c.l.bf16 %v6296
      %v6622 = vunpack.c.l.bf16 %v6306
      %v6623 = vunpack.c.l.bf16 %v6320
      %v6624 = vunpack.c.l.bf16 %v6330
      %v6625 = vunpack.c.l.bf16 %v6344
      %v6626 = vunpack.c.l.bf16 %v6354
      %v6627 = vunpack.c.l.bf16 %v6368
      %v6628 = vunpack.c.l.bf16 %v6378
      %v6629 = vunpack.c.l.bf16 %v6392
      %v6630 = vunpack.c.l.bf16 %v6402
      %v6631 = vunpack.c.l.bf16 %v6416
      %v6632 = vunpack.c.l.bf16 %v6426
      %v6633 = vunpack.c.l.bf16 %v6440
      %v6634 = vunpack.c.l.bf16 %v6450
      %v6635 = vunpack.c.l.bf16 %v6464
      %v6636 = vunpack.c.l.bf16 %v6474
      %v6637 = vunpack.c.l.bf16 %v6488
      %v6638 = vunpack.c.l.bf16 %v6498
      %v6639 = vadd.f32 %v6575, %v6607
      %v6640 = vadd.f32 %v6576, %v6608
      %v6641 = vadd.f32 %v6577, %v6609
      %v6642 = vadd.f32 %v6578, %v6610
      %v6643 = vadd.f32 %v6579, %v6611
      %v6644 = vadd.f32 %v6580, %v6612
      %v6645 = vadd.f32 %v6581, %v6613
      %v6646 = vadd.f32 %v6582, %v6614
      %v6647 = vadd.f32 %v6583, %v6615
      %v6648 = vadd.f32 %v6584, %v6616
      %v6649 = vadd.f32 %v6585, %v6617
      %v6650 = vadd.f32 %v6586, %v6618
      %v6651 = vadd.f32 %v6587, %v6619
      %v6652 = vadd.f32 %v6588, %v6620
      %v6653 = vadd.f32 %v6589, %v6621
      %v6654 = vadd.f32 %v6590, %v6622
      %v6655 = vadd.f32 %v6591, %v6623
      %v6656 = vadd.f32 %v6592, %v6624
      %v6657 = vadd.f32 %v6593, %v6625
      %v6658 = vadd.f32 %v6594, %v6626
      %v6659 = vadd.f32 %v6595, %v6627
      %v6660 = vadd.f32 %v6596, %v6628
      %v6661 = vadd.f32 %v6597, %v6629
      %v6662 = vadd.f32 %v6598, %v6630
      %v6663 = vadd.f32 %v6599, %v6631
      %v6664 = vadd.f32 %v6600, %v6632
      %v6665 = vadd.f32 %v6601, %v6633
      %v6666 = vadd.f32 %v6602, %v6634
      %v6667 = vadd.f32 %v6603, %v6635
      %v6668 = vadd.f32 %v6604, %v6636
      %v6669 = vadd.f32 %v6605, %v6637
      %v6670 = vadd.f32 %v6606, %v6638
      %v6671 = vmax.f32 %v6639, 0.0
      %v6672 = vmax.f32 %v6640, 0.0
      %v6673 = vmax.f32 %v6641, 0.0
      %v6674 = vmax.f32 %v6642, 0.0
      %v6675 = vmax.f32 %v6643, 0.0
      %v6676 = vmax.f32 %v6644, 0.0
      %v6677 = vmax.f32 %v6645, 0.0
      %v6678 = vmax.f32 %v6646, 0.0
      %v6679 = vmax.f32 %v6647, 0.0
      %v6680 = vmax.f32 %v6648, 0.0
      %v6681 = vmax.f32 %v6649, 0.0
      %v6682 = vmax.f32 %v6650, 0.0
      %v6683 = vmax.f32 %v6651, 0.0
      %v6684 = vmax.f32 %v6652, 0.0
      %v6685 = vmax.f32 %v6653, 0.0
      %v6686 = vmax.f32 %v6654, 0.0
      %v6687 = vmax.f32 %v6655, 0.0
      %v6688 = vmax.f32 %v6656, 0.0
      %v6689 = vmax.f32 %v6657, 0.0
      %v6690 = vmax.f32 %v6658, 0.0
      %v6691 = vmax.f32 %v6659, 0.0
      %v6692 = vmax.f32 %v6660, 0.0
      %v6693 = vmax.f32 %v6661, 0.0
      %v6694 = vmax.f32 %v6662, 0.0
      %v6695 = vmax.f32 %v6663, 0.0
      %v6696 = vmax.f32 %v6664, 0.0
      %v6697 = vmax.f32 %v6665, 0.0
      %v6698 = vmax.f32 %v6666, 0.0
      %v6699 = vmax.f32 %v6667, 0.0
      %v6700 = vmax.f32 %v6668, 0.0
      %v6701 = vmax.f32 %v6669, 0.0
      %v6702 = vmax.f32 %v6670, 0.0
      %v6703 = vpack.c.bf16 %v6672, %v6671
      %v6704 = vpack.c.bf16 %v6674, %v6673
      %v6705 = vpack.c.bf16 %v6676, %v6675
      %v6706 = vpack.c.bf16 %v6678, %v6677
      %v6707 = vpack.c.bf16 %v6680, %v6679
      %v6708 = vpack.c.bf16 %v6682, %v6681
      %v6709 = vpack.c.bf16 %v6684, %v6683
      %v6710 = vpack.c.bf16 %v6686, %v6685
      %v6711 = vpack.c.bf16 %v6688, %v6687
      %v6712 = vpack.c.bf16 %v6690, %v6689
      %v6713 = vpack.c.bf16 %v6692, %v6691
      %v6714 = vpack.c.bf16 %v6694, %v6693
      %v6715 = vpack.c.bf16 %v6696, %v6695
      %v6716 = vpack.c.bf16 %v6698, %v6697
      %v6717 = vpack.c.bf16 %v6700, %v6699
      %v6718 = vpack.c.bf16 %v6702, %v6701
      %v6735 = vunpack.c.l.b16 %v6703
      %v6736 = vunpack.c.h.b16 %v6703
      %v6737 = vunpack.c.l.b16 %v6704
      %v6738 = vunpack.c.h.b16 %v6704
      %v6739 = vunpack.c.l.b16 %v6705
      %v6740 = vunpack.c.h.b16 %v6705
      %v6741 = vunpack.c.l.b16 %v6706
      %v6742 = vunpack.c.h.b16 %v6706
      %v6743 = vunpack.c.l.b16 %v6707
      %v6744 = vunpack.c.h.b16 %v6707
      %v6745 = vunpack.c.l.b16 %v6708
      %v6746 = vunpack.c.h.b16 %v6708
      %v6747 = vunpack.c.l.b16 %v6709
      %v6748 = vunpack.c.h.b16 %v6709
      %v6749 = vunpack.c.l.b16 %v6710
      %v6750 = vunpack.c.h.b16 %v6710
      %v6751 = vunpack.c.l.b16 %v6711
      %v6752 = vunpack.c.h.b16 %v6711
      %v6753 = vunpack.c.l.b16 %v6712
      %v6754 = vunpack.c.h.b16 %v6712
      %v6755 = vunpack.c.l.b16 %v6713
      %v6756 = vunpack.c.h.b16 %v6713
      %v6757 = vunpack.c.l.b16 %v6714
      %v6758 = vunpack.c.h.b16 %v6714
      %v6759 = vunpack.c.l.b16 %v6715
      %v6760 = vunpack.c.h.b16 %v6715
      %v6761 = vunpack.c.l.b16 %v6716
      %v6762 = vunpack.c.h.b16 %v6716
      %v6763 = vunpack.c.l.b16 %v6717
      %v6764 = vunpack.c.h.b16 %v6717
      %v6765 = vunpack.c.l.b16 %v6718
      %v6766 = vunpack.c.h.b16 %v6718
      %v6767 = vpack.c.b16 %v6735, %v6735
      %v6768 = vpack.c.b16 %v6736, %v6736
      %v6769 = vpack.c.b16 %v6737, %v6737
      %v6770 = vpack.c.b16 %v6738, %v6738
      %v6771 = vpack.c.b16 %v6739, %v6739
      %v6772 = vpack.c.b16 %v6740, %v6740
      %v6773 = vpack.c.b16 %v6741, %v6741
      %v6774 = vpack.c.b16 %v6742, %v6742
      %v6775 = vpack.c.b16 %v6743, %v6743
      %v6776 = vpack.c.b16 %v6744, %v6744
      %v6777 = vpack.c.b16 %v6745, %v6745
      %v6778 = vpack.c.b16 %v6746, %v6746
      %v6779 = vpack.c.b16 %v6747, %v6747
      %v6780 = vpack.c.b16 %v6748, %v6748
      %v6781 = vpack.c.b16 %v6749, %v6749
      %v6782 = vpack.c.b16 %v6750, %v6750
      %v6783 = vpack.c.b16 %v6751, %v6751
      %v6784 = vpack.c.b16 %v6752, %v6752
      %v6785 = vpack.c.b16 %v6753, %v6753
      %v6786 = vpack.c.b16 %v6754, %v6754
      %v6787 = vpack.c.b16 %v6755, %v6755
      %v6788 = vpack.c.b16 %v6756, %v6756
      %v6789 = vpack.c.b16 %v6757, %v6757
      %v6790 = vpack.c.b16 %v6758, %v6758
      %v6791 = vpack.c.b16 %v6759, %v6759
      %v6792 = vpack.c.b16 %v6760, %v6760
      %v6793 = vpack.c.b16 %v6761, %v6761
      %v6794 = vpack.c.b16 %v6762, %v6762
      %v6795 = vpack.c.b16 %v6763, %v6763
      %v6796 = vpack.c.b16 %v6764, %v6764
      %v6797 = vpack.c.b16 %v6765, %v6765
      %v6798 = vpack.c.b16 %v6766, %v6766
      %6831 = vst [vmem:[%s278] sm:$0xf] %v6767
      %6832 = vst [vmem:[%s278 + $0x4] sm:$0xf] %v6768
      %6833 = vst [vmem:[%s278 + $0x8] sm:$0xf] %v6769
      %6834 = vst [vmem:[%s278 + $0xc] sm:$0xf] %v6770
      %6835 = vst [vmem:[%s278 + $0x10] sm:$0xf] %v6771
      %6836 = vst [vmem:[%s278 + $0x14] sm:$0xf] %v6772
      %6837 = vst [vmem:[%s278 + $0x18] sm:$0xf] %v6773
      %6838 = vst [vmem:[%s278 + $0x1c] sm:$0xf] %v6774
      %6839 = vst [vmem:[%s278 + $0x20] sm:$0xf] %v6775
      %6840 = vst [vmem:[%s278 + $0x24] sm:$0xf] %v6776
      %6841 = vst [vmem:[%s278 + $0x28] sm:$0xf] %v6777
      %6842 = vst [vmem:[%s278 + $0x2c] sm:$0xf] %v6778
      %6843 = vst [vmem:[%s278 + $0x30] sm:$0xf] %v6779
      %6844 = vst [vmem:[%s278 + $0x34] sm:$0xf] %v6780
      %6845 = vst [vmem:[%s278 + $0x38] sm:$0xf] %v6781
      %6846 = vst [vmem:[%s278 + $0x3c] sm:$0xf] %v6782
      %6847 = vst [vmem:[%s278 + $0x40] sm:$0xf] %v6783
      %6848 = vst [vmem:[%s278 + $0x44] sm:$0xf] %v6784
      %6849 = vst [vmem:[%s278 + $0x48] sm:$0xf] %v6785
      %6850 = vst [vmem:[%s278 + $0x4c] sm:$0xf] %v6786
      %6851 = vst [vmem:[%s278 + $0x50] sm:$0xf] %v6787
      %6852 = vst [vmem:[%s278 + $0x54] sm:$0xf] %v6788
      %6853 = vst [vmem:[%s278 + $0x58] sm:$0xf] %v6789
      %6854 = vst [vmem:[%s278 + $0x5c] sm:$0xf] %v6790
      %6855 = vst [vmem:[%s278 + $0x60] sm:$0xf] %v6791
      %6856 = vst [vmem:[%s278 + $0x64] sm:$0xf] %v6792
      %6857 = vst [vmem:[%s278 + $0x68] sm:$0xf] %v6793
      %6858 = vst [vmem:[%s278 + $0x6c] sm:$0xf] %v6794
      %6859 = vst [vmem:[%s278 + $0x70] sm:$0xf] %v6795
      %6860 = vst [vmem:[%s278 + $0x74] sm:$0xf] %v6796
      %6861 = vst [vmem:[%s278 + $0x78] sm:$0xf] %v6797
      %6862 = vst [vmem:[%s278 + $0x7c] sm:$0xf] %v6798
      %p6863 = scmp.lt.s32.totalorder %s18, 1
      %s6864 = scalar_select %p6863, %s18, 1
      %s6865 = smul.addr %s6864, 32
      %s6866 = smul.addr %s6865, 4
      %s6867 = scalar_lea.vmem %s7, %s6866
      // Predicated region
      $region49: #{basic_block_pallas.1} parent=47 // pred_check
        %p6868 = pneg %p188
      $region50: #{basic_block_pallas.1} parent=47 // pred_check_branch
        %6870 = sbr.rel (%p6868) target = $region52
      $region51: #{basic_block_pallas.1} parent=47 // pred_region
        _
      $region52: #{basic_block_pallas.1} parent=47 // pred_fallthru
        _
    $region48: #{basic_block_pallas.1} parent=5 // pred_fallthru
      _
    %p6871 = scmp.le.s32.totalorder 2, %s13
    // Predicated region
    $region53: #{basic_block_pallas.1} parent=5 // pred_check
      %p6872 = pneg %p6871
    $region54: #{basic_block_pallas.1} parent=5 // pred_check_branch
      %6874 = sbr.rel (%p6872) target = $region56
    $region55: #{basic_block_pallas.1} parent=5 // pred_region
      %s6875 = ssub.s32 %s13, 2
      // Predicated region
      $region57: #{basic_block_pallas.1} parent=55 // pred_check
        %p6876 = pneg %p194
      $region58: #{basic_block_pallas.1} parent=55 // pred_check_branch
        %6878 = sbr.rel (%p6876) target = $region60
      $region59: #{basic_block_pallas.1} parent=55 // pred_region
        %p6879 = scmp.lt.s32.totalorder %s19, 1
        %s6880 = scalar_select %p6879, %s19, 1
        %s6881 = smul.addr %s6880, 32
        %s6882 = smul.addr %s6881, 4
        %s6883 = scalar_lea.vmem %s7, %s6882
      $region60: #{basic_block_pallas.1} parent=55 // pred_fallthru
        _
    $region56: #{basic_block_pallas.1} parent=5 // pred_fallthru
      _
  $region6: #{basic_block_pallas.1} parent=0 // loop_footer
    %s17 = sadd.s32 1, %s13
  $region7: #{basic_block_pallas.1} parent=0 // loop_footer_branch
    %12 = sbr.rel target = $region3
  $region8: #{basic_block_pallas.1} parent=0 // loop_exit
    _

</llo_original>
